<compile_context>
chip_gen: v6e
topology: v6e:2x2x1
jax: 0.10.0
libtpu: 0.0.40
codegen_flags: <defaults>
</compile_context>

<pallas_src>
import functools
import math

import jax
import jax.numpy as jnp
from jax.experimental import pallas as pl
from jax.experimental.pallas import tpu as pltpu

EPS_BN = 1e-5      # nn.BatchNorm1d default eps
EPS_NORM = 1e-12   # F.normalize default eps

HID1, HID2 = 512, 256
PAD_C = 128        # lane-dense padded class dimension


# ------------------------------ in-kernel math ------------------------------

def _l2_normalize_rows(x):
    # F.normalize(dim=1): x / max(||x||, eps)  ==  x * rsqrt(max(||x||^2, eps^2))
    sumsq = jnp.sum(x * x, axis=1, keepdims=True)
    inv = jax.lax.rsqrt(jnp.maximum(sumsq, jnp.float32(EPS_NORM * EPS_NORM)))
    return x * inv


def _masked_softmax(logits, valid):
    # softmax over the first num_classes columns; padded lanes produce exact 0.
    neg = jnp.float32(-1e30)
    z = jnp.where(valid, logits, neg)
    z = z - jnp.max(z, axis=1, keepdims=True)
    e = jnp.where(valid, jnp.exp(z), 0.0)
    denom = jnp.sum(e, axis=1, keepdims=True)
    return e * pl.reciprocal(denom, approx=True)   # EUP, VALU stays free


def fused_kernel(*refs, num_classes):
    """refs = (x_smiles, x_enzyme, x_target,
               block1: w1,b1,w2,b2,w3,b3,w4,b4,
               block2: w1..b4,
               block3: w1..b4,
               out)"""
    x_refs = refs[0:3]
    param_refs = refs[3:-1]
    o_ref = refs[-1]

    valid = jax.lax.broadcasted_iota(jnp.int32, o_ref.shape, 1) < num_classes

    def block(x_ref, prefs):
        w1, b1, w2, b2, w3, b3, w4, b4 = prefs
        # concat_vector's per-row L2 normalize of the concatenated pair vector
        h = _l2_normalize_rows(x_ref[...].astype(jnp.float32))
        # 3x [Linear (BN folded in) -> ReLU];  Dropout = identity at inference
        for w, b in ((w1, b1), (w2, b2), (w3, b3)):
            h = jnp.dot(h.astype(jnp.bfloat16), w[...],
                        preferred_element_type=jnp.float32) + b[...]
            h = jnp.maximum(h, 0.0)
        # final Linear (zero-padded to PAD_C columns) + masked Softmax(dim=1)
        logits = jnp.dot(h.astype(jnp.bfloat16), w4[...],
                         preferred_element_type=jnp.float32) + b4[...]
        return _masked_softmax(logits, valid)

    p_smiles = block(x_refs[0], param_refs[0:8])
    p_enzyme = block(x_refs[1], param_refs[8:16])
    p_target = block(x_refs[2], param_refs[16:24])

    # combine: normalize(sum, dim=1) -> softmax(dim=1)
    s = _l2_normalize_rows(p_enzyme + p_target + p_smiles)
    o_ref[...] = _masked_softmax(s, valid)


# ------------------------------- host wrapper -------------------------------

def _round_up(x, m):
    return ((x + m - 1) // m) * m


def fused_forward(x_smiles, x_enzyme, x_target,
                  params_1, params_2, params_3, num_classes):
    B = x_smiles.shape[0]
    TB = min(256, _round_up(B, 8))            # batch tile (sublane-aligned)
    Bp = _round_up(B, TB)

    def pad_rows(x):
        return jnp.pad(x, ((0, Bp - B), (0, 0))) if Bp != B else x

    xs = [pad_rows(x_smiles), pad_rows(x_enzyme), pad_rows(x_target)]
    all_params = list(params_1) + list(params_2) + list(params_3)

    # batch tiles walk the grid; every weight/bias uses a constant index_map so
    # it is DMA'd once and stays VMEM-resident across batch tiles.
    in_specs = [pl.BlockSpec((TB, x.shape[1]), lambda i: (i, 0)) for x in xs]
    in_specs += [pl.BlockSpec(p.shape, lambda i: (0, 0)) for p in all_params]

    out = pl.pallas_call(
        functools.partial(fused_kernel, num_classes=num_classes),
        out_shape=jax.ShapeDtypeStruct((Bp, PAD_C), jnp.float32),
        grid_spec=pltpu.PrefetchScalarGridSpec(
            num_scalar_prefetch=0,
            grid=(Bp // TB,),
            in_specs=in_specs,
            out_specs=pl.BlockSpec((TB, PAD_C), lambda i: (i, 0)),
        ),
        compiler_params=pltpu.CompilerParams(
            dimension_semantics=("parallel",),        # megacore-shards on v7x
            vmem_limit_bytes=32 * 1024 * 1024,        # ~3 MiB bf16 weights + tiles; safe on v5e/v6e/v7x
        ),
    )(*xs, *all_params)
    return out[:B, :num_classes]


# ------------------------- parameter construction ---------------------------

def init_linear(key, fan_in, fan_out):
    kw, kb = jax.random.split(key)
    bound = 1.0 / math.sqrt(fan_in)
    w = jax.random.uniform(kw, (fan_in, fan_out), jnp.float32, -bound, bound)
    b = jax.random.uniform(kb, (fan_out,), jnp.float32, -bound, bound)
    return w, b


def init_block_raw(key, in_dim, num_classes):
    """PyTorch-equivalent raw params: 3x (Linear, BN stats) + final Linear."""
    keys = jax.random.split(key, 4)
    layers = []
    for k, (fi, fo) in zip(keys[:3], [(in_dim, HID1), (HID1, HID1), (HID1, HID2)]):
        w, b = init_linear(k, fi, fo)
        gamma = jnp.ones((fo,), jnp.float32)
        beta = jnp.zeros((fo,), jnp.float32)
        mean = jnp.zeros((fo,), jnp.float32)
        var = jnp.ones((fo,), jnp.float32)
        layers.append((w, b, gamma, beta, mean, var))
    final = init_linear(keys[3], HID2, num_classes)
    return layers, final


def fold_block(layers, final, num_classes, weight_dtype=jnp.bfloat16):
    """Fold each eval-mode BN (which follows a ReLU) into the NEXT Linear and
    zero-pad the final Linear to PAD_C lane-dense output columns."""
    folded = []
    s_prev, t_prev = None, None
    for (w, b, gamma, beta, mean, var) in layers:
        if s_prev is not None:
            b_new = t_prev @ w + b
            w_new = s_prev[:, None] * w
        else:
            w_new, b_new = w, b
        folded.append((w_new, b_new))
        s_prev = gamma / jnp.sqrt(var + EPS_BN)
        t_prev = beta - mean * s_prev

    w4, b4 = final
    b4_new = t_prev @ w4 + b4
    w4_new = s_prev[:, None] * w4
    w4_pad = jnp.zeros((w4_new.shape[0], PAD_C), jnp.float32).at[:, :num_classes].set(w4_new)
    b4_pad = jnp.zeros((PAD_C,), jnp.float32).at[:num_classes].set(b4_new)

    params = []
    for w, b in folded + [(w4_pad, b4_pad)]:
        params.append(w.astype(weight_dtype))            # bf16 weights (DMA/MXU)
        params.append(b.reshape(1, -1).astype(jnp.float32))  # f32 biases
    return params  # [w1,b1,w2,b2,w3,b3,w4,b4]


def concat_pairs(features, idx1, idx2):
    # glue: gather the two drugs' feature rows and concat along the feature dim
    # TODO(synk): for large tables, move this gather+concat into the kernel via
    # PrefetchScalarGridSpec(num_scalar_prefetch=1) + pl.Element row gathers.
    return jnp.concatenate([features[idx1], features[idx2]], axis=1)


# -------------------------- pure-JAX f32 reference --------------------------

def reference_forward(x1, x2, x3, raw_blocks):
    def block(x, layers, final):
        h = x / jnp.maximum(jnp.linalg.norm(x, axis=1, keepdims=True), EPS_NORM)
        for (w, b, gamma, beta, mean, var) in layers:
            h = jnp.maximum(h @ w + b, 0.0)
            h = (h - mean) * (gamma / jnp.sqrt(var + EPS_BN)) + beta
        w4, b4 = final
        return jax.nn.softmax(h @ w4 + b4, axis=1)

    p1 = block(x1, *raw_blocks[0])
    p2 = block(x2, *raw_blocks[1])
    p3 = block(x3, *raw_blocks[2])
    s = p2 + p3 + p1
    s = s / jnp.maximum(jnp.linalg.norm(s, axis=1, keepdims=True), EPS_NORM)
    return jax.nn.softmax(s, axis=1)


# ----------------------------------- main -----------------------------------

if __name__ == "__main__":
    key = jax.random.PRNGKey(0)
    (k_smiles, k_enzyme, k_target,
     k_b1, k_b2, k_b3, k_pairs) = jax.random.split(key, 7)

    num_drugs = 10
    smiles_dim, enzyme_dim, target_dim = 64, 64, 64
    num_classes = 8
    batch = 8  # number of drug pairs

    # synthetic drug_features tables (stand-ins for drug_features.*_features)
    smiles_features = jax.random.normal(k_smiles, (num_drugs, smiles_dim), jnp.float32)
    enzyme_features = jax.random.normal(k_enzyme, (num_drugs, enzyme_dim), jnp.float32)
    target_features = jax.random.normal(k_target, (num_drugs, target_dim), jnp.float32)

    # drug pair indices (stand-in for pandas iterrows + drugs_list.index lookups)
    pair_idx = jax.random.randint(k_pairs, (batch, 2), 0, num_drugs)
    idx1, idx2 = pair_idx[:, 0], pair_idx[:, 1]

    smiles_input = concat_pairs(smiles_features, idx1, idx2)   # (B, 128)
    enzyme_input = concat_pairs(enzyme_features, idx1, idx2)   # (B, 128)
    target_input = concat_pairs(target_features, idx1, idx2)   # (B, 128)

    raw_1 = init_block_raw(k_b1, 2 * smiles_dim, num_classes)
    raw_2 = init_block_raw(k_b2, 2 * enzyme_dim, num_classes)
    raw_3 = init_block_raw(k_b3, 2 * target_dim, num_classes)

    params_1 = fold_block(*raw_1, num_classes=num_classes)
    params_2 = fold_block(*raw_2, num_classes=num_classes)
    params_3 = fold_block(*raw_3, num_classes=num_classes)

    output = fused_forward(smiles_input, enzyme_input, target_input,
                           params_1, params_2, params_3, num_classes)
    output = jax.block_until_ready(output)

    assert output.shape == (batch, num_classes)
    assert bool(jnp.all(jnp.isfinite(output)))
    # rows of the final output are softmax distributions
    assert bool(jnp.allclose(jnp.sum(output, axis=1), 1.0, atol=1e-2))

    # sanity vs. an f32 pure-JAX reference (bf16 weights => loose tolerance)
    ref = reference_forward(smiles_input, enzyme_input, target_input,
                            [raw_1, raw_2, raw_3])
    assert float(jnp.max(jnp.abs(output - ref))) < 5e-2

    print("KERNEL_OK")
</pallas_src>

<mosaic_0001>
module attributes {stable_mosaic.version = 11 : i64} {
  func.func @fused_kernel(%arg0: i32, %arg1: memref<8x128xf32, #tpu.memory_space<vmem>>, %arg2: memref<8x128xf32, #tpu.memory_space<vmem>>, %arg3: memref<8x128xf32, #tpu.memory_space<vmem>>, %arg4: memref<128x512xbf16, #tpu.memory_space<vmem>>, %arg5: memref<1x512xf32, #tpu.memory_space<vmem>>, %arg6: memref<512x512xbf16, #tpu.memory_space<vmem>>, %arg7: memref<1x512xf32, #tpu.memory_space<vmem>>, %arg8: memref<512x256xbf16, #tpu.memory_space<vmem>>, %arg9: memref<1x256xf32, #tpu.memory_space<vmem>>, %arg10: memref<256x128xbf16, #tpu.memory_space<vmem>>, %arg11: memref<1x128xf32, #tpu.memory_space<vmem>>, %arg12: memref<128x512xbf16, #tpu.memory_space<vmem>>, %arg13: memref<1x512xf32, #tpu.memory_space<vmem>>, %arg14: memref<512x512xbf16, #tpu.memory_space<vmem>>, %arg15: memref<1x512xf32, #tpu.memory_space<vmem>>, %arg16: memref<512x256xbf16, #tpu.memory_space<vmem>>, %arg17: memref<1x256xf32, #tpu.memory_space<vmem>>, %arg18: memref<256x128xbf16, #tpu.memory_space<vmem>>, %arg19: memref<1x128xf32, #tpu.memory_space<vmem>>, %arg20: memref<128x512xbf16, #tpu.memory_space<vmem>>, %arg21: memref<1x512xf32, #tpu.memory_space<vmem>>, %arg22: memref<512x512xbf16, #tpu.memory_space<vmem>>, %arg23: memref<1x512xf32, #tpu.memory_space<vmem>>, %arg24: memref<512x256xbf16, #tpu.memory_space<vmem>>, %arg25: memref<1x256xf32, #tpu.memory_space<vmem>>, %arg26: memref<256x128xbf16, #tpu.memory_space<vmem>>, %arg27: memref<1x128xf32, #tpu.memory_space<vmem>>, %arg28: memref<8x128xf32, #tpu.memory_space<vmem>>) attributes {dimension_semantics = [#tpu.dimension_semantics<parallel>], iteration_bounds = array<i64: 1>, scalar_prefetch = 0 : i64, scratch_operands = 0 : i64, tpu.core_type = #tpu.core_type<tc>, window_params = [{transform_indices = @transform_0, window_bounds = array<i64: 8, 128>}, {transform_indices = @transform_1, window_bounds = array<i64: 8, 128>}, {transform_indices = @transform_2, window_bounds = array<i64: 8, 128>}, {pipeline_mode = #tpu.pipeline_mode<synchronous>, transform_indices = @transform_3, window_bounds = array<i64: 128, 512>}, {pipeline_mode = #tpu.pipeline_mode<synchronous>, transform_indices = @transform_4, window_bounds = array<i64: 1, 512>}, {pipeline_mode = #tpu.pipeline_mode<synchronous>, transform_indices = @transform_5, window_bounds = array<i64: 512, 512>}, {pipeline_mode = #tpu.pipeline_mode<synchronous>, transform_indices = @transform_6, window_bounds = array<i64: 1, 512>}, {pipeline_mode = #tpu.pipeline_mode<synchronous>, transform_indices = @transform_7, window_bounds = array<i64: 512, 256>}, {pipeline_mode = #tpu.pipeline_mode<synchronous>, transform_indices = @transform_8, window_bounds = array<i64: 1, 256>}, {pipeline_mode = #tpu.pipeline_mode<synchronous>, transform_indices = @transform_9, window_bounds = array<i64: 256, 128>}, {pipeline_mode = #tpu.pipeline_mode<synchronous>, transform_indices = @transform_10, window_bounds = array<i64: 1, 128>}, {pipeline_mode = #tpu.pipeline_mode<synchronous>, transform_indices = @transform_11, window_bounds = array<i64: 128, 512>}, {pipeline_mode = #tpu.pipeline_mode<synchronous>, transform_indices = @transform_12, window_bounds = array<i64: 1, 512>}, {pipeline_mode = #tpu.pipeline_mode<synchronous>, transform_indices = @transform_13, window_bounds = array<i64: 512, 512>}, {pipeline_mode = #tpu.pipeline_mode<synchronous>, transform_indices = @transform_14, window_bounds = array<i64: 1, 512>}, {pipeline_mode = #tpu.pipeline_mode<synchronous>, transform_indices = @transform_15, window_bounds = array<i64: 512, 256>}, {pipeline_mode = #tpu.pipeline_mode<synchronous>, transform_indices = @transform_16, window_bounds = array<i64: 1, 256>}, {pipeline_mode = #tpu.pipeline_mode<synchronous>, transform_indices = @transform_17, window_bounds = array<i64: 256, 128>}, {pipeline_mode = #tpu.pipeline_mode<synchronous>, transform_indices = @transform_18, window_bounds = array<i64: 1, 128>}, {pipeline_mode = #tpu.pipeline_mode<synchronous>, transform_indices = @transform_19, window_bounds = array<i64: 128, 512>}, {pipeline_mode = #tpu.pipeline_mode<synchronous>, transform_indices = @transform_20, window_bounds = array<i64: 1, 512>}, {pipeline_mode = #tpu.pipeline_mode<synchronous>, transform_indices = @transform_21, window_bounds = array<i64: 512, 512>}, {pipeline_mode = #tpu.pipeline_mode<synchronous>, transform_indices = @transform_22, window_bounds = array<i64: 1, 512>}, {pipeline_mode = #tpu.pipeline_mode<synchronous>, transform_indices = @transform_23, window_bounds = array<i64: 512, 256>}, {pipeline_mode = #tpu.pipeline_mode<synchronous>, transform_indices = @transform_24, window_bounds = array<i64: 1, 256>}, {pipeline_mode = #tpu.pipeline_mode<synchronous>, transform_indices = @transform_25, window_bounds = array<i64: 256, 128>}, {pipeline_mode = #tpu.pipeline_mode<synchronous>, transform_indices = @transform_26, window_bounds = array<i64: 1, 128>}, {transform_indices = @transform_27, window_bounds = array<i64: 8, 128>}]} {
    %0 = tpu.iota {dimensions = array<i32: 1>} : vector<8x128xi32>
    %c8_i32 = arith.constant 8 : i32
    %1 = vector.broadcast %c8_i32 : i32 to vector<8x128xi32>
    %2 = arith.cmpi slt, %0, %1 : vector<8x128xi32>
    %c0 = arith.constant 0 : index
    %c0_0 = arith.constant 0 : index
    %3 = vector.load %arg1[%c0, %c0_0] : memref<8x128xf32, #tpu.memory_space<vmem>>, vector<8x128xf32>
    %4 = arith.mulf %3, %3 : vector<8x128xf32>
    %cst = arith.constant dense<0.000000e+00> : vector<8xf32>
    %5 = vector.multi_reduction <add>, %4, %cst [1] : vector<8x128xf32> to vector<8xf32>
    %6 = vector.shape_cast %5 : vector<8xf32> to vector<8x1xf32>
    %cst_1 = arith.constant 1.000000e-24 : f32
    %7 = vector.broadcast %cst_1 : f32 to vector<8x1xf32>
    %8 = arith.maximumf %6, %7 : vector<8x1xf32>
    %9 = math.rsqrt %8 : vector<8x1xf32>
    %10 = vector.broadcast %9 : vector<8x1xf32> to vector<8x128xf32>
    %11 = arith.mulf %3, %10 : vector<8x128xf32>
    %12 = arith.truncf %11 : vector<8x128xf32> to vector<8x128xbf16>
    %c0_2 = arith.constant 0 : index
    %c0_3 = arith.constant 0 : index
    %13 = vector.load %arg4[%c0_2, %c0_3] : memref<128x512xbf16, #tpu.memory_space<vmem>>, vector<128x512xbf16>
    %cst_4 = arith.constant dense<0.000000e+00> : vector<8x512xf32>
    %14 = tpu.matmul %12, %13, %cst_4 {dimension_numbers = #tpu.dot_dimension_numbers<[1], [0], [0], [1], [0, 0, 1, 1], [], []>} : vector<8x128xbf16>, vector<128x512xbf16>, vector<8x512xf32> -> vector<8x512xf32>
    %c0_5 = arith.constant 0 : index
    %c0_6 = arith.constant 0 : index
    %15 = vector.load %arg5[%c0_5, %c0_6] : memref<1x512xf32, #tpu.memory_space<vmem>>, vector<1x512xf32>
    %16 = vector.broadcast %15 : vector<1x512xf32> to vector<8x512xf32>
    %17 = arith.addf %14, %16 : vector<8x512xf32>
    %cst_7 = arith.constant 0.000000e+00 : f32
    %18 = vector.broadcast %cst_7 : f32 to vector<8x512xf32>
    %19 = arith.maximumf %17, %18 : vector<8x512xf32>
    %20 = arith.truncf %19 : vector<8x512xf32> to vector<8x512xbf16>
    %c0_8 = arith.constant 0 : index
    %c0_9 = arith.constant 0 : index
    %21 = vector.load %arg6[%c0_8, %c0_9] : memref<512x512xbf16, #tpu.memory_space<vmem>>, vector<512x512xbf16>
    %cst_10 = arith.constant dense<0.000000e+00> : vector<8x512xf32>
    %22 = tpu.matmul %20, %21, %cst_10 {dimension_numbers = #tpu.dot_dimension_numbers<[1], [0], [0], [1], [0, 0, 1, 1], [], []>} : vector<8x512xbf16>, vector<512x512xbf16>, vector<8x512xf32> -> vector<8x512xf32>
    %c0_11 = arith.constant 0 : index
    %c0_12 = arith.constant 0 : index
    %23 = vector.load %arg7[%c0_11, %c0_12] : memref<1x512xf32, #tpu.memory_space<vmem>>, vector<1x512xf32>
    %24 = vector.broadcast %23 : vector<1x512xf32> to vector<8x512xf32>
    %25 = arith.addf %22, %24 : vector<8x512xf32>
    %cst_13 = arith.constant 0.000000e+00 : f32
    %26 = vector.broadcast %cst_13 : f32 to vector<8x512xf32>
    %27 = arith.maximumf %25, %26 : vector<8x512xf32>
    %28 = arith.truncf %27 : vector<8x512xf32> to vector<8x512xbf16>
    %c0_14 = arith.constant 0 : index
    %c0_15 = arith.constant 0 : index
    %29 = vector.load %arg8[%c0_14, %c0_15] : memref<512x256xbf16, #tpu.memory_space<vmem>>, vector<512x256xbf16>
    %cst_16 = arith.constant dense<0.000000e+00> : vector<8x256xf32>
    %30 = tpu.matmul %28, %29, %cst_16 {dimension_numbers = #tpu.dot_dimension_numbers<[1], [0], [0], [1], [0, 0, 1, 1], [], []>} : vector<8x512xbf16>, vector<512x256xbf16>, vector<8x256xf32> -> vector<8x256xf32>
    %c0_17 = arith.constant 0 : index
    %c0_18 = arith.constant 0 : index
    %31 = vector.load %arg9[%c0_17, %c0_18] : memref<1x256xf32, #tpu.memory_space<vmem>>, vector<1x256xf32>
    %32 = vector.broadcast %31 : vector<1x256xf32> to vector<8x256xf32>
    %33 = arith.addf %30, %32 : vector<8x256xf32>
    %cst_19 = arith.constant 0.000000e+00 : f32
    %34 = vector.broadcast %cst_19 : f32 to vector<8x256xf32>
    %35 = arith.maximumf %33, %34 : vector<8x256xf32>
    %36 = arith.truncf %35 : vector<8x256xf32> to vector<8x256xbf16>
    %c0_20 = arith.constant 0 : index
    %c0_21 = arith.constant 0 : index
    %37 = vector.load %arg10[%c0_20, %c0_21] : memref<256x128xbf16, #tpu.memory_space<vmem>>, vector<256x128xbf16>
    %cst_22 = arith.constant dense<0.000000e+00> : vector<8x128xf32>
    %38 = tpu.matmul %36, %37, %cst_22 {dimension_numbers = #tpu.dot_dimension_numbers<[1], [0], [0], [1], [0, 0, 1, 1], [], []>} : vector<8x256xbf16>, vector<256x128xbf16>, vector<8x128xf32> -> vector<8x128xf32>
    %c0_23 = arith.constant 0 : index
    %c0_24 = arith.constant 0 : index
    %39 = vector.load %arg11[%c0_23, %c0_24] : memref<1x128xf32, #tpu.memory_space<vmem>>, vector<1x128xf32>
    %40 = vector.broadcast %39 : vector<1x128xf32> to vector<8x128xf32>
    %41 = arith.addf %38, %40 : vector<8x128xf32>
    %cst_25 = arith.constant -1.000000e+30 : f32
    %42 = vector.broadcast %cst_25 : f32 to vector<8x128xf32>
    %43 = arith.select %2, %41, %42 : vector<8x128xi1>, vector<8x128xf32>
    %cst_26 = arith.constant dense<0xFF800000> : vector<8xf32>
    %44 = vector.multi_reduction <maximumf>, %43, %cst_26 [1] : vector<8x128xf32> to vector<8xf32>
    %45 = vector.shape_cast %44 : vector<8xf32> to vector<8x1xf32>
    %46 = vector.broadcast %45 : vector<8x1xf32> to vector<8x128xf32>
    %47 = arith.subf %43, %46 : vector<8x128xf32>
    %48 = math.exp %47 : vector<8x128xf32>
    %cst_27 = arith.constant 0.000000e+00 : f32
    %49 = vector.broadcast %cst_27 : f32 to vector<8x128xf32>
    %50 = arith.select %2, %48, %49 : vector<8x128xi1>, vector<8x128xf32>
    %cst_28 = arith.constant dense<0.000000e+00> : vector<8xf32>
    %51 = vector.multi_reduction <add>, %50, %cst_28 [1] : vector<8x128xf32> to vector<8xf32>
    %52 = vector.shape_cast %51 : vector<8xf32> to vector<8x1xf32>
    %53 = tpu.reciprocal %52 {approx = true} : vector<8x1xf32> -> vector<8x1xf32>
    %54 = vector.broadcast %53 : vector<8x1xf32> to vector<8x128xf32>
    %55 = arith.mulf %50, %54 : vector<8x128xf32>
    %c0_29 = arith.constant 0 : index
    %c0_30 = arith.constant 0 : index
    %56 = vector.load %arg2[%c0_29, %c0_30] : memref<8x128xf32, #tpu.memory_space<vmem>>, vector<8x128xf32>
    %57 = arith.mulf %56, %56 : vector<8x128xf32>
    %cst_31 = arith.constant dense<0.000000e+00> : vector<8xf32>
    %58 = vector.multi_reduction <add>, %57, %cst_31 [1] : vector<8x128xf32> to vector<8xf32>
    %59 = vector.shape_cast %58 : vector<8xf32> to vector<8x1xf32>
    %cst_32 = arith.constant 1.000000e-24 : f32
    %60 = vector.broadcast %cst_32 : f32 to vector<8x1xf32>
    %61 = arith.maximumf %59, %60 : vector<8x1xf32>
    %62 = math.rsqrt %61 : vector<8x1xf32>
    %63 = vector.broadcast %62 : vector<8x1xf32> to vector<8x128xf32>
    %64 = arith.mulf %56, %63 : vector<8x128xf32>
    %65 = arith.truncf %64 : vector<8x128xf32> to vector<8x128xbf16>
    %c0_33 = arith.constant 0 : index
    %c0_34 = arith.constant 0 : index
    %66 = vector.load %arg12[%c0_33, %c0_34] : memref<128x512xbf16, #tpu.memory_space<vmem>>, vector<128x512xbf16>
    %cst_35 = arith.constant dense<0.000000e+00> : vector<8x512xf32>
    %67 = tpu.matmul %65, %66, %cst_35 {dimension_numbers = #tpu.dot_dimension_numbers<[1], [0], [0], [1], [0, 0, 1, 1], [], []>} : vector<8x128xbf16>, vector<128x512xbf16>, vector<8x512xf32> -> vector<8x512xf32>
    %c0_36 = arith.constant 0 : index
    %c0_37 = arith.constant 0 : index
    %68 = vector.load %arg13[%c0_36, %c0_37] : memref<1x512xf32, #tpu.memory_space<vmem>>, vector<1x512xf32>
    %69 = vector.broadcast %68 : vector<1x512xf32> to vector<8x512xf32>
    %70 = arith.addf %67, %69 : vector<8x512xf32>
    %cst_38 = arith.constant 0.000000e+00 : f32
    %71 = vector.broadcast %cst_38 : f32 to vector<8x512xf32>
    %72 = arith.maximumf %70, %71 : vector<8x512xf32>
    %73 = arith.truncf %72 : vector<8x512xf32> to vector<8x512xbf16>
    %c0_39 = arith.constant 0 : index
    %c0_40 = arith.constant 0 : index
    %74 = vector.load %arg14[%c0_39, %c0_40] : memref<512x512xbf16, #tpu.memory_space<vmem>>, vector<512x512xbf16>
    %cst_41 = arith.constant dense<0.000000e+00> : vector<8x512xf32>
    %75 = tpu.matmul %73, %74, %cst_41 {dimension_numbers = #tpu.dot_dimension_numbers<[1], [0], [0], [1], [0, 0, 1, 1], [], []>} : vector<8x512xbf16>, vector<512x512xbf16>, vector<8x512xf32> -> vector<8x512xf32>
    %c0_42 = arith.constant 0 : index
    %c0_43 = arith.constant 0 : index
    %76 = vector.load %arg15[%c0_42, %c0_43] : memref<1x512xf32, #tpu.memory_space<vmem>>, vector<1x512xf32>
    %77 = vector.broadcast %76 : vector<1x512xf32> to vector<8x512xf32>
    %78 = arith.addf %75, %77 : vector<8x512xf32>
    %cst_44 = arith.constant 0.000000e+00 : f32
    %79 = vector.broadcast %cst_44 : f32 to vector<8x512xf32>
    %80 = arith.maximumf %78, %79 : vector<8x512xf32>
    %81 = arith.truncf %80 : vector<8x512xf32> to vector<8x512xbf16>
    %c0_45 = arith.constant 0 : index
    %c0_46 = arith.constant 0 : index
    %82 = vector.load %arg16[%c0_45, %c0_46] : memref<512x256xbf16, #tpu.memory_space<vmem>>, vector<512x256xbf16>
    %cst_47 = arith.constant dense<0.000000e+00> : vector<8x256xf32>
    %83 = tpu.matmul %81, %82, %cst_47 {dimension_numbers = #tpu.dot_dimension_numbers<[1], [0], [0], [1], [0, 0, 1, 1], [], []>} : vector<8x512xbf16>, vector<512x256xbf16>, vector<8x256xf32> -> vector<8x256xf32>
    %c0_48 = arith.constant 0 : index
    %c0_49 = arith.constant 0 : index
    %84 = vector.load %arg17[%c0_48, %c0_49] : memref<1x256xf32, #tpu.memory_space<vmem>>, vector<1x256xf32>
    %85 = vector.broadcast %84 : vector<1x256xf32> to vector<8x256xf32>
    %86 = arith.addf %83, %85 : vector<8x256xf32>
    %cst_50 = arith.constant 0.000000e+00 : f32
    %87 = vector.broadcast %cst_50 : f32 to vector<8x256xf32>
    %88 = arith.maximumf %86, %87 : vector<8x256xf32>
    %89 = arith.truncf %88 : vector<8x256xf32> to vector<8x256xbf16>
    %c0_51 = arith.constant 0 : index
    %c0_52 = arith.constant 0 : index
    %90 = vector.load %arg18[%c0_51, %c0_52] : memref<256x128xbf16, #tpu.memory_space<vmem>>, vector<256x128xbf16>
    %cst_53 = arith.constant dense<0.000000e+00> : vector<8x128xf32>
    %91 = tpu.matmul %89, %90, %cst_53 {dimension_numbers = #tpu.dot_dimension_numbers<[1], [0], [0], [1], [0, 0, 1, 1], [], []>} : vector<8x256xbf16>, vector<256x128xbf16>, vector<8x128xf32> -> vector<8x128xf32>
    %c0_54 = arith.constant 0 : index
    %c0_55 = arith.constant 0 : index
    %92 = vector.load %arg19[%c0_54, %c0_55] : memref<1x128xf32, #tpu.memory_space<vmem>>, vector<1x128xf32>
    %93 = vector.broadcast %92 : vector<1x128xf32> to vector<8x128xf32>
    %94 = arith.addf %91, %93 : vector<8x128xf32>
    %cst_56 = arith.constant -1.000000e+30 : f32
    %95 = vector.broadcast %cst_56 : f32 to vector<8x128xf32>
    %96 = arith.select %2, %94, %95 : vector<8x128xi1>, vector<8x128xf32>
    %cst_57 = arith.constant dense<0xFF800000> : vector<8xf32>
    %97 = vector.multi_reduction <maximumf>, %96, %cst_57 [1] : vector<8x128xf32> to vector<8xf32>
    %98 = vector.shape_cast %97 : vector<8xf32> to vector<8x1xf32>
    %99 = vector.broadcast %98 : vector<8x1xf32> to vector<8x128xf32>
    %100 = arith.subf %96, %99 : vector<8x128xf32>
    %101 = math.exp %100 : vector<8x128xf32>
    %cst_58 = arith.constant 0.000000e+00 : f32
    %102 = vector.broadcast %cst_58 : f32 to vector<8x128xf32>
    %103 = arith.select %2, %101, %102 : vector<8x128xi1>, vector<8x128xf32>
    %cst_59 = arith.constant dense<0.000000e+00> : vector<8xf32>
    %104 = vector.multi_reduction <add>, %103, %cst_59 [1] : vector<8x128xf32> to vector<8xf32>
    %105 = vector.shape_cast %104 : vector<8xf32> to vector<8x1xf32>
    %106 = tpu.reciprocal %105 {approx = true} : vector<8x1xf32> -> vector<8x1xf32>
    %107 = vector.broadcast %106 : vector<8x1xf32> to vector<8x128xf32>
    %108 = arith.mulf %103, %107 : vector<8x128xf32>
    %c0_60 = arith.constant 0 : index
    %c0_61 = arith.constant 0 : index
    %109 = vector.load %arg3[%c0_60, %c0_61] : memref<8x128xf32, #tpu.memory_space<vmem>>, vector<8x128xf32>
    %110 = arith.mulf %109, %109 : vector<8x128xf32>
    %cst_62 = arith.constant dense<0.000000e+00> : vector<8xf32>
    %111 = vector.multi_reduction <add>, %110, %cst_62 [1] : vector<8x128xf32> to vector<8xf32>
    %112 = vector.shape_cast %111 : vector<8xf32> to vector<8x1xf32>
    %cst_63 = arith.constant 1.000000e-24 : f32
    %113 = vector.broadcast %cst_63 : f32 to vector<8x1xf32>
    %114 = arith.maximumf %112, %113 : vector<8x1xf32>
    %115 = math.rsqrt %114 : vector<8x1xf32>
    %116 = vector.broadcast %115 : vector<8x1xf32> to vector<8x128xf32>
    %117 = arith.mulf %109, %116 : vector<8x128xf32>
    %118 = arith.truncf %117 : vector<8x128xf32> to vector<8x128xbf16>
    %c0_64 = arith.constant 0 : index
    %c0_65 = arith.constant 0 : index
    %119 = vector.load %arg20[%c0_64, %c0_65] : memref<128x512xbf16, #tpu.memory_space<vmem>>, vector<128x512xbf16>
    %cst_66 = arith.constant dense<0.000000e+00> : vector<8x512xf32>
    %120 = tpu.matmul %118, %119, %cst_66 {dimension_numbers = #tpu.dot_dimension_numbers<[1], [0], [0], [1], [0, 0, 1, 1], [], []>} : vector<8x128xbf16>, vector<128x512xbf16>, vector<8x512xf32> -> vector<8x512xf32>
    %c0_67 = arith.constant 0 : index
    %c0_68 = arith.constant 0 : index
    %121 = vector.load %arg21[%c0_67, %c0_68] : memref<1x512xf32, #tpu.memory_space<vmem>>, vector<1x512xf32>
    %122 = vector.broadcast %121 : vector<1x512xf32> to vector<8x512xf32>
    %123 = arith.addf %120, %122 : vector<8x512xf32>
    %cst_69 = arith.constant 0.000000e+00 : f32
    %124 = vector.broadcast %cst_69 : f32 to vector<8x512xf32>
    %125 = arith.maximumf %123, %124 : vector<8x512xf32>
    %126 = arith.truncf %125 : vector<8x512xf32> to vector<8x512xbf16>
    %c0_70 = arith.constant 0 : index
    %c0_71 = arith.constant 0 : index
    %127 = vector.load %arg22[%c0_70, %c0_71] : memref<512x512xbf16, #tpu.memory_space<vmem>>, vector<512x512xbf16>
    %cst_72 = arith.constant dense<0.000000e+00> : vector<8x512xf32>
    %128 = tpu.matmul %126, %127, %cst_72 {dimension_numbers = #tpu.dot_dimension_numbers<[1], [0], [0], [1], [0, 0, 1, 1], [], []>} : vector<8x512xbf16>, vector<512x512xbf16>, vector<8x512xf32> -> vector<8x512xf32>
    %c0_73 = arith.constant 0 : index
    %c0_74 = arith.constant 0 : index
    %129 = vector.load %arg23[%c0_73, %c0_74] : memref<1x512xf32, #tpu.memory_space<vmem>>, vector<1x512xf32>
    %130 = vector.broadcast %129 : vector<1x512xf32> to vector<8x512xf32>
    %131 = arith.addf %128, %130 : vector<8x512xf32>
    %cst_75 = arith.constant 0.000000e+00 : f32
    %132 = vector.broadcast %cst_75 : f32 to vector<8x512xf32>
    %133 = arith.maximumf %131, %132 : vector<8x512xf32>
    %134 = arith.truncf %133 : vector<8x512xf32> to vector<8x512xbf16>
    %c0_76 = arith.constant 0 : index
    %c0_77 = arith.constant 0 : index
    %135 = vector.load %arg24[%c0_76, %c0_77] : memref<512x256xbf16, #tpu.memory_space<vmem>>, vector<512x256xbf16>
    %cst_78 = arith.constant dense<0.000000e+00> : vector<8x256xf32>
    %136 = tpu.matmul %134, %135, %cst_78 {dimension_numbers = #tpu.dot_dimension_numbers<[1], [0], [0], [1], [0, 0, 1, 1], [], []>} : vector<8x512xbf16>, vector<512x256xbf16>, vector<8x256xf32> -> vector<8x256xf32>
    %c0_79 = arith.constant 0 : index
    %c0_80 = arith.constant 0 : index
    %137 = vector.load %arg25[%c0_79, %c0_80] : memref<1x256xf32, #tpu.memory_space<vmem>>, vector<1x256xf32>
    %138 = vector.broadcast %137 : vector<1x256xf32> to vector<8x256xf32>
    %139 = arith.addf %136, %138 : vector<8x256xf32>
    %cst_81 = arith.constant 0.000000e+00 : f32
    %140 = vector.broadcast %cst_81 : f32 to vector<8x256xf32>
    %141 = arith.maximumf %139, %140 : vector<8x256xf32>
    %142 = arith.truncf %141 : vector<8x256xf32> to vector<8x256xbf16>
    %c0_82 = arith.constant 0 : index
    %c0_83 = arith.constant 0 : index
    %143 = vector.load %arg26[%c0_82, %c0_83] : memref<256x128xbf16, #tpu.memory_space<vmem>>, vector<256x128xbf16>
    %cst_84 = arith.constant dense<0.000000e+00> : vector<8x128xf32>
    %144 = tpu.matmul %142, %143, %cst_84 {dimension_numbers = #tpu.dot_dimension_numbers<[1], [0], [0], [1], [0, 0, 1, 1], [], []>} : vector<8x256xbf16>, vector<256x128xbf16>, vector<8x128xf32> -> vector<8x128xf32>
    %c0_85 = arith.constant 0 : index
    %c0_86 = arith.constant 0 : index
    %145 = vector.load %arg27[%c0_85, %c0_86] : memref<1x128xf32, #tpu.memory_space<vmem>>, vector<1x128xf32>
    %146 = vector.broadcast %145 : vector<1x128xf32> to vector<8x128xf32>
    %147 = arith.addf %144, %146 : vector<8x128xf32>
    %cst_87 = arith.constant -1.000000e+30 : f32
    %148 = vector.broadcast %cst_87 : f32 to vector<8x128xf32>
    %149 = arith.select %2, %147, %148 : vector<8x128xi1>, vector<8x128xf32>
    %cst_88 = arith.constant dense<0xFF800000> : vector<8xf32>
    %150 = vector.multi_reduction <maximumf>, %149, %cst_88 [1] : vector<8x128xf32> to vector<8xf32>
    %151 = vector.shape_cast %150 : vector<8xf32> to vector<8x1xf32>
    %152 = vector.broadcast %151 : vector<8x1xf32> to vector<8x128xf32>
    %153 = arith.subf %149, %152 : vector<8x128xf32>
    %154 = math.exp %153 : vector<8x128xf32>
    %cst_89 = arith.constant 0.000000e+00 : f32
    %155 = vector.broadcast %cst_89 : f32 to vector<8x128xf32>
    %156 = arith.select %2, %154, %155 : vector<8x128xi1>, vector<8x128xf32>
    %cst_90 = arith.constant dense<0.000000e+00> : vector<8xf32>
    %157 = vector.multi_reduction <add>, %156, %cst_90 [1] : vector<8x128xf32> to vector<8xf32>
    %158 = vector.shape_cast %157 : vector<8xf32> to vector<8x1xf32>
    %159 = tpu.reciprocal %158 {approx = true} : vector<8x1xf32> -> vector<8x1xf32>
    %160 = vector.broadcast %159 : vector<8x1xf32> to vector<8x128xf32>
    %161 = arith.mulf %156, %160 : vector<8x128xf32>
    %162 = arith.addf %108, %161 : vector<8x128xf32>
    %163 = arith.addf %162, %55 : vector<8x128xf32>
    %164 = arith.mulf %163, %163 : vector<8x128xf32>
    %cst_91 = arith.constant dense<0.000000e+00> : vector<8xf32>
    %165 = vector.multi_reduction <add>, %164, %cst_91 [1] : vector<8x128xf32> to vector<8xf32>
    %166 = vector.shape_cast %165 : vector<8xf32> to vector<8x1xf32>
    %cst_92 = arith.constant 1.000000e-24 : f32
    %167 = vector.broadcast %cst_92 : f32 to vector<8x1xf32>
    %168 = arith.maximumf %166, %167 : vector<8x1xf32>
    %169 = math.rsqrt %168 : vector<8x1xf32>
    %170 = vector.broadcast %169 : vector<8x1xf32> to vector<8x128xf32>
    %171 = arith.mulf %163, %170 : vector<8x128xf32>
    %cst_93 = arith.constant -1.000000e+30 : f32
    %172 = vector.broadcast %cst_93 : f32 to vector<8x128xf32>
    %173 = arith.select %2, %171, %172 : vector<8x128xi1>, vector<8x128xf32>
    %cst_94 = arith.constant dense<0xFF800000> : vector<8xf32>
    %174 = vector.multi_reduction <maximumf>, %173, %cst_94 [1] : vector<8x128xf32> to vector<8xf32>
    %175 = vector.shape_cast %174 : vector<8xf32> to vector<8x1xf32>
    %176 = vector.broadcast %175 : vector<8x1xf32> to vector<8x128xf32>
    %177 = arith.subf %173, %176 : vector<8x128xf32>
    %178 = math.exp %177 : vector<8x128xf32>
    %cst_95 = arith.constant 0.000000e+00 : f32
    %179 = vector.broadcast %cst_95 : f32 to vector<8x128xf32>
    %180 = arith.select %2, %178, %179 : vector<8x128xi1>, vector<8x128xf32>
    %cst_96 = arith.constant dense<0.000000e+00> : vector<8xf32>
    %181 = vector.multi_reduction <add>, %180, %cst_96 [1] : vector<8x128xf32> to vector<8xf32>
    %182 = vector.shape_cast %181 : vector<8xf32> to vector<8x1xf32>
    %183 = tpu.reciprocal %182 {approx = true} : vector<8x1xf32> -> vector<8x1xf32>
    %184 = vector.broadcast %183 : vector<8x1xf32> to vector<8x128xf32>
    %185 = arith.mulf %180, %184 : vector<8x128xf32>
    %c0_97 = arith.constant 0 : index
    %c0_98 = arith.constant 0 : index
    %186 = vector.load %arg28[%c0_97, %c0_98] : memref<8x128xf32, #tpu.memory_space<vmem>>, vector<8x128xf32>
    tpu.vector_store %arg28[%c0_97, %c0_98], %185 {strides = array<i32>} : memref<8x128xf32, #tpu.memory_space<vmem>>, vector<8x128xf32>,
    return
  }
  func.func @transform_0(%arg0: i32) -> (i32, i32) {
    %c0_i32 = arith.constant 0 : i32
    %c0_i32_0 = arith.constant 0 : i32
    return %arg0, %c0_i32 : i32, i32
  }
  func.func @transform_1(%arg0: i32) -> (i32, i32) {
    %c0_i32 = arith.constant 0 : i32
    %c0_i32_0 = arith.constant 0 : i32
    return %arg0, %c0_i32 : i32, i32
  }
  func.func @transform_2(%arg0: i32) -> (i32, i32) {
    %c0_i32 = arith.constant 0 : i32
    %c0_i32_0 = arith.constant 0 : i32
    return %arg0, %c0_i32 : i32, i32
  }
  func.func @transform_3(%arg0: i32) -> (i32, i32) {
    %c0_i32 = arith.constant 0 : i32
    %c0_i32_0 = arith.constant 0 : i32
    %c0_i32_1 = arith.constant 0 : i32
    return %c0_i32, %c0_i32_0 : i32, i32
  }
  func.func @transform_4(%arg0: i32) -> (i32, i32) {
    %c0_i32 = arith.constant 0 : i32
    %c0_i32_0 = arith.constant 0 : i32
    %c0_i32_1 = arith.constant 0 : i32
    return %c0_i32, %c0_i32_0 : i32, i32
  }
  func.func @transform_5(%arg0: i32) -> (i32, i32) {
    %c0_i32 = arith.constant 0 : i32
    %c0_i32_0 = arith.constant 0 : i32
    %c0_i32_1 = arith.constant 0 : i32
    return %c0_i32, %c0_i32_0 : i32, i32
  }
  func.func @transform_6(%arg0: i32) -> (i32, i32) {
    %c0_i32 = arith.constant 0 : i32
    %c0_i32_0 = arith.constant 0 : i32
    %c0_i32_1 = arith.constant 0 : i32
    return %c0_i32, %c0_i32_0 : i32, i32
  }
  func.func @transform_7(%arg0: i32) -> (i32, i32) {
    %c0_i32 = arith.constant 0 : i32
    %c0_i32_0 = arith.constant 0 : i32
    %c0_i32_1 = arith.constant 0 : i32
    return %c0_i32, %c0_i32_0 : i32, i32
  }
  func.func @transform_8(%arg0: i32) -> (i32, i32) {
    %c0_i32 = arith.constant 0 : i32
    %c0_i32_0 = arith.constant 0 : i32
    %c0_i32_1 = arith.constant 0 : i32
    return %c0_i32, %c0_i32_0 : i32, i32
  }
  func.func @transform_9(%arg0: i32) -> (i32, i32) {
    %c0_i32 = arith.constant 0 : i32
    %c0_i32_0 = arith.constant 0 : i32
    %c0_i32_1 = arith.constant 0 : i32
    return %c0_i32, %c0_i32_0 : i32, i32
  }
  func.func @transform_10(%arg0: i32) -> (i32, i32) {
    %c0_i32 = arith.constant 0 : i32
    %c0_i32_0 = arith.constant 0 : i32
    %c0_i32_1 = arith.constant 0 : i32
    return %c0_i32, %c0_i32_0 : i32, i32
  }
  func.func @transform_11(%arg0: i32) -> (i32, i32) {
    %c0_i32 = arith.constant 0 : i32
    %c0_i32_0 = arith.constant 0 : i32
    %c0_i32_1 = arith.constant 0 : i32
    return %c0_i32, %c0_i32_0 : i32, i32
  }
  func.func @transform_12(%arg0: i32) -> (i32, i32) {
    %c0_i32 = arith.constant 0 : i32
    %c0_i32_0 = arith.constant 0 : i32
    %c0_i32_1 = arith.constant 0 : i32
    return %c0_i32, %c0_i32_0 : i32, i32
  }
  func.func @transform_13(%arg0: i32) -> (i32, i32) {
    %c0_i32 = arith.constant 0 : i32
    %c0_i32_0 = arith.constant 0 : i32
    %c0_i32_1 = arith.constant 0 : i32
    return %c0_i32, %c0_i32_0 : i32, i32
  }
  func.func @transform_14(%arg0: i32) -> (i32, i32) {
    %c0_i32 = arith.constant 0 : i32
    %c0_i32_0 = arith.constant 0 : i32
    %c0_i32_1 = arith.constant 0 : i32
    return %c0_i32, %c0_i32_0 : i32, i32
  }
  func.func @transform_15(%arg0: i32) -> (i32, i32) {
    %c0_i32 = arith.constant 0 : i32
    %c0_i32_0 = arith.constant 0 : i32
    %c0_i32_1 = arith.constant 0 : i32
    return %c0_i32, %c0_i32_0 : i32, i32
  }
  func.func @transform_16(%arg0: i32) -> (i32, i32) {
    %c0_i32 = arith.constant 0 : i32
    %c0_i32_0 = arith.constant 0 : i32
    %c0_i32_1 = arith.constant 0 : i32
    return %c0_i32, %c0_i32_0 : i32, i32
  }
  func.func @transform_17(%arg0: i32) -> (i32, i32) {
    %c0_i32 = arith.constant 0 : i32
    %c0_i32_0 = arith.constant 0 : i32
    %c0_i32_1 = arith.constant 0 : i32
    return %c0_i32, %c0_i32_0 : i32, i32
  }
  func.func @transform_18(%arg0: i32) -> (i32, i32) {
    %c0_i32 = arith.constant 0 : i32
    %c0_i32_0 = arith.constant 0 : i32
    %c0_i32_1 = arith.constant 0 : i32
    return %c0_i32, %c0_i32_0 : i32, i32
  }
  func.func @transform_19(%arg0: i32) -> (i32, i32) {
    %c0_i32 = arith.constant 0 : i32
    %c0_i32_0 = arith.constant 0 : i32
    %c0_i32_1 = arith.constant 0 : i32
    return %c0_i32, %c0_i32_0 : i32, i32
  }
  func.func @transform_20(%arg0: i32) -> (i32, i32) {
    %c0_i32 = arith.constant 0 : i32
    %c0_i32_0 = arith.constant 0 : i32
    %c0_i32_1 = arith.constant 0 : i32
    return %c0_i32, %c0_i32_0 : i32, i32
  }
  func.func @transform_21(%arg0: i32) -> (i32, i32) {
    %c0_i32 = arith.constant 0 : i32
    %c0_i32_0 = arith.constant 0 : i32
    %c0_i32_1 = arith.constant 0 : i32
    return %c0_i32, %c0_i32_0 : i32, i32
  }
  func.func @transform_22(%arg0: i32) -> (i32, i32) {
    %c0_i32 = arith.constant 0 : i32
    %c0_i32_0 = arith.constant 0 : i32
    %c0_i32_1 = arith.constant 0 : i32
    return %c0_i32, %c0_i32_0 : i32, i32
  }
  func.func @transform_23(%arg0: i32) -> (i32, i32) {
    %c0_i32 = arith.constant 0 : i32
    %c0_i32_0 = arith.constant 0 : i32
    %c0_i32_1 = arith.constant 0 : i32
    return %c0_i32, %c0_i32_0 : i32, i32
  }
  func.func @transform_24(%arg0: i32) -> (i32, i32) {
    %c0_i32 = arith.constant 0 : i32
    %c0_i32_0 = arith.constant 0 : i32
    %c0_i32_1 = arith.constant 0 : i32
    return %c0_i32, %c0_i32_0 : i32, i32
  }
  func.func @transform_25(%arg0: i32) -> (i32, i32) {
    %c0_i32 = arith.constant 0 : i32
    %c0_i32_0 = arith.constant 0 : i32
    %c0_i32_1 = arith.constant 0 : i32
    return %c0_i32, %c0_i32_0 : i32, i32
  }
  func.func @transform_26(%arg0: i32) -> (i32, i32) {
    %c0_i32 = arith.constant 0 : i32
    %c0_i32_0 = arith.constant 0 : i32
    %c0_i32_1 = arith.constant 0 : i32
    return %c0_i32, %c0_i32_0 : i32, i32
  }
  func.func @transform_27(%arg0: i32) -> (i32, i32) {
    %c0_i32 = arith.constant 0 : i32
    %c0_i32_0 = arith.constant 0 : i32
    return %arg0, %c0_i32 : i32, i32
  }
}

</mosaic_0001>

<llo_original>
// kernel: tpu_custom_call.1
$region0: #{tpu_custom_call.1}
  #allocation0 [shape = 'u32[]', space=smem, size = 0x4, offset = 0x4, fixed_abs, tag = 'smem constant byte address 0x4 - core index']
  #allocation1 [shape = 'u32[144,128]{1,0:T(1,128)}', space=vmem, size = 0x12000, scoped, tag = 'internal scratch']
  %s0 = inlined_call_operand.hbm [shape: f32[8,128], index: 0, kind: input, shape index: {}]
  %s1 = inlined_call_operand.hbm [shape: f32[8,128], index: 1, kind: input, shape index: {}]
  %s2 = inlined_call_operand.hbm [shape: f32[8,128], index: 2, kind: input, shape index: {}]
  %s3 = inlined_call_operand.hbm [shape: bf16[128,512], index: 3, kind: input, shape index: {}]
  %s4 = inlined_call_operand.vmem [shape: f32[1,512], index: 4, kind: input, shape index: {}]
  %s5 = inlined_call_operand.hbm [shape: bf16[512,512], index: 5, kind: input, shape index: {}]
  %s6 = inlined_call_operand.vmem [shape: f32[1,512], index: 6, kind: input, shape index: {}]
  %s7 = inlined_call_operand.hbm [shape: bf16[512,256], index: 7, kind: input, shape index: {}]
  %s8 = inlined_call_operand.hbm [shape: f32[1,256], index: 8, kind: input, shape index: {}]
  %s9 = inlined_call_operand.hbm [shape: bf16[256,128], index: 9, kind: input, shape index: {}]
  %s10 = inlined_call_operand.hbm [shape: f32[1,128], index: 10, kind: input, shape index: {}]
  %s11 = inlined_call_operand.hbm [shape: bf16[128,512], index: 11, kind: input, shape index: {}]
  %s12 = inlined_call_operand.vmem [shape: f32[1,512], index: 12, kind: input, shape index: {}]
  %s13 = inlined_call_operand.hbm [shape: bf16[512,512], index: 13, kind: input, shape index: {}]
  %s14 = inlined_call_operand.vmem [shape: f32[1,512], index: 14, kind: input, shape index: {}]
  %s15 = inlined_call_operand.hbm [shape: bf16[512,256], index: 15, kind: input, shape index: {}]
  %s16 = inlined_call_operand.vmem [shape: f32[1,256], index: 16, kind: input, shape index: {}]
  %s17 = inlined_call_operand.hbm [shape: bf16[256,128], index: 17, kind: input, shape index: {}]
  %s18 = inlined_call_operand.vmem [shape: f32[1,128], index: 18, kind: input, shape index: {}]
  %s19 = inlined_call_operand.hbm [shape: bf16[128,512], index: 19, kind: input, shape index: {}]
  %s20 = inlined_call_operand.vmem [shape: f32[1,512], index: 20, kind: input, shape index: {}]
  %s21 = inlined_call_operand.hbm [shape: bf16[512,512], index: 21, kind: input, shape index: {}]
  %s22 = inlined_call_operand.vmem [shape: f32[1,512], index: 22, kind: input, shape index: {}]
  %s23 = inlined_call_operand.hbm [shape: bf16[512,256], index: 23, kind: input, shape index: {}]
  %s24 = inlined_call_operand.vmem [shape: f32[1,256], index: 24, kind: input, shape index: {}]
  %s25 = inlined_call_operand.hbm [shape: bf16[256,128], index: 25, kind: input, shape index: {}]
  %s26 = inlined_call_operand.vmem [shape: f32[1,128], index: 26, kind: input, shape index: {}]
  %s27 = inlined_call_operand.hbm [shape: f32[8,128], index: 27, kind: output, shape index: {}]
  %s28 = sld [smem:[#allocation0]]
  $region186: #{tpu_custom_call.1} parent=0
    _
  %s30 = ssub.s32 1, %s28
  %s31 = scalar_select 0, %s30, %s28
  $region1: #{tpu_custom_call.1} parent=0
    #allocation2 [shape = 'u8[4096]{0}', space=vmem, size = 0x1000, scoped, tag = 'input window, operand 0, single buffered']
    #allocation3 [shape = 's32[1]{0}', space=sflag, size = 0x4, scoped, tag = 'scoped memory for tpu_custom_call.1']
    #allocation4 [shape = 's32[1]{0}', space=sflag, size = 0x4, scoped, tag = 'scoped memory for tpu_custom_call.1']
    #allocation5 [shape = 'u8[4096]{0}', space=vmem, size = 0x1000, scoped, tag = 'input window, operand 1, single buffered']
    #allocation6 [shape = 's32[1]{0}', space=sflag, size = 0x4, scoped, tag = 'scoped memory for tpu_custom_call.1']
    #allocation7 [shape = 'u8[4096]{0}', space=vmem, size = 0x1000, scoped, tag = 'input window, operand 2, single buffered']
    #allocation8 [shape = 'u8[131072]{0}', space=vmem, size = 0x20000, scoped, tag = 'input window, operand 3, single buffered']
    #allocation9 [shape = 's32[1]{0}', space=sflag, size = 0x4, scoped, tag = 'scoped memory for tpu_custom_call.1']
    #allocation10 [shape = 'u8[524288]{0}', space=vmem, size = 0x80000, scoped, tag = 'input window, operand 5, single buffered']
    #allocation11 [shape = 'u8[262144]{0}', space=vmem, size = 0x40000, scoped, tag = 'input window, operand 7, single buffered']
    #allocation12 [shape = 's32[1]{0}', space=sflag, size = 0x4, scoped, tag = 'scoped memory for tpu_custom_call.1']
    #allocation13 [shape = 'u8[1024]{0}', space=vmem, size = 0x400, scoped, tag = 'input window, operand 8, single buffered']
    #allocation14 [shape = 'u8[65536]{0}', space=vmem, size = 0x10000, scoped, tag = 'input window, operand 9, single buffered']
    #allocation15 [shape = 's32[1]{0}', space=sflag, size = 0x4, scoped, tag = 'scoped memory for tpu_custom_call.1']
    #allocation16 [shape = 'u8[512]{0}', space=vmem, size = 0x400, scoped, tag = 'input window, operand 10, single buffered']
    #allocation17 [shape = 'u8[131072]{0}', space=vmem, size = 0x20000, scoped, tag = 'input window, operand 11, single buffered']
    #allocation18 [shape = 's32[1]{0}', space=sflag, size = 0x4, scoped, tag = 'scoped memory for tpu_custom_call.1']
    #allocation19 [shape = 'u8[524288]{0}', space=vmem, size = 0x80000, scoped, tag = 'input window, operand 13, single buffered']
    #allocation20 [shape = 'u8[262144]{0}', space=vmem, size = 0x40000, scoped, tag = 'input window, operand 15, single buffered']
    #allocation21 [shape = 's32[1]{0}', space=sflag, size = 0x4, scoped, tag = 'scoped memory for tpu_custom_call.1']
    #allocation22 [shape = 'u8[65536]{0}', space=vmem, size = 0x10000, scoped, tag = 'input window, operand 17, single buffered']
    #allocation23 [shape = 'u8[131072]{0}', space=vmem, size = 0x20000, scoped, tag = 'input window, operand 19, single buffered']
    #allocation24 [shape = 's32[1]{0}', space=sflag, size = 0x4, scoped, tag = 'scoped memory for tpu_custom_call.1']
    #allocation25 [shape = 'u8[524288]{0}', space=vmem, size = 0x80000, scoped, tag = 'input window, operand 21, single buffered']
    #allocation26 [shape = 'u8[262144]{0}', space=vmem, size = 0x40000, scoped, tag = 'input window, operand 23, single buffered']
    #allocation27 [shape = 's32[1]{0}', space=sflag, size = 0x4, scoped, tag = 'scoped memory for tpu_custom_call.1']
    #allocation28 [shape = 'u8[65536]{0}', space=vmem, size = 0x10000, scoped, tag = 'input window, operand 25, single buffered']
    #allocation29 [shape = 'u8[4096]{0}', space=vmem, size = 0x1000, scoped, tag = 'output window, operand 0, single buffered']
    %32 = vsyncpa [#allocation3], 0
    %33 = vsyncpa [#allocation6], 0
    %34 = vsyncpa [#allocation9], 0
    %35 = vsyncpa [#allocation12], 0
    %36 = vsyncpa [#allocation15], 0
    %37 = vsyncpa [#allocation18], 0
    %38 = vsyncpa [#allocation21], 0
    %39 = vsyncpa [#allocation24], 0
    %40 = vsyncpa [#allocation27], 0
    %41 = vsyncpa [#allocation4], 0
    // Predicated region
    $region2: #{tpu_custom_call.1} parent=1 // pred_check
      _
    $region3: #{tpu_custom_call.1} parent=1 // pred_check_branch
      %43 = sbr.rel (0) target = $region5
    $region4: #{tpu_custom_call.1} parent=1 // pred_region
      %s45 = ssub.s32 128, 128
      %46 = vsyncadd [#allocation3], %s45
      %s48 = sshll.u32 [#allocation2], 4
      %s49 = int_to_ptr.vmem [resolvable:$true] %s48
      %51 = dma.hbm_to_vmem [thread:$0]  %s0, 128, %s49, [#allocation3]
    $region5: #{tpu_custom_call.1} parent=1 // pred_fallthru
      _
    // Predicated region
    $region6: #{tpu_custom_call.1} parent=1 // pred_check
      _
    $region7: #{tpu_custom_call.1} parent=1 // pred_check_branch
      %53 = sbr.rel (0) target = $region9
    $region8: #{tpu_custom_call.1} parent=1 // pred_region
      %s55 = ssub.s32 128, 128
      %56 = vsyncadd [#allocation6], %s55
      %s58 = sshll.u32 [#allocation5], 4
      %s59 = int_to_ptr.vmem [resolvable:$true] %s58
      %61 = dma.hbm_to_vmem [thread:$0]  %s1, 128, %s59, [#allocation6]
    $region9: #{tpu_custom_call.1} parent=1 // pred_fallthru
      _
    // Predicated region
    $region10: #{tpu_custom_call.1} parent=1 // pred_check
      _
    $region11: #{tpu_custom_call.1} parent=1 // pred_check_branch
      %63 = sbr.rel (0) target = $region13
    $region12: #{tpu_custom_call.1} parent=1 // pred_region
      %s65 = ssub.s32 128, 128
      %66 = vsyncadd [#allocation6], %s65
      %s68 = sshll.u32 [#allocation7], 4
      %s69 = int_to_ptr.vmem [resolvable:$true] %s68
      %71 = dma.hbm_to_vmem [thread:$0]  %s2, 128, %s69, [#allocation6]
    $region13: #{tpu_custom_call.1} parent=1 // pred_fallthru
      _
    // Predicated region
    $region14: #{tpu_custom_call.1} parent=1 // pred_check
      _
    $region15: #{tpu_custom_call.1} parent=1 // pred_check_branch
      %73 = sbr.rel (0) target = $region17
    $region16: #{tpu_custom_call.1} parent=1 // pred_region
      %s75 = ssub.s32 4096, 4096
      %76 = vsyncadd [#allocation9], %s75
      %s77 = sshll.u32 [#allocation8], 4
      %s78 = int_to_ptr.vmem [resolvable:$true] %s77
      %83 = dma.hbm_to_vmem [thread:$0]  %s3, 4096, %s78, [#allocation9], 256, 256, 16
    $region17: #{tpu_custom_call.1} parent=1 // pred_fallthru
      _
    // Predicated region
    $region18: #{tpu_custom_call.1} parent=1 // pred_check
      _
    $region19: #{tpu_custom_call.1} parent=1 // pred_check_branch
      %85 = sbr.rel (0) target = $region21
    $region20: #{tpu_custom_call.1} parent=1 // pred_region
      _
    $region21: #{tpu_custom_call.1} parent=1 // pred_fallthru
      _
    // Predicated region
    $region22: #{tpu_custom_call.1} parent=1 // pred_check
      _
    $region23: #{tpu_custom_call.1} parent=1 // pred_check_branch
      %87 = sbr.rel (0) target = $region25
    $region24: #{tpu_custom_call.1} parent=1 // pred_region
      %s89 = ssub.s32 16384, 16384
      %90 = vsyncadd [#allocation9], %s89
      %s91 = sshll.u32 [#allocation10], 4
      %s92 = int_to_ptr.vmem [resolvable:$true] %s91
      %97 = dma.hbm_to_vmem [thread:$0]  %s5, 16384, %s92, [#allocation9], 256, 256, 16
    $region25: #{tpu_custom_call.1} parent=1 // pred_fallthru
      _
    // Predicated region
    $region26: #{tpu_custom_call.1} parent=1 // pred_check
      _
    $region27: #{tpu_custom_call.1} parent=1 // pred_check_branch
      %99 = sbr.rel (0) target = $region29
    $region28: #{tpu_custom_call.1} parent=1 // pred_region
      _
    $region29: #{tpu_custom_call.1} parent=1 // pred_fallthru
      _
    // Predicated region
    $region30: #{tpu_custom_call.1} parent=1 // pred_check
      _
    $region31: #{tpu_custom_call.1} parent=1 // pred_check_branch
      %101 = sbr.rel (0) target = $region33
    $region32: #{tpu_custom_call.1} parent=1 // pred_region
      %s103 = ssub.s32 8192, 8192
      %104 = vsyncadd [#allocation12], %s103
      %s105 = sshll.u32 [#allocation11], 4
      %s106 = int_to_ptr.vmem [resolvable:$true] %s105
      %111 = dma.hbm_to_vmem [thread:$0]  %s7, 8192, %s106, [#allocation12], 128, 128, 8
    $region33: #{tpu_custom_call.1} parent=1 // pred_fallthru
      _
    // Predicated region
    $region34: #{tpu_custom_call.1} parent=1 // pred_check
      _
    $region35: #{tpu_custom_call.1} parent=1 // pred_check_branch
      %113 = sbr.rel (0) target = $region37
    $region36: #{tpu_custom_call.1} parent=1 // pred_region
      %s115 = ssub.s32 32, 32
      %116 = vsyncadd [#allocation12], %s115
      %s118 = sshll.u32 [#allocation13], 4
      %s119 = int_to_ptr.vmem [resolvable:$true] %s118
      %121 = dma.hbm_to_vmem [thread:$0]  %s8, 32, %s119, [#allocation12]
    $region37: #{tpu_custom_call.1} parent=1 // pred_fallthru
      _
    // Predicated region
    $region38: #{tpu_custom_call.1} parent=1 // pred_check
      _
    $region39: #{tpu_custom_call.1} parent=1 // pred_check_branch
      %123 = sbr.rel (0) target = $region41
    $region40: #{tpu_custom_call.1} parent=1 // pred_region
      %s125 = ssub.s32 2048, 2048
      %126 = vsyncadd [#allocation15], %s125
      %s127 = sshll.u32 [#allocation14], 4
      %s128 = int_to_ptr.vmem [resolvable:$true] %s127
      %133 = dma.hbm_to_vmem [thread:$0]  %s9, 2048, %s128, [#allocation15], 64, 64, 4
    $region41: #{tpu_custom_call.1} parent=1 // pred_fallthru
      _
    // Predicated region
    $region42: #{tpu_custom_call.1} parent=1 // pred_check
      _
    $region43: #{tpu_custom_call.1} parent=1 // pred_check_branch
      %135 = sbr.rel (0) target = $region45
    $region44: #{tpu_custom_call.1} parent=1 // pred_region
      %s137 = ssub.s32 16, 16
      %138 = vsyncadd [#allocation15], %s137
      %s140 = sshll.u32 [#allocation16], 4
      %s141 = int_to_ptr.vmem [resolvable:$true] %s140
      %143 = dma.hbm_to_vmem [thread:$0]  %s10, 16, %s141, [#allocation15]
    $region45: #{tpu_custom_call.1} parent=1 // pred_fallthru
      _
    // Predicated region
    $region46: #{tpu_custom_call.1} parent=1 // pred_check
      _
    $region47: #{tpu_custom_call.1} parent=1 // pred_check_branch
      %145 = sbr.rel (0) target = $region49
    $region48: #{tpu_custom_call.1} parent=1 // pred_region
      %s147 = ssub.s32 4096, 4096
      %148 = vsyncadd [#allocation18], %s147
      %s149 = sshll.u32 [#allocation17], 4
      %s150 = int_to_ptr.vmem [resolvable:$true] %s149
      %155 = dma.hbm_to_vmem [thread:$0]  %s11, 4096, %s150, [#allocation18], 256, 256, 16
    $region49: #{tpu_custom_call.1} parent=1 // pred_fallthru
      _
    // Predicated region
    $region50: #{tpu_custom_call.1} parent=1 // pred_check
      _
    $region51: #{tpu_custom_call.1} parent=1 // pred_check_branch
      %157 = sbr.rel (0) target = $region53
    $region52: #{tpu_custom_call.1} parent=1 // pred_region
      _
    $region53: #{tpu_custom_call.1} parent=1 // pred_fallthru
      _
    // Predicated region
    $region54: #{tpu_custom_call.1} parent=1 // pred_check
      _
    $region55: #{tpu_custom_call.1} parent=1 // pred_check_branch
      %159 = sbr.rel (0) target = $region57
    $region56: #{tpu_custom_call.1} parent=1 // pred_region
      %s161 = ssub.s32 16384, 16384
      %162 = vsyncadd [#allocation18], %s161
      %s163 = sshll.u32 [#allocation19], 4
      %s164 = int_to_ptr.vmem [resolvable:$true] %s163
      %169 = dma.hbm_to_vmem [thread:$0]  %s13, 16384, %s164, [#allocation18], 256, 256, 16
    $region57: #{tpu_custom_call.1} parent=1 // pred_fallthru
      _
    // Predicated region
    $region58: #{tpu_custom_call.1} parent=1 // pred_check
      _
    $region59: #{tpu_custom_call.1} parent=1 // pred_check_branch
      %171 = sbr.rel (0) target = $region61
    $region60: #{tpu_custom_call.1} parent=1 // pred_region
      _
    $region61: #{tpu_custom_call.1} parent=1 // pred_fallthru
      _
    // Predicated region
    $region62: #{tpu_custom_call.1} parent=1 // pred_check
      _
    $region63: #{tpu_custom_call.1} parent=1 // pred_check_branch
      %173 = sbr.rel (0) target = $region65
    $region64: #{tpu_custom_call.1} parent=1 // pred_region
      %s175 = ssub.s32 8192, 8192
      %176 = vsyncadd [#allocation21], %s175
      %s177 = sshll.u32 [#allocation20], 4
      %s178 = int_to_ptr.vmem [resolvable:$true] %s177
      %183 = dma.hbm_to_vmem [thread:$0]  %s15, 8192, %s178, [#allocation21], 128, 128, 8
    $region65: #{tpu_custom_call.1} parent=1 // pred_fallthru
      _
    // Predicated region
    $region66: #{tpu_custom_call.1} parent=1 // pred_check
      _
    $region67: #{tpu_custom_call.1} parent=1 // pred_check_branch
      %185 = sbr.rel (0) target = $region69
    $region68: #{tpu_custom_call.1} parent=1 // pred_region
      _
    $region69: #{tpu_custom_call.1} parent=1 // pred_fallthru
      _
    // Predicated region
    $region70: #{tpu_custom_call.1} parent=1 // pred_check
      _
    $region71: #{tpu_custom_call.1} parent=1 // pred_check_branch
      %187 = sbr.rel (0) target = $region73
    $region72: #{tpu_custom_call.1} parent=1 // pred_region
      %s189 = ssub.s32 2048, 2048
      %190 = vsyncadd [#allocation21], %s189
      %s191 = sshll.u32 [#allocation22], 4
      %s192 = int_to_ptr.vmem [resolvable:$true] %s191
      %197 = dma.hbm_to_vmem [thread:$0]  %s17, 2048, %s192, [#allocation21], 64, 64, 4
    $region73: #{tpu_custom_call.1} parent=1 // pred_fallthru
      _
    // Predicated region
    $region74: #{tpu_custom_call.1} parent=1 // pred_check
      _
    $region75: #{tpu_custom_call.1} parent=1 // pred_check_branch
      %199 = sbr.rel (0) target = $region77
    $region76: #{tpu_custom_call.1} parent=1 // pred_region
      _
    $region77: #{tpu_custom_call.1} parent=1 // pred_fallthru
      _
    // Predicated region
    $region78: #{tpu_custom_call.1} parent=1 // pred_check
      _
    $region79: #{tpu_custom_call.1} parent=1 // pred_check_branch
      %201 = sbr.rel (0) target = $region81
    $region80: #{tpu_custom_call.1} parent=1 // pred_region
      %s203 = ssub.s32 4096, 4096
      %204 = vsyncadd [#allocation24], %s203
      %s205 = sshll.u32 [#allocation23], 4
      %s206 = int_to_ptr.vmem [resolvable:$true] %s205
      %211 = dma.hbm_to_vmem [thread:$0]  %s19, 4096, %s206, [#allocation24], 256, 256, 16
    $region81: #{tpu_custom_call.1} parent=1 // pred_fallthru
      _
    // Predicated region
    $region82: #{tpu_custom_call.1} parent=1 // pred_check
      _
    $region83: #{tpu_custom_call.1} parent=1 // pred_check_branch
      %213 = sbr.rel (0) target = $region85
    $region84: #{tpu_custom_call.1} parent=1 // pred_region
      _
    $region85: #{tpu_custom_call.1} parent=1 // pred_fallthru
      _
    // Predicated region
    $region86: #{tpu_custom_call.1} parent=1 // pred_check
      _
    $region87: #{tpu_custom_call.1} parent=1 // pred_check_branch
      %215 = sbr.rel (0) target = $region89
    $region88: #{tpu_custom_call.1} parent=1 // pred_region
      %s217 = ssub.s32 16384, 16384
      %218 = vsyncadd [#allocation24], %s217
      %s219 = sshll.u32 [#allocation25], 4
      %s220 = int_to_ptr.vmem [resolvable:$true] %s219
      %225 = dma.hbm_to_vmem [thread:$0]  %s21, 16384, %s220, [#allocation24], 256, 256, 16
    $region89: #{tpu_custom_call.1} parent=1 // pred_fallthru
      _
    // Predicated region
    $region90: #{tpu_custom_call.1} parent=1 // pred_check
      _
    $region91: #{tpu_custom_call.1} parent=1 // pred_check_branch
      %227 = sbr.rel (0) target = $region93
    $region92: #{tpu_custom_call.1} parent=1 // pred_region
      _
    $region93: #{tpu_custom_call.1} parent=1 // pred_fallthru
      _
    // Predicated region
    $region94: #{tpu_custom_call.1} parent=1 // pred_check
      _
    $region95: #{tpu_custom_call.1} parent=1 // pred_check_branch
      %229 = sbr.rel (0) target = $region97
    $region96: #{tpu_custom_call.1} parent=1 // pred_region
      %s231 = ssub.s32 8192, 8192
      %232 = vsyncadd [#allocation27], %s231
      %s233 = sshll.u32 [#allocation26], 4
      %s234 = int_to_ptr.vmem [resolvable:$true] %s233
      %239 = dma.hbm_to_vmem [thread:$0]  %s23, 8192, %s234, [#allocation27], 128, 128, 8
    $region97: #{tpu_custom_call.1} parent=1 // pred_fallthru
      _
    // Predicated region
    $region98: #{tpu_custom_call.1} parent=1 // pred_check
      _
    $region99: #{tpu_custom_call.1} parent=1 // pred_check_branch
      %241 = sbr.rel (0) target = $region101
    $region100: #{tpu_custom_call.1} parent=1 // pred_region
      _
    $region101: #{tpu_custom_call.1} parent=1 // pred_fallthru
      _
    // Predicated region
    $region102: #{tpu_custom_call.1} parent=1 // pred_check
      _
    $region103: #{tpu_custom_call.1} parent=1 // pred_check_branch
      %243 = sbr.rel (0) target = $region105
    $region104: #{tpu_custom_call.1} parent=1 // pred_region
      %s245 = ssub.s32 2048, 2048
      %246 = vsyncadd [#allocation27], %s245
      %s247 = sshll.u32 [#allocation28], 4
      %s248 = int_to_ptr.vmem [resolvable:$true] %s247
      %253 = dma.hbm_to_vmem [thread:$0]  %s25, 2048, %s248, [#allocation27], 64, 64, 4
    $region105: #{tpu_custom_call.1} parent=1 // pred_fallthru
      _
    // Predicated region
    $region106: #{tpu_custom_call.1} parent=1 // pred_check
      _
    $region107: #{tpu_custom_call.1} parent=1 // pred_check_branch
      %255 = sbr.rel (0) target = $region109
    $region108: #{tpu_custom_call.1} parent=1 // pred_region
      _
    $region109: #{tpu_custom_call.1} parent=1 // pred_fallthru
      _
    // Predicated region
    $region110: #{tpu_custom_call.1} parent=1 // pred_check
      _
    $region111: #{tpu_custom_call.1} parent=1 // pred_check_branch
      %257 = sbr.rel (0) target = $region113
    $region112: #{tpu_custom_call.1} parent=1 // pred_region
      %258 = dma.done [#allocation3], 128
    $region113: #{tpu_custom_call.1} parent=1 // pred_fallthru
      _
    // Predicated region
    $region114: #{tpu_custom_call.1} parent=1 // pred_check
      _
    $region115: #{tpu_custom_call.1} parent=1 // pred_check_branch
      %260 = sbr.rel (0) target = $region117
    $region116: #{tpu_custom_call.1} parent=1 // pred_region
      %261 = dma.done [#allocation6], 128
    $region117: #{tpu_custom_call.1} parent=1 // pred_fallthru
      _
    // Predicated region
    $region118: #{tpu_custom_call.1} parent=1 // pred_check
      _
    $region119: #{tpu_custom_call.1} parent=1 // pred_check_branch
      %263 = sbr.rel (0) target = $region121
    $region120: #{tpu_custom_call.1} parent=1 // pred_region
      %264 = dma.done [#allocation6], 128
    $region121: #{tpu_custom_call.1} parent=1 // pred_fallthru
      _
    // Predicated region
    $region122: #{tpu_custom_call.1} parent=1 // pred_check
      _
    $region123: #{tpu_custom_call.1} parent=1 // pred_check_branch
      %266 = sbr.rel (0) target = $region125
    $region124: #{tpu_custom_call.1} parent=1 // pred_region
      %267 = dma.done [#allocation9], 4096
    $region125: #{tpu_custom_call.1} parent=1 // pred_fallthru
      _
    // Predicated region
    $region126: #{tpu_custom_call.1} parent=1 // pred_check
      _
    $region127: #{tpu_custom_call.1} parent=1 // pred_check_branch
      %269 = sbr.rel (0) target = $region129
    $region128: #{tpu_custom_call.1} parent=1 // pred_region
      %270 = dma.done [#allocation9], 16384
    $region129: #{tpu_custom_call.1} parent=1 // pred_fallthru
      _
    // Predicated region
    $region130: #{tpu_custom_call.1} parent=1 // pred_check
      _
    $region131: #{tpu_custom_call.1} parent=1 // pred_check_branch
      %272 = sbr.rel (0) target = $region133
    $region132: #{tpu_custom_call.1} parent=1 // pred_region
      %273 = dma.done [#allocation12], 8192
    $region133: #{tpu_custom_call.1} parent=1 // pred_fallthru
      _
    // Predicated region
    $region134: #{tpu_custom_call.1} parent=1 // pred_check
      _
    $region135: #{tpu_custom_call.1} parent=1 // pred_check_branch
      %275 = sbr.rel (0) target = $region137
    $region136: #{tpu_custom_call.1} parent=1 // pred_region
      %276 = dma.done [#allocation12], 32
    $region137: #{tpu_custom_call.1} parent=1 // pred_fallthru
      _
    // Predicated region
    $region138: #{tpu_custom_call.1} parent=1 // pred_check
      _
    $region139: #{tpu_custom_call.1} parent=1 // pred_check_branch
      %278 = sbr.rel (0) target = $region141
    $region140: #{tpu_custom_call.1} parent=1 // pred_region
      %279 = dma.done [#allocation15], 2048
    $region141: #{tpu_custom_call.1} parent=1 // pred_fallthru
      _
    // Predicated region
    $region142: #{tpu_custom_call.1} parent=1 // pred_check
      _
    $region143: #{tpu_custom_call.1} parent=1 // pred_check_branch
      %281 = sbr.rel (0) target = $region145
    $region144: #{tpu_custom_call.1} parent=1 // pred_region
      %282 = dma.done [#allocation15], 16
    $region145: #{tpu_custom_call.1} parent=1 // pred_fallthru
      _
    // Predicated region
    $region146: #{tpu_custom_call.1} parent=1 // pred_check
      _
    $region147: #{tpu_custom_call.1} parent=1 // pred_check_branch
      %284 = sbr.rel (0) target = $region149
    $region148: #{tpu_custom_call.1} parent=1 // pred_region
      %285 = dma.done [#allocation18], 4096
    $region149: #{tpu_custom_call.1} parent=1 // pred_fallthru
      _
    // Predicated region
    $region150: #{tpu_custom_call.1} parent=1 // pred_check
      _
    $region151: #{tpu_custom_call.1} parent=1 // pred_check_branch
      %287 = sbr.rel (0) target = $region153
    $region152: #{tpu_custom_call.1} parent=1 // pred_region
      %288 = dma.done [#allocation18], 16384
    $region153: #{tpu_custom_call.1} parent=1 // pred_fallthru
      _
    // Predicated region
    $region154: #{tpu_custom_call.1} parent=1 // pred_check
      _
    $region155: #{tpu_custom_call.1} parent=1 // pred_check_branch
      %290 = sbr.rel (0) target = $region157
    $region156: #{tpu_custom_call.1} parent=1 // pred_region
      %291 = dma.done [#allocation21], 8192
    $region157: #{tpu_custom_call.1} parent=1 // pred_fallthru
      _
    // Predicated region
    $region158: #{tpu_custom_call.1} parent=1 // pred_check
      _
    $region159: #{tpu_custom_call.1} parent=1 // pred_check_branch
      %293 = sbr.rel (0) target = $region161
    $region160: #{tpu_custom_call.1} parent=1 // pred_region
      %294 = dma.done [#allocation21], 2048
    $region161: #{tpu_custom_call.1} parent=1 // pred_fallthru
      _
    // Predicated region
    $region162: #{tpu_custom_call.1} parent=1 // pred_check
      _
    $region163: #{tpu_custom_call.1} parent=1 // pred_check_branch
      %296 = sbr.rel (0) target = $region165
    $region164: #{tpu_custom_call.1} parent=1 // pred_region
      %297 = dma.done [#allocation24], 4096
    $region165: #{tpu_custom_call.1} parent=1 // pred_fallthru
      _
    // Predicated region
    $region166: #{tpu_custom_call.1} parent=1 // pred_check
      _
    $region167: #{tpu_custom_call.1} parent=1 // pred_check_branch
      %299 = sbr.rel (0) target = $region169
    $region168: #{tpu_custom_call.1} parent=1 // pred_region
      %300 = dma.done [#allocation24], 16384
    $region169: #{tpu_custom_call.1} parent=1 // pred_fallthru
      _
    // Predicated region
    $region170: #{tpu_custom_call.1} parent=1 // pred_check
      _
    $region171: #{tpu_custom_call.1} parent=1 // pred_check_branch
      %302 = sbr.rel (0) target = $region173
    $region172: #{tpu_custom_call.1} parent=1 // pred_region
      %303 = dma.done [#allocation27], 8192
    $region173: #{tpu_custom_call.1} parent=1 // pred_fallthru
      _
    // Predicated region
    $region174: #{tpu_custom_call.1} parent=1 // pred_check
      _
    $region175: #{tpu_custom_call.1} parent=1 // pred_check_branch
      %305 = sbr.rel (0) target = $region177
    $region176: #{tpu_custom_call.1} parent=1 // pred_region
      %306 = dma.done [#allocation27], 2048
    $region177: #{tpu_custom_call.1} parent=1 // pred_fallthru
      _
    %v308 = vlaneseq
    %v309 = vand.u32 %v308, 127
    %vm310 = vcmp.lt.s32.totalorder %v309, 8
    %v311 = vld [vmem:[#allocation2] sm:$0xff]
    %v312 = vmul.f32 %v311, %v311
    %313 = vadd.xlane.f32.xlu0 %v312
    %v314 = vpop.xlane.xlu0 %313
    %v315 = vmax.f32 %v314, 1e-24
    %v316 = vrsqrt.pop %v315
    %v317 = vmul.f32 %v311, %v316
    %v318 = vpack.c.bf16 %v317, %v317
    %v319 = vld [vmem:[#allocation8] sm:$0xff]
    %v320 = vld [vmem:[#allocation8 + $0x8] sm:$0xff]
    %v321 = vld [vmem:[#allocation8 + $0x10] sm:$0xff]
    %v322 = vld [vmem:[#allocation8 + $0x18] sm:$0xff]
    %v323 = vld [vmem:[#allocation8 + $0x20] sm:$0xff]
    %v324 = vld [vmem:[#allocation8 + $0x28] sm:$0xff]
    %v325 = vld [vmem:[#allocation8 + $0x30] sm:$0xff]
    %v326 = vld [vmem:[#allocation8 + $0x38] sm:$0xff]
    %v327 = vld [vmem:[#allocation8 + $0x40] sm:$0xff]
    %v328 = vld [vmem:[#allocation8 + $0x48] sm:$0xff]
    %v329 = vld [vmem:[#allocation8 + $0x50] sm:$0xff]
    %v330 = vld [vmem:[#allocation8 + $0x58] sm:$0xff]
    %v331 = vld [vmem:[#allocation8 + $0x60] sm:$0xff]
    %v332 = vld [vmem:[#allocation8 + $0x68] sm:$0xff]
    %v333 = vld [vmem:[#allocation8 + $0x70] sm:$0xff]
    %v334 = vld [vmem:[#allocation8 + $0x78] sm:$0xff]
    %v335 = vld [vmem:[#allocation8 + $0x80] sm:$0xff]
    %v336 = vld [vmem:[#allocation8 + $0x88] sm:$0xff]
    %v337 = vld [vmem:[#allocation8 + $0x90] sm:$0xff]
    %v338 = vld [vmem:[#allocation8 + $0x98] sm:$0xff]
    %v339 = vld [vmem:[#allocation8 + $0xa0] sm:$0xff]
    %v340 = vld [vmem:[#allocation8 + $0xa8] sm:$0xff]
    %v341 = vld [vmem:[#allocation8 + $0xb0] sm:$0xff]
    %v342 = vld [vmem:[#allocation8 + $0xb8] sm:$0xff]
    %v343 = vld [vmem:[#allocation8 + $0xc0] sm:$0xff]
    %v344 = vld [vmem:[#allocation8 + $0xc8] sm:$0xff]
    %v345 = vld [vmem:[#allocation8 + $0xd0] sm:$0xff]
    %v346 = vld [vmem:[#allocation8 + $0xd8] sm:$0xff]
    %v347 = vld [vmem:[#allocation8 + $0xe0] sm:$0xff]
    %v348 = vld [vmem:[#allocation8 + $0xe8] sm:$0xff]
    %v349 = vld [vmem:[#allocation8 + $0xf0] sm:$0xff]
    %v350 = vld [vmem:[#allocation8 + $0xf8] sm:$0xff]
    %v351 = vld [vmem:[%s4] sm:$0xf]
    %v353 = vlaneseq
    %v354 = vshrl.u32 %v353, 7
    %v355 = vsub.s32 0, %v354
    %v356 = vrot.slane %v351, %v355
    %v357 = vlaneseq
    %v358 = vshrl.u32 %v357, 7
    %v359 = vsub.s32 1, %v358
    %v360 = vrot.slane %v351, %v359
    %v361 = vlaneseq
    %v362 = vshrl.u32 %v361, 7
    %v363 = vsub.s32 2, %v362
    %v364 = vrot.slane %v351, %v363
    %v365 = vlaneseq
    %v366 = vshrl.u32 %v365, 7
    %v367 = vsub.s32 3, %v366
    %v368 = vrot.slane %v351, %v367
    %v405 = vunpack.c.l.b16 %v319
    %v406 = vunpack.c.h.b16 %v319
    %v407 = vunpack.c.l.b16 %v320
    %v408 = vunpack.c.h.b16 %v320
    %v409 = vunpack.c.l.b16 %v321
    %v410 = vunpack.c.h.b16 %v321
    %v411 = vunpack.c.l.b16 %v322
    %v412 = vunpack.c.h.b16 %v322
    %v413 = vunpack.c.l.b16 %v323
    %v414 = vunpack.c.h.b16 %v323
    %v415 = vunpack.c.l.b16 %v324
    %v416 = vunpack.c.h.b16 %v324
    %v417 = vunpack.c.l.b16 %v325
    %v418 = vunpack.c.h.b16 %v325
    %v419 = vunpack.c.l.b16 %v326
    %v420 = vunpack.c.h.b16 %v326
    %v421 = vunpack.c.l.b16 %v327
    %v422 = vunpack.c.h.b16 %v327
    %v423 = vunpack.c.l.b16 %v328
    %v424 = vunpack.c.h.b16 %v328
    %v425 = vunpack.c.l.b16 %v329
    %v426 = vunpack.c.h.b16 %v329
    %v427 = vunpack.c.l.b16 %v330
    %v428 = vunpack.c.h.b16 %v330
    %v429 = vunpack.c.l.b16 %v331
    %v430 = vunpack.c.h.b16 %v331
    %v431 = vunpack.c.l.b16 %v332
    %v432 = vunpack.c.h.b16 %v332
    %v433 = vunpack.c.l.b16 %v333
    %v434 = vunpack.c.h.b16 %v333
    %v435 = vunpack.c.l.b16 %v334
    %v436 = vunpack.c.h.b16 %v334
    %v437 = vunpack.c.l.b16 %v335
    %v438 = vunpack.c.h.b16 %v335
    %v439 = vunpack.c.l.b16 %v336
    %v440 = vunpack.c.h.b16 %v336
    %v441 = vunpack.c.l.b16 %v337
    %v442 = vunpack.c.h.b16 %v337
    %v443 = vunpack.c.l.b16 %v338
    %v444 = vunpack.c.h.b16 %v338
    %v445 = vunpack.c.l.b16 %v339
    %v446 = vunpack.c.h.b16 %v339
    %v447 = vunpack.c.l.b16 %v340
    %v448 = vunpack.c.h.b16 %v340
    %v449 = vunpack.c.l.b16 %v341
    %v450 = vunpack.c.h.b16 %v341
    %v451 = vunpack.c.l.b16 %v342
    %v452 = vunpack.c.h.b16 %v342
    %v453 = vunpack.c.l.b16 %v343
    %v454 = vunpack.c.h.b16 %v343
    %v455 = vunpack.c.l.b16 %v344
    %v456 = vunpack.c.h.b16 %v344
    %v457 = vunpack.c.l.b16 %v345
    %v458 = vunpack.c.h.b16 %v345
    %v459 = vunpack.c.l.b16 %v346
    %v460 = vunpack.c.h.b16 %v346
    %v461 = vunpack.c.l.b16 %v347
    %v462 = vunpack.c.h.b16 %v347
    %v463 = vunpack.c.l.b16 %v348
    %v464 = vunpack.c.h.b16 %v348
    %v465 = vunpack.c.l.b16 %v349
    %v466 = vunpack.c.h.b16 %v349
    %v467 = vunpack.c.l.b16 %v350
    %v468 = vunpack.c.h.b16 %v350
    %v469 = vpack.c.b16 %v409, %v405
    %v470 = vpack.c.b16 %v410, %v406
    %v471 = vpack.c.b16 %v411, %v407
    %v472 = vpack.c.b16 %v412, %v408
    %v473 = vpack.c.b16 %v417, %v413
    %v474 = vpack.c.b16 %v418, %v414
    %v475 = vpack.c.b16 %v419, %v415
    %v476 = vpack.c.b16 %v420, %v416
    %v477 = vpack.c.b16 %v425, %v421
    %v478 = vpack.c.b16 %v426, %v422
    %v479 = vpack.c.b16 %v427, %v423
    %v480 = vpack.c.b16 %v428, %v424
    %v481 = vpack.c.b16 %v433, %v429
    %v482 = vpack.c.b16 %v434, %v430
    %v483 = vpack.c.b16 %v435, %v431
    %v484 = vpack.c.b16 %v436, %v432
    %v485 = vpack.c.b16 %v441, %v437
    %v486 = vpack.c.b16 %v442, %v438
    %v487 = vpack.c.b16 %v443, %v439
    %v488 = vpack.c.b16 %v444, %v440
    %v489 = vpack.c.b16 %v449, %v445
    %v490 = vpack.c.b16 %v450, %v446
    %v491 = vpack.c.b16 %v451, %v447
    %v492 = vpack.c.b16 %v452, %v448
    %v493 = vpack.c.b16 %v457, %v453
    %v494 = vpack.c.b16 %v458, %v454
    %v495 = vpack.c.b16 %v459, %v455
    %v496 = vpack.c.b16 %v460, %v456
    %v497 = vpack.c.b16 %v465, %v461
    %v498 = vpack.c.b16 %v466, %v462
    %v499 = vpack.c.b16 %v467, %v463
    %v500 = vpack.c.b16 %v468, %v464
    %533 = vmatprep.subr.bf16.mxu0 %v498
    %534 = vmatpush1.bf16.msra.mxu0 %v497
    %535 = vmatprep.subr.bf16.mxu0 %v494
    %536 = vmatpush1.bf16.msra.mxu0 %v493
    %537 = vmatprep.subr.bf16.mxu0 %v490
    %538 = vmatpush1.bf16.msra.mxu0 %v489
    %539 = vmatprep.subr.bf16.mxu0 %v486
    %540 = vmatpush1.bf16.msra.mxu0 %v485
    %541 = vmatprep.subr.bf16.mxu0 %v482
    %542 = vmatpush1.bf16.msra.mxu0 %v481
    %543 = vmatprep.subr.bf16.mxu0 %v478
    %544 = vmatpush1.bf16.msra.mxu0 %v477
    %545 = vmatprep.subr.bf16.mxu0 %v474
    %546 = vmatpush1.bf16.msra.mxu0 %v473
    %547 = vmatprep.subr.bf16.mxu0 %v470
    %548 = vmatpush1.bf16.msra.mxu0 %v469
    %549 = vmatprep.subr.bf16.mxu0 0
    %550 = vmatpush2.bf16.msra.mxu0 0
    %551 = vmatprep.subr.bf16.mxu0 0
    %552 = vmatpush2.bf16.msra.mxu0 0
    %553 = vmatprep.subr.bf16.mxu0 0
    %554 = vmatpush2.bf16.msra.mxu0 0
    %555 = vmatprep.subr.bf16.mxu0 0
    %556 = vmatpush2.bf16.msra.mxu0 0
    %557 = vmatprep.subr.bf16.mxu0 0
    %558 = vmatpush2.bf16.msra.mxu0 0
    %559 = vmatprep.subr.bf16.mxu0 0
    %560 = vmatpush2.bf16.msra.mxu0 0
    %561 = vmatprep.subr.bf16.mxu0 0
    %562 = vmatpush2.bf16.msra.mxu0 0
    %563 = vmatprep.subr.bf16.mxu0 0
    %564 = vmatpush2.bf16.msra.mxu0 0
    %565 = vmatprep.mubr.bf16.mxu0 0
    %566 = vmatmul.mubr.bf16.gmra.mxu0 %v318
    %v567 = vpop.f32.mrf.mxu0
    %v568 = vadd.f32 %v356, %v567
    %v569 = vpop.f32.mrf.mxu0
    %v570 = vadd.f32 %v360, %v569
    %v571 = vpop.f32.mrf.mxu0
    %v572 = vpop.f32.mrf.mxu0
    %573 = vdwg.mxu0
    %574 = vmatprep.subr.bf16.mxu0 %v500
    %575 = vmatpush1.bf16.msra.mxu0 %v499
    %576 = vmatprep.subr.bf16.mxu0 %v496
    %577 = vmatpush1.bf16.msra.mxu0 %v495
    %578 = vmatprep.subr.bf16.mxu0 %v492
    %579 = vmatpush1.bf16.msra.mxu0 %v491
    %580 = vmatprep.subr.bf16.mxu0 %v488
    %581 = vmatpush1.bf16.msra.mxu0 %v487
    %582 = vmatprep.subr.bf16.mxu0 %v484
    %583 = vmatpush1.bf16.msra.mxu0 %v483
    %584 = vmatprep.subr.bf16.mxu0 %v480
    %585 = vmatpush1.bf16.msra.mxu0 %v479
    %586 = vmatprep.subr.bf16.mxu0 %v476
    %587 = vmatpush1.bf16.msra.mxu0 %v475
    %588 = vmatprep.subr.bf16.mxu0 %v472
    %589 = vmatpush1.bf16.msra.mxu0 %v471
    %590 = vmatprep.subr.bf16.mxu0 0
    %591 = vmatpush2.bf16.msra.mxu0 0
    %592 = vmatprep.subr.bf16.mxu0 0
    %593 = vmatpush2.bf16.msra.mxu0 0
    %594 = vmatprep.subr.bf16.mxu0 0
    %595 = vmatpush2.bf16.msra.mxu0 0
    %596 = vmatprep.subr.bf16.mxu0 0
    %597 = vmatpush2.bf16.msra.mxu0 0
    %598 = vmatprep.subr.bf16.mxu0 0
    %599 = vmatpush2.bf16.msra.mxu0 0
    %600 = vmatprep.subr.bf16.mxu0 0
    %601 = vmatpush2.bf16.msra.mxu0 0
    %602 = vmatprep.subr.bf16.mxu0 0
    %603 = vmatpush2.bf16.msra.mxu0 0
    %604 = vmatprep.subr.bf16.mxu0 0
    %605 = vmatpush2.bf16.msra.mxu0 0
    %606 = vmatprep.mubr.bf16.mxu0 0
    %607 = vmatmul.mubr.bf16.gmra.mxu0 %v318
    %v608 = vpop.f32.mrf.mxu0
    %v609 = vadd.f32 %v364, %v608
    %v610 = vpop.f32.mrf.mxu0
    %v611 = vadd.f32 %v368, %v610
    %v612 = vpop.f32.mrf.mxu0
    %v613 = vpop.f32.mrf.mxu0
    %614 = vdwg.mxu0
    %v615 = vmax.f32 %v568, 0.0
    %v616 = vmax.f32 %v570, 0.0
    %v617 = vmax.f32 %v609, 0.0
    %v618 = vmax.f32 %v611, 0.0
    %v619 = vpack.c.bf16 %v615, %v615
    %v620 = vpack.c.bf16 %v616, %v616
    %v621 = vpack.c.bf16 %v617, %v617
    %v622 = vpack.c.bf16 %v618, %v618
    %v623 = vld [vmem:[#allocation10] sm:$0xff]
    %v624 = vld [vmem:[#allocation10 + $0x8] sm:$0xff]
    %v625 = vld [vmem:[#allocation10 + $0x10] sm:$0xff]
    %v626 = vld [vmem:[#allocation10 + $0x18] sm:$0xff]
    %v627 = vld [vmem:[#allocation10 + $0x20] sm:$0xff]
    %v628 = vld [vmem:[#allocation10 + $0x28] sm:$0xff]
    %v629 = vld [vmem:[#allocation10 + $0x30] sm:$0xff]
    %v630 = vld [vmem:[#allocation10 + $0x38] sm:$0xff]
    %v631 = vld [vmem:[#allocation10 + $0x40] sm:$0xff]
    %v632 = vld [vmem:[#allocation10 + $0x48] sm:$0xff]
    %v633 = vld [vmem:[#allocation10 + $0x50] sm:$0xff]
    %v634 = vld [vmem:[#allocation10 + $0x58] sm:$0xff]
    %v635 = vld [vmem:[#allocation10 + $0x60] sm:$0xff]
    %v636 = vld [vmem:[#allocation10 + $0x68] sm:$0xff]
    %v637 = vld [vmem:[#allocation10 + $0x70] sm:$0xff]
    %v638 = vld [vmem:[#allocation10 + $0x78] sm:$0xff]
    %v639 = vld [vmem:[#allocation10 + $0x80] sm:$0xff]
    %v640 = vld [vmem:[#allocation10 + $0x88] sm:$0xff]
    %v641 = vld [vmem:[#allocation10 + $0x90] sm:$0xff]
    %v642 = vld [vmem:[#allocation10 + $0x98] sm:$0xff]
    %v643 = vld [vmem:[#allocation10 + $0xa0] sm:$0xff]
    %v644 = vld [vmem:[#allocation10 + $0xa8] sm:$0xff]
    %v645 = vld [vmem:[#allocation10 + $0xb0] sm:$0xff]
    %v646 = vld [vmem:[#allocation10 + $0xb8] sm:$0xff]
    %v647 = vld [vmem:[#allocation10 + $0xc0] sm:$0xff]
    %v648 = vld [vmem:[#allocation10 + $0xc8] sm:$0xff]
    %v649 = vld [vmem:[#allocation10 + $0xd0] sm:$0xff]
    %v650 = vld [vmem:[#allocation10 + $0xd8] sm:$0xff]
    %v651 = vld [vmem:[#allocation10 + $0xe0] sm:$0xff]
    %v652 = vld [vmem:[#allocation10 + $0xe8] sm:$0xff]
    %v653 = vld [vmem:[#allocation10 + $0xf0] sm:$0xff]
    %v654 = vld [vmem:[#allocation10 + $0xf8] sm:$0xff]
    %v655 = vld [vmem:[#allocation10 + $0x100] sm:$0xff]
    %v656 = vld [vmem:[#allocation10 + $0x108] sm:$0xff]
    %v657 = vld [vmem:[#allocation10 + $0x110] sm:$0xff]
    %v658 = vld [vmem:[#allocation10 + $0x118] sm:$0xff]
    %v659 = vld [vmem:[#allocation10 + $0x120] sm:$0xff]
    %v660 = vld [vmem:[#allocation10 + $0x128] sm:$0xff]
    %v661 = vld [vmem:[#allocation10 + $0x130] sm:$0xff]
    %v662 = vld [vmem:[#allocation10 + $0x138] sm:$0xff]
    %v663 = vld [vmem:[#allocation10 + $0x140] sm:$0xff]
    %v664 = vld [vmem:[#allocation10 + $0x148] sm:$0xff]
    %v665 = vld [vmem:[#allocation10 + $0x150] sm:$0xff]
    %v666 = vld [vmem:[#allocation10 + $0x158] sm:$0xff]
    %v667 = vld [vmem:[#allocation10 + $0x160] sm:$0xff]
    %v668 = vld [vmem:[#allocation10 + $0x168] sm:$0xff]
    %v669 = vld [vmem:[#allocation10 + $0x170] sm:$0xff]
    %v670 = vld [vmem:[#allocation10 + $0x178] sm:$0xff]
    %v671 = vld [vmem:[#allocation10 + $0x180] sm:$0xff]
    %v672 = vld [vmem:[#allocation10 + $0x188] sm:$0xff]
    %v673 = vld [vmem:[#allocation10 + $0x190] sm:$0xff]
    %v674 = vld [vmem:[#allocation10 + $0x198] sm:$0xff]
    %v675 = vld [vmem:[#allocation10 + $0x1a0] sm:$0xff]
    %v676 = vld [vmem:[#allocation10 + $0x1a8] sm:$0xff]
    %v677 = vld [vmem:[#allocation10 + $0x1b0] sm:$0xff]
    %v678 = vld [vmem:[#allocation10 + $0x1b8] sm:$0xff]
    %v679 = vld [vmem:[#allocation10 + $0x1c0] sm:$0xff]
    %v680 = vld [vmem:[#allocation10 + $0x1c8] sm:$0xff]
    %v681 = vld [vmem:[#allocation10 + $0x1d0] sm:$0xff]
    %v682 = vld [vmem:[#allocation10 + $0x1d8] sm:$0xff]
    %v683 = vld [vmem:[#allocation10 + $0x1e0] sm:$0xff]
    %v684 = vld [vmem:[#allocation10 + $0x1e8] sm:$0xff]
    %v685 = vld [vmem:[#allocation10 + $0x1f0] sm:$0xff]
    %v686 = vld [vmem:[#allocation10 + $0x1f8] sm:$0xff]
    %v687 = vld [vmem:[#allocation10 + $0x200] sm:$0xff]
    %v688 = vld [vmem:[#allocation10 + $0x208] sm:$0xff]
    %v689 = vld [vmem:[#allocation10 + $0x210] sm:$0xff]
    %v690 = vld [vmem:[#allocation10 + $0x218] sm:$0xff]
    %v691 = vld [vmem:[#allocation10 + $0x220] sm:$0xff]
    %v692 = vld [vmem:[#allocation10 + $0x228] sm:$0xff]
    %v693 = vld [vmem:[#allocation10 + $0x230] sm:$0xff]
    %v694 = vld [vmem:[#allocation10 + $0x238] sm:$0xff]
    %v695 = vld [vmem:[#allocation10 + $0x240] sm:$0xff]
    %v696 = vld [vmem:[#allocation10 + $0x248] sm:$0xff]
    %v697 = vld [vmem:[#allocation10 + $0x250] sm:$0xff]
    %v698 = vld [vmem:[#allocation10 + $0x258] sm:$0xff]
    %v699 = vld [vmem:[#allocation10 + $0x260] sm:$0xff]
    %v700 = vld [vmem:[#allocation10 + $0x268] sm:$0xff]
    %v701 = vld [vmem:[#allocation10 + $0x270] sm:$0xff]
    %v702 = vld [vmem:[#allocation10 + $0x278] sm:$0xff]
    %v703 = vld [vmem:[#allocation10 + $0x280] sm:$0xff]
    %v704 = vld [vmem:[#allocation10 + $0x288] sm:$0xff]
    %v705 = vld [vmem:[#allocation10 + $0x290] sm:$0xff]
    %v706 = vld [vmem:[#allocation10 + $0x298] sm:$0xff]
    %v707 = vld [vmem:[#allocation10 + $0x2a0] sm:$0xff]
    %v708 = vld [vmem:[#allocation10 + $0x2a8] sm:$0xff]
    %v709 = vld [vmem:[#allocation10 + $0x2b0] sm:$0xff]
    %v710 = vld [vmem:[#allocation10 + $0x2b8] sm:$0xff]
    %v711 = vld [vmem:[#allocation10 + $0x2c0] sm:$0xff]
    %v712 = vld [vmem:[#allocation10 + $0x2c8] sm:$0xff]
    %v713 = vld [vmem:[#allocation10 + $0x2d0] sm:$0xff]
    %v714 = vld [vmem:[#allocation10 + $0x2d8] sm:$0xff]
    %v715 = vld [vmem:[#allocation10 + $0x2e0] sm:$0xff]
    %v716 = vld [vmem:[#allocation10 + $0x2e8] sm:$0xff]
    %v717 = vld [vmem:[#allocation10 + $0x2f0] sm:$0xff]
    %v718 = vld [vmem:[#allocation10 + $0x2f8] sm:$0xff]
    %v719 = vld [vmem:[#allocation10 + $0x300] sm:$0xff]
    %v720 = vld [vmem:[#allocation10 + $0x308] sm:$0xff]
    %v721 = vld [vmem:[#allocation10 + $0x310] sm:$0xff]
    %v722 = vld [vmem:[#allocation10 + $0x318] sm:$0xff]
    %v723 = vld [vmem:[#allocation10 + $0x320] sm:$0xff]
    %v724 = vld [vmem:[#allocation10 + $0x328] sm:$0xff]
    %v725 = vld [vmem:[#allocation10 + $0x330] sm:$0xff]
    %v726 = vld [vmem:[#allocation10 + $0x338] sm:$0xff]
    %v727 = vld [vmem:[#allocation10 + $0x340] sm:$0xff]
    %v728 = vld [vmem:[#allocation10 + $0x348] sm:$0xff]
    %v729 = vld [vmem:[#allocation10 + $0x350] sm:$0xff]
    %v730 = vld [vmem:[#allocation10 + $0x358] sm:$0xff]
    %v731 = vld [vmem:[#allocation10 + $0x360] sm:$0xff]
    %v732 = vld [vmem:[#allocation10 + $0x368] sm:$0xff]
    %v733 = vld [vmem:[#allocation10 + $0x370] sm:$0xff]
    %v734 = vld [vmem:[#allocation10 + $0x378] sm:$0xff]
    %v735 = vld [vmem:[#allocation10 + $0x380] sm:$0xff]
    %v736 = vld [vmem:[#allocation10 + $0x388] sm:$0xff]
    %v737 = vld [vmem:[#allocation10 + $0x390] sm:$0xff]
    %v738 = vld [vmem:[#allocation10 + $0x398] sm:$0xff]
    %v739 = vld [vmem:[#allocation10 + $0x3a0] sm:$0xff]
    %v740 = vld [vmem:[#allocation10 + $0x3a8] sm:$0xff]
    %v741 = vld [vmem:[#allocation10 + $0x3b0] sm:$0xff]
    %v742 = vld [vmem:[#allocation10 + $0x3b8] sm:$0xff]
    %v743 = vld [vmem:[#allocation10 + $0x3c0] sm:$0xff]
    %v744 = vld [vmem:[#allocation10 + $0x3c8] sm:$0xff]
    %v745 = vld [vmem:[#allocation10 + $0x3d0] sm:$0xff]
    %v746 = vld [vmem:[#allocation10 + $0x3d8] sm:$0xff]
    %v747 = vld [vmem:[#allocation10 + $0x3e0] sm:$0xff]
    %v748 = vld [vmem:[#allocation10 + $0x3e8] sm:$0xff]
    %v749 = vld [vmem:[#allocation10 + $0x3f0] sm:$0xff]
    %v750 = vld [vmem:[#allocation10 + $0x3f8] sm:$0xff]
    %v751 = vld [vmem:[%s6] sm:$0xf]
    %v753 = vlaneseq
    %v754 = vshrl.u32 %v753, 7
    %v755 = vsub.s32 0, %v754
    %v756 = vrot.slane %v751, %v755
    %v757 = vlaneseq
    %v758 = vshrl.u32 %v757, 7
    %v759 = vsub.s32 1, %v758
    %v760 = vrot.slane %v751, %v759
    %v761 = vlaneseq
    %v762 = vshrl.u32 %v761, 7
    %v763 = vsub.s32 2, %v762
    %v764 = vrot.slane %v751, %v763
    %v765 = vlaneseq
    %v766 = vshrl.u32 %v765, 7
    %v767 = vsub.s32 3, %v766
    %v768 = vrot.slane %v751, %v767
    %v901 = vunpack.c.l.b16 %v623
    %v902 = vunpack.c.h.b16 %v623
    %v903 = vunpack.c.l.b16 %v624
    %v904 = vunpack.c.h.b16 %v624
    %v905 = vunpack.c.l.b16 %v625
    %v906 = vunpack.c.h.b16 %v625
    %v907 = vunpack.c.l.b16 %v626
    %v908 = vunpack.c.h.b16 %v626
    %v909 = vunpack.c.l.b16 %v627
    %v910 = vunpack.c.h.b16 %v627
    %v911 = vunpack.c.l.b16 %v628
    %v912 = vunpack.c.h.b16 %v628
    %v913 = vunpack.c.l.b16 %v629
    %v914 = vunpack.c.h.b16 %v629
    %v915 = vunpack.c.l.b16 %v630
    %v916 = vunpack.c.h.b16 %v630
    %v917 = vunpack.c.l.b16 %v631
    %v918 = vunpack.c.h.b16 %v631
    %v919 = vunpack.c.l.b16 %v632
    %v920 = vunpack.c.h.b16 %v632
    %v921 = vunpack.c.l.b16 %v633
    %v922 = vunpack.c.h.b16 %v633
    %v923 = vunpack.c.l.b16 %v634
    %v924 = vunpack.c.h.b16 %v634
    %v925 = vunpack.c.l.b16 %v635
    %v926 = vunpack.c.h.b16 %v635
    %v927 = vunpack.c.l.b16 %v636
    %v928 = vunpack.c.h.b16 %v636
    %v929 = vunpack.c.l.b16 %v637
    %v930 = vunpack.c.h.b16 %v637
    %v931 = vunpack.c.l.b16 %v638
    %v932 = vunpack.c.h.b16 %v638
    %v933 = vunpack.c.l.b16 %v639
    %v934 = vunpack.c.h.b16 %v639
    %v935 = vunpack.c.l.b16 %v640
    %v936 = vunpack.c.h.b16 %v640
    %v937 = vunpack.c.l.b16 %v641
    %v938 = vunpack.c.h.b16 %v641
    %v939 = vunpack.c.l.b16 %v642
    %v940 = vunpack.c.h.b16 %v642
    %v941 = vunpack.c.l.b16 %v643
    %v942 = vunpack.c.h.b16 %v643
    %v943 = vunpack.c.l.b16 %v644
    %v944 = vunpack.c.h.b16 %v644
    %v945 = vunpack.c.l.b16 %v645
    %v946 = vunpack.c.h.b16 %v645
    %v947 = vunpack.c.l.b16 %v646
    %v948 = vunpack.c.h.b16 %v646
    %v949 = vunpack.c.l.b16 %v647
    %v950 = vunpack.c.h.b16 %v647
    %v951 = vunpack.c.l.b16 %v648
    %v952 = vunpack.c.h.b16 %v648
    %v953 = vunpack.c.l.b16 %v649
    %v954 = vunpack.c.h.b16 %v649
    %v955 = vunpack.c.l.b16 %v650
    %v956 = vunpack.c.h.b16 %v650
    %v957 = vunpack.c.l.b16 %v651
    %v958 = vunpack.c.h.b16 %v651
    %v959 = vunpack.c.l.b16 %v652
    %v960 = vunpack.c.h.b16 %v652
    %v961 = vunpack.c.l.b16 %v653
    %v962 = vunpack.c.h.b16 %v653
    %v963 = vunpack.c.l.b16 %v654
    %v964 = vunpack.c.h.b16 %v654
    %v965 = vunpack.c.l.b16 %v655
    %v966 = vunpack.c.h.b16 %v655
    %v967 = vunpack.c.l.b16 %v656
    %v968 = vunpack.c.h.b16 %v656
    %v969 = vunpack.c.l.b16 %v657
    %v970 = vunpack.c.h.b16 %v657
    %v971 = vunpack.c.l.b16 %v658
    %v972 = vunpack.c.h.b16 %v658
    %v973 = vunpack.c.l.b16 %v659
    %v974 = vunpack.c.h.b16 %v659
    %v975 = vunpack.c.l.b16 %v660
    %v976 = vunpack.c.h.b16 %v660
    %v977 = vunpack.c.l.b16 %v661
    %v978 = vunpack.c.h.b16 %v661
    %v979 = vunpack.c.l.b16 %v662
    %v980 = vunpack.c.h.b16 %v662
    %v981 = vunpack.c.l.b16 %v663
    %v982 = vunpack.c.h.b16 %v663
    %v983 = vunpack.c.l.b16 %v664
    %v984 = vunpack.c.h.b16 %v664
    %v985 = vunpack.c.l.b16 %v665
    %v986 = vunpack.c.h.b16 %v665
    %v987 = vunpack.c.l.b16 %v666
    %v988 = vunpack.c.h.b16 %v666
    %v989 = vunpack.c.l.b16 %v667
    %v990 = vunpack.c.h.b16 %v667
    %v991 = vunpack.c.l.b16 %v668
    %v992 = vunpack.c.h.b16 %v668
    %v993 = vunpack.c.l.b16 %v669
    %v994 = vunpack.c.h.b16 %v669
    %v995 = vunpack.c.l.b16 %v670
    %v996 = vunpack.c.h.b16 %v670
    %v997 = vunpack.c.l.b16 %v671
    %v998 = vunpack.c.h.b16 %v671
    %v999 = vunpack.c.l.b16 %v672
    %v1000 = vunpack.c.h.b16 %v672
    %v1001 = vunpack.c.l.b16 %v673
    %v1002 = vunpack.c.h.b16 %v673
    %v1003 = vunpack.c.l.b16 %v674
    %v1004 = vunpack.c.h.b16 %v674
    %v1005 = vunpack.c.l.b16 %v675
    %v1006 = vunpack.c.h.b16 %v675
    %v1007 = vunpack.c.l.b16 %v676
    %v1008 = vunpack.c.h.b16 %v676
    %v1009 = vunpack.c.l.b16 %v677
    %v1010 = vunpack.c.h.b16 %v677
    %v1011 = vunpack.c.l.b16 %v678
    %v1012 = vunpack.c.h.b16 %v678
    %v1013 = vunpack.c.l.b16 %v679
    %v1014 = vunpack.c.h.b16 %v679
    %v1015 = vunpack.c.l.b16 %v680
    %v1016 = vunpack.c.h.b16 %v680
    %v1017 = vunpack.c.l.b16 %v681
    %v1018 = vunpack.c.h.b16 %v681
    %v1019 = vunpack.c.l.b16 %v682
    %v1020 = vunpack.c.h.b16 %v682
    %v1021 = vunpack.c.l.b16 %v683
    %v1022 = vunpack.c.h.b16 %v683
    %v1023 = vunpack.c.l.b16 %v684
    %v1024 = vunpack.c.h.b16 %v684
    %v1025 = vunpack.c.l.b16 %v685
    %v1026 = vunpack.c.h.b16 %v685
    %v1027 = vunpack.c.l.b16 %v686
    %v1028 = vunpack.c.h.b16 %v686
    %v1029 = vunpack.c.l.b16 %v687
    %v1030 = vunpack.c.h.b16 %v687
    %v1031 = vunpack.c.l.b16 %v688
    %v1032 = vunpack.c.h.b16 %v688
    %v1033 = vunpack.c.l.b16 %v689
    %v1034 = vunpack.c.h.b16 %v689
    %v1035 = vunpack.c.l.b16 %v690
    %v1036 = vunpack.c.h.b16 %v690
    %v1037 = vunpack.c.l.b16 %v691
    %v1038 = vunpack.c.h.b16 %v691
    %v1039 = vunpack.c.l.b16 %v692
    %v1040 = vunpack.c.h.b16 %v692
    %v1041 = vunpack.c.l.b16 %v693
    %v1042 = vunpack.c.h.b16 %v693
    %v1043 = vunpack.c.l.b16 %v694
    %v1044 = vunpack.c.h.b16 %v694
    %v1045 = vunpack.c.l.b16 %v695
    %v1046 = vunpack.c.h.b16 %v695
    %v1047 = vunpack.c.l.b16 %v696
    %v1048 = vunpack.c.h.b16 %v696
    %v1049 = vunpack.c.l.b16 %v697
    %v1050 = vunpack.c.h.b16 %v697
    %v1051 = vunpack.c.l.b16 %v698
    %v1052 = vunpack.c.h.b16 %v698
    %v1053 = vunpack.c.l.b16 %v699
    %v1054 = vunpack.c.h.b16 %v699
    %v1055 = vunpack.c.l.b16 %v700
    %v1056 = vunpack.c.h.b16 %v700
    %v1057 = vunpack.c.l.b16 %v701
    %v1058 = vunpack.c.h.b16 %v701
    %v1059 = vunpack.c.l.b16 %v702
    %v1060 = vunpack.c.h.b16 %v702
    %v1061 = vunpack.c.l.b16 %v703
    %v1062 = vunpack.c.h.b16 %v703
    %v1063 = vunpack.c.l.b16 %v704
    %v1064 = vunpack.c.h.b16 %v704
    %v1065 = vunpack.c.l.b16 %v705
    %v1066 = vunpack.c.h.b16 %v705
    %v1067 = vunpack.c.l.b16 %v706
    %v1068 = vunpack.c.h.b16 %v706
    %v1069 = vunpack.c.l.b16 %v707
    %v1070 = vunpack.c.h.b16 %v707
    %v1071 = vunpack.c.l.b16 %v708
    %v1072 = vunpack.c.h.b16 %v708
    %v1073 = vunpack.c.l.b16 %v709
    %v1074 = vunpack.c.h.b16 %v709
    %v1075 = vunpack.c.l.b16 %v710
    %v1076 = vunpack.c.h.b16 %v710
    %v1077 = vunpack.c.l.b16 %v711
    %v1078 = vunpack.c.h.b16 %v711
    %v1079 = vunpack.c.l.b16 %v712
    %v1080 = vunpack.c.h.b16 %v712
    %v1081 = vunpack.c.l.b16 %v713
    %v1082 = vunpack.c.h.b16 %v713
    %v1083 = vunpack.c.l.b16 %v714
    %v1084 = vunpack.c.h.b16 %v714
    %v1085 = vunpack.c.l.b16 %v715
    %v1086 = vunpack.c.h.b16 %v715
    %v1087 = vunpack.c.l.b16 %v716
    %v1088 = vunpack.c.h.b16 %v716
    %v1089 = vunpack.c.l.b16 %v717
    %v1090 = vunpack.c.h.b16 %v717
    %v1091 = vunpack.c.l.b16 %v718
    %v1092 = vunpack.c.h.b16 %v718
    %v1093 = vunpack.c.l.b16 %v719
    %v1094 = vunpack.c.h.b16 %v719
    %v1095 = vunpack.c.l.b16 %v720
    %v1096 = vunpack.c.h.b16 %v720
    %v1097 = vunpack.c.l.b16 %v721
    %v1098 = vunpack.c.h.b16 %v721
    %v1099 = vunpack.c.l.b16 %v722
    %v1100 = vunpack.c.h.b16 %v722
    %v1101 = vunpack.c.l.b16 %v723
    %v1102 = vunpack.c.h.b16 %v723
    %v1103 = vunpack.c.l.b16 %v724
    %v1104 = vunpack.c.h.b16 %v724
    %v1105 = vunpack.c.l.b16 %v725
    %v1106 = vunpack.c.h.b16 %v725
    %v1107 = vunpack.c.l.b16 %v726
    %v1108 = vunpack.c.h.b16 %v726
    %v1109 = vunpack.c.l.b16 %v727
    %v1110 = vunpack.c.h.b16 %v727
    %v1111 = vunpack.c.l.b16 %v728
    %v1112 = vunpack.c.h.b16 %v728
    %v1113 = vunpack.c.l.b16 %v729
    %v1114 = vunpack.c.h.b16 %v729
    %v1115 = vunpack.c.l.b16 %v730
    %v1116 = vunpack.c.h.b16 %v730
    %v1117 = vunpack.c.l.b16 %v731
    %v1118 = vunpack.c.h.b16 %v731
    %v1119 = vunpack.c.l.b16 %v732
    %v1120 = vunpack.c.h.b16 %v732
    %v1121 = vunpack.c.l.b16 %v733
    %v1122 = vunpack.c.h.b16 %v733
    %v1123 = vunpack.c.l.b16 %v734
    %v1124 = vunpack.c.h.b16 %v734
    %v1125 = vunpack.c.l.b16 %v735
    %v1126 = vunpack.c.h.b16 %v735
    %v1127 = vunpack.c.l.b16 %v736
    %v1128 = vunpack.c.h.b16 %v736
    %v1129 = vunpack.c.l.b16 %v737
    %v1130 = vunpack.c.h.b16 %v737
    %v1131 = vunpack.c.l.b16 %v738
    %v1132 = vunpack.c.h.b16 %v738
    %v1133 = vunpack.c.l.b16 %v739
    %v1134 = vunpack.c.h.b16 %v739
    %v1135 = vunpack.c.l.b16 %v740
    %v1136 = vunpack.c.h.b16 %v740
    %v1137 = vunpack.c.l.b16 %v741
    %v1138 = vunpack.c.h.b16 %v741
    %v1139 = vunpack.c.l.b16 %v742
    %v1140 = vunpack.c.h.b16 %v742
    %v1141 = vunpack.c.l.b16 %v743
    %v1142 = vunpack.c.h.b16 %v743
    %v1143 = vunpack.c.l.b16 %v744
    %v1144 = vunpack.c.h.b16 %v744
    %v1145 = vunpack.c.l.b16 %v745
    %v1146 = vunpack.c.h.b16 %v745
    %v1147 = vunpack.c.l.b16 %v746
    %v1148 = vunpack.c.h.b16 %v746
    %v1149 = vunpack.c.l.b16 %v747
    %v1150 = vunpack.c.h.b16 %v747
    %v1151 = vunpack.c.l.b16 %v748
    %v1152 = vunpack.c.h.b16 %v748
    %v1153 = vunpack.c.l.b16 %v749
    %v1154 = vunpack.c.h.b16 %v749
    %v1155 = vunpack.c.l.b16 %v750
    %v1156 = vunpack.c.h.b16 %v750
    %v1157 = vpack.c.b16 %v905, %v901
    %v1158 = vpack.c.b16 %v906, %v902
    %v1159 = vpack.c.b16 %v907, %v903
    %v1160 = vpack.c.b16 %v908, %v904
    %v1161 = vpack.c.b16 %v913, %v909
    %v1162 = vpack.c.b16 %v914, %v910
    %v1163 = vpack.c.b16 %v915, %v911
    %v1164 = vpack.c.b16 %v916, %v912
    %v1165 = vpack.c.b16 %v921, %v917
    %v1166 = vpack.c.b16 %v922, %v918
    %v1167 = vpack.c.b16 %v923, %v919
    %v1168 = vpack.c.b16 %v924, %v920
    %v1169 = vpack.c.b16 %v929, %v925
    %v1170 = vpack.c.b16 %v930, %v926
    %v1171 = vpack.c.b16 %v931, %v927
    %v1172 = vpack.c.b16 %v932, %v928
    %v1173 = vpack.c.b16 %v937, %v933
    %v1174 = vpack.c.b16 %v938, %v934
    %v1175 = vpack.c.b16 %v939, %v935
    %v1176 = vpack.c.b16 %v940, %v936
    %v1177 = vpack.c.b16 %v945, %v941
    %v1178 = vpack.c.b16 %v946, %v942
    %v1179 = vpack.c.b16 %v947, %v943
    %v1180 = vpack.c.b16 %v948, %v944
    %v1181 = vpack.c.b16 %v953, %v949
    %v1182 = vpack.c.b16 %v954, %v950
    %v1183 = vpack.c.b16 %v955, %v951
    %v1184 = vpack.c.b16 %v956, %v952
    %v1185 = vpack.c.b16 %v961, %v957
    %v1186 = vpack.c.b16 %v962, %v958
    %v1187 = vpack.c.b16 %v963, %v959
    %v1188 = vpack.c.b16 %v964, %v960
    %v1189 = vpack.c.b16 %v969, %v965
    %v1190 = vpack.c.b16 %v970, %v966
    %v1191 = vpack.c.b16 %v971, %v967
    %v1192 = vpack.c.b16 %v972, %v968
    %v1193 = vpack.c.b16 %v977, %v973
    %v1194 = vpack.c.b16 %v978, %v974
    %v1195 = vpack.c.b16 %v979, %v975
    %v1196 = vpack.c.b16 %v980, %v976
    %v1197 = vpack.c.b16 %v985, %v981
    %v1198 = vpack.c.b16 %v986, %v982
    %v1199 = vpack.c.b16 %v987, %v983
    %v1200 = vpack.c.b16 %v988, %v984
    %v1201 = vpack.c.b16 %v993, %v989
    %v1202 = vpack.c.b16 %v994, %v990
    %v1203 = vpack.c.b16 %v995, %v991
    %v1204 = vpack.c.b16 %v996, %v992
    %v1205 = vpack.c.b16 %v1001, %v997
    %v1206 = vpack.c.b16 %v1002, %v998
    %v1207 = vpack.c.b16 %v1003, %v999
    %v1208 = vpack.c.b16 %v1004, %v1000
    %v1209 = vpack.c.b16 %v1009, %v1005
    %v1210 = vpack.c.b16 %v1010, %v1006
    %v1211 = vpack.c.b16 %v1011, %v1007
    %v1212 = vpack.c.b16 %v1012, %v1008
    %v1213 = vpack.c.b16 %v1017, %v1013
    %v1214 = vpack.c.b16 %v1018, %v1014
    %v1215 = vpack.c.b16 %v1019, %v1015
    %v1216 = vpack.c.b16 %v1020, %v1016
    %v1217 = vpack.c.b16 %v1025, %v1021
    %v1218 = vpack.c.b16 %v1026, %v1022
    %v1219 = vpack.c.b16 %v1027, %v1023
    %v1220 = vpack.c.b16 %v1028, %v1024
    %v1221 = vpack.c.b16 %v1033, %v1029
    %v1222 = vpack.c.b16 %v1034, %v1030
    %v1223 = vpack.c.b16 %v1035, %v1031
    %v1224 = vpack.c.b16 %v1036, %v1032
    %v1225 = vpack.c.b16 %v1041, %v1037
    %v1226 = vpack.c.b16 %v1042, %v1038
    %v1227 = vpack.c.b16 %v1043, %v1039
    %v1228 = vpack.c.b16 %v1044, %v1040
    %v1229 = vpack.c.b16 %v1049, %v1045
    %v1230 = vpack.c.b16 %v1050, %v1046
    %v1231 = vpack.c.b16 %v1051, %v1047
    %v1232 = vpack.c.b16 %v1052, %v1048
    %v1233 = vpack.c.b16 %v1057, %v1053
    %v1234 = vpack.c.b16 %v1058, %v1054
    %v1235 = vpack.c.b16 %v1059, %v1055
    %v1236 = vpack.c.b16 %v1060, %v1056
    %v1237 = vpack.c.b16 %v1065, %v1061
    %v1238 = vpack.c.b16 %v1066, %v1062
    %v1239 = vpack.c.b16 %v1067, %v1063
    %v1240 = vpack.c.b16 %v1068, %v1064
    %v1241 = vpack.c.b16 %v1073, %v1069
    %v1242 = vpack.c.b16 %v1074, %v1070
    %v1243 = vpack.c.b16 %v1075, %v1071
    %v1244 = vpack.c.b16 %v1076, %v1072
    %v1245 = vpack.c.b16 %v1081, %v1077
    %v1246 = vpack.c.b16 %v1082, %v1078
    %v1247 = vpack.c.b16 %v1083, %v1079
    %v1248 = vpack.c.b16 %v1084, %v1080
    %v1249 = vpack.c.b16 %v1089, %v1085
    %v1250 = vpack.c.b16 %v1090, %v1086
    %v1251 = vpack.c.b16 %v1091, %v1087
    %v1252 = vpack.c.b16 %v1092, %v1088
    %v1253 = vpack.c.b16 %v1097, %v1093
    %v1254 = vpack.c.b16 %v1098, %v1094
    %v1255 = vpack.c.b16 %v1099, %v1095
    %v1256 = vpack.c.b16 %v1100, %v1096
    %v1257 = vpack.c.b16 %v1105, %v1101
    %v1258 = vpack.c.b16 %v1106, %v1102
    %v1259 = vpack.c.b16 %v1107, %v1103
    %v1260 = vpack.c.b16 %v1108, %v1104
    %v1261 = vpack.c.b16 %v1113, %v1109
    %v1262 = vpack.c.b16 %v1114, %v1110
    %v1263 = vpack.c.b16 %v1115, %v1111
    %v1264 = vpack.c.b16 %v1116, %v1112
    %v1265 = vpack.c.b16 %v1121, %v1117
    %v1266 = vpack.c.b16 %v1122, %v1118
    %v1267 = vpack.c.b16 %v1123, %v1119
    %v1268 = vpack.c.b16 %v1124, %v1120
    %v1269 = vpack.c.b16 %v1129, %v1125
    %v1270 = vpack.c.b16 %v1130, %v1126
    %v1271 = vpack.c.b16 %v1131, %v1127
    %v1272 = vpack.c.b16 %v1132, %v1128
    %v1273 = vpack.c.b16 %v1137, %v1133
    %v1274 = vpack.c.b16 %v1138, %v1134
    %v1275 = vpack.c.b16 %v1139, %v1135
    %v1276 = vpack.c.b16 %v1140, %v1136
    %v1277 = vpack.c.b16 %v1145, %v1141
    %v1278 = vpack.c.b16 %v1146, %v1142
    %v1279 = vpack.c.b16 %v1147, %v1143
    %v1280 = vpack.c.b16 %v1148, %v1144
    %v1281 = vpack.c.b16 %v1153, %v1149
    %v1282 = vpack.c.b16 %v1154, %v1150
    %v1283 = vpack.c.b16 %v1155, %v1151
    %v1284 = vpack.c.b16 %v1156, %v1152
    %1413 = vmatprep.subr.bf16.mxu0 %v1186
    %1414 = vmatpush1.bf16.msra.mxu0 %v1185
    %1415 = vmatprep.subr.bf16.mxu0 %v1182
    %1416 = vmatpush1.bf16.msra.mxu0 %v1181
    %1417 = vmatprep.subr.bf16.mxu0 %v1178
    %1418 = vmatpush1.bf16.msra.mxu0 %v1177
    %1419 = vmatprep.subr.bf16.mxu0 %v1174
    %1420 = vmatpush1.bf16.msra.mxu0 %v1173
    %1421 = vmatprep.subr.bf16.mxu0 %v1170
    %1422 = vmatpush1.bf16.msra.mxu0 %v1169
    %1423 = vmatprep.subr.bf16.mxu0 %v1166
    %1424 = vmatpush1.bf16.msra.mxu0 %v1165
    %1425 = vmatprep.subr.bf16.mxu0 %v1162
    %1426 = vmatpush1.bf16.msra.mxu0 %v1161
    %1427 = vmatprep.subr.bf16.mxu0 %v1158
    %1428 = vmatpush1.bf16.msra.mxu0 %v1157
    %1429 = vmatprep.subr.bf16.mxu0 %v1218
    %1430 = vmatpush2.bf16.msra.mxu0 %v1217
    %1431 = vmatprep.subr.bf16.mxu0 %v1214
    %1432 = vmatpush2.bf16.msra.mxu0 %v1213
    %1433 = vmatprep.subr.bf16.mxu0 %v1210
    %1434 = vmatpush2.bf16.msra.mxu0 %v1209
    %1435 = vmatprep.subr.bf16.mxu0 %v1206
    %1436 = vmatpush2.bf16.msra.mxu0 %v1205
    %1437 = vmatprep.subr.bf16.mxu0 %v1202
    %1438 = vmatpush2.bf16.msra.mxu0 %v1201
    %1439 = vmatprep.subr.bf16.mxu0 %v1198
    %1440 = vmatpush2.bf16.msra.mxu0 %v1197
    %1441 = vmatprep.subr.bf16.mxu0 %v1194
    %1442 = vmatpush2.bf16.msra.mxu0 %v1193
    %1443 = vmatprep.subr.bf16.mxu0 %v1190
    %1444 = vmatpush2.bf16.msra.mxu0 %v1189
    %1445 = vmatprep.mubr.bf16.mxu0 %v620
    %1446 = vmatmul.mubr.bf16.gmra.mxu0 %v619
    %v1447 = vpop.f32.mrf.mxu0
    %v1448 = vadd.f32 %v756, %v1447
    %v1449 = vpop.f32.mrf.mxu0
    %v1450 = vadd.f32 %v760, %v1449
    %v1451 = vpop.f32.mrf.mxu0
    %v1452 = vpop.f32.mrf.mxu0
    %1453 = vdwg.mxu0
    %1454 = vmatprep.subr.bf16.mxu0 %v1250
    %1455 = vmatpush1.bf16.msra.mxu0 %v1249
    %1456 = vmatprep.subr.bf16.mxu0 %v1246
    %1457 = vmatpush1.bf16.msra.mxu0 %v1245
    %1458 = vmatprep.subr.bf16.mxu0 %v1242
    %1459 = vmatpush1.bf16.msra.mxu0 %v1241
    %1460 = vmatprep.subr.bf16.mxu0 %v1238
    %1461 = vmatpush1.bf16.msra.mxu0 %v1237
    %1462 = vmatprep.subr.bf16.mxu0 %v1234
    %1463 = vmatpush1.bf16.msra.mxu0 %v1233
    %1464 = vmatprep.subr.bf16.mxu0 %v1230
    %1465 = vmatpush1.bf16.msra.mxu0 %v1229
    %1466 = vmatprep.subr.bf16.mxu0 %v1226
    %1467 = vmatpush1.bf16.msra.mxu0 %v1225
    %1468 = vmatprep.subr.bf16.mxu0 %v1222
    %1469 = vmatpush1.bf16.msra.mxu0 %v1221
    %1470 = vmatprep.subr.bf16.mxu0 %v1282
    %1471 = vmatpush2.bf16.msra.mxu0 %v1281
    %1472 = vmatprep.subr.bf16.mxu0 %v1278
    %1473 = vmatpush2.bf16.msra.mxu0 %v1277
    %1474 = vmatprep.subr.bf16.mxu0 %v1274
    %1475 = vmatpush2.bf16.msra.mxu0 %v1273
    %1476 = vmatprep.subr.bf16.mxu0 %v1270
    %1477 = vmatpush2.bf16.msra.mxu0 %v1269
    %1478 = vmatprep.subr.bf16.mxu0 %v1266
    %1479 = vmatpush2.bf16.msra.mxu0 %v1265
    %1480 = vmatprep.subr.bf16.mxu0 %v1262
    %1481 = vmatpush2.bf16.msra.mxu0 %v1261
    %1482 = vmatprep.subr.bf16.mxu0 %v1258
    %1483 = vmatpush2.bf16.msra.mxu0 %v1257
    %1484 = vmatprep.subr.bf16.mxu0 %v1254
    %1485 = vmatpush2.bf16.msra.mxu0 %v1253
    %1486 = vmatprep.mubr.bf16.mxu0 %v622
    %1487 = vmatmul.mubr.bf16.gmra.mxu0 %v621
    %v1488 = vpop.f32.mrf.mxu0
    %v1489 = vadd.f32 %v1448, %v1488
    %v1490 = vpop.f32.mrf.mxu0
    %v1491 = vadd.f32 %v1450, %v1490
    %v1492 = vpop.f32.mrf.mxu0
    %v1493 = vpop.f32.mrf.mxu0
    %1494 = vdwg.mxu0
    %1495 = vmatprep.subr.bf16.mxu0 %v1188
    %1496 = vmatpush1.bf16.msra.mxu0 %v1187
    %1497 = vmatprep.subr.bf16.mxu0 %v1184
    %1498 = vmatpush1.bf16.msra.mxu0 %v1183
    %1499 = vmatprep.subr.bf16.mxu0 %v1180
    %1500 = vmatpush1.bf16.msra.mxu0 %v1179
    %1501 = vmatprep.subr.bf16.mxu0 %v1176
    %1502 = vmatpush1.bf16.msra.mxu0 %v1175
    %1503 = vmatprep.subr.bf16.mxu0 %v1172
    %1504 = vmatpush1.bf16.msra.mxu0 %v1171
    %1505 = vmatprep.subr.bf16.mxu0 %v1168
    %1506 = vmatpush1.bf16.msra.mxu0 %v1167
    %1507 = vmatprep.subr.bf16.mxu0 %v1164
    %1508 = vmatpush1.bf16.msra.mxu0 %v1163
    %1509 = vmatprep.subr.bf16.mxu0 %v1160
    %1510 = vmatpush1.bf16.msra.mxu0 %v1159
    %1511 = vmatprep.subr.bf16.mxu0 %v1220
    %1512 = vmatpush2.bf16.msra.mxu0 %v1219
    %1513 = vmatprep.subr.bf16.mxu0 %v1216
    %1514 = vmatpush2.bf16.msra.mxu0 %v1215
    %1515 = vmatprep.subr.bf16.mxu0 %v1212
    %1516 = vmatpush2.bf16.msra.mxu0 %v1211
    %1517 = vmatprep.subr.bf16.mxu0 %v1208
    %1518 = vmatpush2.bf16.msra.mxu0 %v1207
    %1519 = vmatprep.subr.bf16.mxu0 %v1204
    %1520 = vmatpush2.bf16.msra.mxu0 %v1203
    %1521 = vmatprep.subr.bf16.mxu0 %v1200
    %1522 = vmatpush2.bf16.msra.mxu0 %v1199
    %1523 = vmatprep.subr.bf16.mxu0 %v1196
    %1524 = vmatpush2.bf16.msra.mxu0 %v1195
    %1525 = vmatprep.subr.bf16.mxu0 %v1192
    %1526 = vmatpush2.bf16.msra.mxu0 %v1191
    %1527 = vmatprep.mubr.bf16.mxu0 %v620
    %1528 = vmatmul.mubr.bf16.gmra.mxu0 %v619
    %v1529 = vpop.f32.mrf.mxu0
    %v1530 = vadd.f32 %v764, %v1529
    %v1531 = vpop.f32.mrf.mxu0
    %v1532 = vadd.f32 %v768, %v1531
    %v1533 = vpop.f32.mrf.mxu0
    %v1534 = vpop.f32.mrf.mxu0
    %1535 = vdwg.mxu0
    %1536 = vmatprep.subr.bf16.mxu0 %v1252
    %1537 = vmatpush1.bf16.msra.mxu0 %v1251
    %1538 = vmatprep.subr.bf16.mxu0 %v1248
    %1539 = vmatpush1.bf16.msra.mxu0 %v1247
    %1540 = vmatprep.subr.bf16.mxu0 %v1244
    %1541 = vmatpush1.bf16.msra.mxu0 %v1243
    %1542 = vmatprep.subr.bf16.mxu0 %v1240
    %1543 = vmatpush1.bf16.msra.mxu0 %v1239
    %1544 = vmatprep.subr.bf16.mxu0 %v1236
    %1545 = vmatpush1.bf16.msra.mxu0 %v1235
    %1546 = vmatprep.subr.bf16.mxu0 %v1232
    %1547 = vmatpush1.bf16.msra.mxu0 %v1231
    %1548 = vmatprep.subr.bf16.mxu0 %v1228
    %1549 = vmatpush1.bf16.msra.mxu0 %v1227
    %1550 = vmatprep.subr.bf16.mxu0 %v1224
    %1551 = vmatpush1.bf16.msra.mxu0 %v1223
    %1552 = vmatprep.subr.bf16.mxu0 %v1284
    %1553 = vmatpush2.bf16.msra.mxu0 %v1283
    %1554 = vmatprep.subr.bf16.mxu0 %v1280
    %1555 = vmatpush2.bf16.msra.mxu0 %v1279
    %1556 = vmatprep.subr.bf16.mxu0 %v1276
    %1557 = vmatpush2.bf16.msra.mxu0 %v1275
    %1558 = vmatprep.subr.bf16.mxu0 %v1272
    %1559 = vmatpush2.bf16.msra.mxu0 %v1271
    %1560 = vmatprep.subr.bf16.mxu0 %v1268
    %1561 = vmatpush2.bf16.msra.mxu0 %v1267
    %1562 = vmatprep.subr.bf16.mxu0 %v1264
    %1563 = vmatpush2.bf16.msra.mxu0 %v1263
    %1564 = vmatprep.subr.bf16.mxu0 %v1260
    %1565 = vmatpush2.bf16.msra.mxu0 %v1259
    %1566 = vmatprep.subr.bf16.mxu0 %v1256
    %1567 = vmatpush2.bf16.msra.mxu0 %v1255
    %1568 = vmatprep.mubr.bf16.mxu0 %v622
    %1569 = vmatmul.mubr.bf16.gmra.mxu0 %v621
    %v1570 = vpop.f32.mrf.mxu0
    %v1571 = vadd.f32 %v1530, %v1570
    %v1572 = vpop.f32.mrf.mxu0
    %v1573 = vadd.f32 %v1532, %v1572
    %v1574 = vpop.f32.mrf.mxu0
    %v1575 = vpop.f32.mrf.mxu0
    %1576 = vdwg.mxu0
    %v1577 = vmax.f32 %v1489, 0.0
    %v1578 = vmax.f32 %v1491, 0.0
    %v1579 = vmax.f32 %v1571, 0.0
    %v1580 = vmax.f32 %v1573, 0.0
    %v1581 = vpack.c.bf16 %v1577, %v1577
    %v1582 = vpack.c.bf16 %v1578, %v1578
    %v1583 = vpack.c.bf16 %v1579, %v1579
    %v1584 = vpack.c.bf16 %v1580, %v1580
    %v1585 = vld [vmem:[#allocation11] sm:$0xff]
    %v1586 = vld [vmem:[#allocation11 + $0x8] sm:$0xff]
    %v1587 = vld [vmem:[#allocation11 + $0x10] sm:$0xff]
    %v1588 = vld [vmem:[#allocation11 + $0x18] sm:$0xff]
    %v1589 = vld [vmem:[#allocation11 + $0x20] sm:$0xff]
    %v1590 = vld [vmem:[#allocation11 + $0x28] sm:$0xff]
    %v1591 = vld [vmem:[#allocation11 + $0x30] sm:$0xff]
    %v1592 = vld [vmem:[#allocation11 + $0x38] sm:$0xff]
    %v1593 = vld [vmem:[#allocation11 + $0x40] sm:$0xff]
    %v1594 = vld [vmem:[#allocation11 + $0x48] sm:$0xff]
    %v1595 = vld [vmem:[#allocation11 + $0x50] sm:$0xff]
    %v1596 = vld [vmem:[#allocation11 + $0x58] sm:$0xff]
    %v1597 = vld [vmem:[#allocation11 + $0x60] sm:$0xff]
    %v1598 = vld [vmem:[#allocation11 + $0x68] sm:$0xff]
    %v1599 = vld [vmem:[#allocation11 + $0x70] sm:$0xff]
    %v1600 = vld [vmem:[#allocation11 + $0x78] sm:$0xff]
    %v1601 = vld [vmem:[#allocation11 + $0x80] sm:$0xff]
    %v1602 = vld [vmem:[#allocation11 + $0x88] sm:$0xff]
    %v1603 = vld [vmem:[#allocation11 + $0x90] sm:$0xff]
    %v1604 = vld [vmem:[#allocation11 + $0x98] sm:$0xff]
    %v1605 = vld [vmem:[#allocation11 + $0xa0] sm:$0xff]
    %v1606 = vld [vmem:[#allocation11 + $0xa8] sm:$0xff]
    %v1607 = vld [vmem:[#allocation11 + $0xb0] sm:$0xff]
    %v1608 = vld [vmem:[#allocation11 + $0xb8] sm:$0xff]
    %v1609 = vld [vmem:[#allocation11 + $0xc0] sm:$0xff]
    %v1610 = vld [vmem:[#allocation11 + $0xc8] sm:$0xff]
    %v1611 = vld [vmem:[#allocation11 + $0xd0] sm:$0xff]
    %v1612 = vld [vmem:[#allocation11 + $0xd8] sm:$0xff]
    %v1613 = vld [vmem:[#allocation11 + $0xe0] sm:$0xff]
    %v1614 = vld [vmem:[#allocation11 + $0xe8] sm:$0xff]
    %v1615 = vld [vmem:[#allocation11 + $0xf0] sm:$0xff]
    %v1616 = vld [vmem:[#allocation11 + $0xf8] sm:$0xff]
    %v1617 = vld [vmem:[#allocation11 + $0x100] sm:$0xff]
    %v1618 = vld [vmem:[#allocation11 + $0x108] sm:$0xff]
    %v1619 = vld [vmem:[#allocation11 + $0x110] sm:$0xff]
    %v1620 = vld [vmem:[#allocation11 + $0x118] sm:$0xff]
    %v1621 = vld [vmem:[#allocation11 + $0x120] sm:$0xff]
    %v1622 = vld [vmem:[#allocation11 + $0x128] sm:$0xff]
    %v1623 = vld [vmem:[#allocation11 + $0x130] sm:$0xff]
    %v1624 = vld [vmem:[#allocation11 + $0x138] sm:$0xff]
    %v1625 = vld [vmem:[#allocation11 + $0x140] sm:$0xff]
    %v1626 = vld [vmem:[#allocation11 + $0x148] sm:$0xff]
    %v1627 = vld [vmem:[#allocation11 + $0x150] sm:$0xff]
    %v1628 = vld [vmem:[#allocation11 + $0x158] sm:$0xff]
    %v1629 = vld [vmem:[#allocation11 + $0x160] sm:$0xff]
    %v1630 = vld [vmem:[#allocation11 + $0x168] sm:$0xff]
    %v1631 = vld [vmem:[#allocation11 + $0x170] sm:$0xff]
    %v1632 = vld [vmem:[#allocation11 + $0x178] sm:$0xff]
    %v1633 = vld [vmem:[#allocation11 + $0x180] sm:$0xff]
    %v1634 = vld [vmem:[#allocation11 + $0x188] sm:$0xff]
    %v1635 = vld [vmem:[#allocation11 + $0x190] sm:$0xff]
    %v1636 = vld [vmem:[#allocation11 + $0x198] sm:$0xff]
    %v1637 = vld [vmem:[#allocation11 + $0x1a0] sm:$0xff]
    %v1638 = vld [vmem:[#allocation11 + $0x1a8] sm:$0xff]
    %v1639 = vld [vmem:[#allocation11 + $0x1b0] sm:$0xff]
    %v1640 = vld [vmem:[#allocation11 + $0x1b8] sm:$0xff]
    %v1641 = vld [vmem:[#allocation11 + $0x1c0] sm:$0xff]
    %v1642 = vld [vmem:[#allocation11 + $0x1c8] sm:$0xff]
    %v1643 = vld [vmem:[#allocation11 + $0x1d0] sm:$0xff]
    %v1644 = vld [vmem:[#allocation11 + $0x1d8] sm:$0xff]
    %v1645 = vld [vmem:[#allocation11 + $0x1e0] sm:$0xff]
    %v1646 = vld [vmem:[#allocation11 + $0x1e8] sm:$0xff]
    %v1647 = vld [vmem:[#allocation11 + $0x1f0] sm:$0xff]
    %v1648 = vld [vmem:[#allocation11 + $0x1f8] sm:$0xff]
    %v1649 = vld [vmem:[#allocation13] sm:$0x3]
    %v1651 = vlaneseq
    %v1652 = vshrl.u32 %v1651, 7
    %v1653 = vsub.s32 0, %v1652
    %v1654 = vrot.slane %v1649, %v1653
    %v1655 = vlaneseq
    %v1656 = vshrl.u32 %v1655, 7
    %v1657 = vsub.s32 1, %v1656
    %v1658 = vrot.slane %v1649, %v1657
    %v1725 = vunpack.c.l.b16 %v1585
    %v1726 = vunpack.c.h.b16 %v1585
    %v1727 = vunpack.c.l.b16 %v1586
    %v1728 = vunpack.c.h.b16 %v1586
    %v1729 = vunpack.c.l.b16 %v1587
    %v1730 = vunpack.c.h.b16 %v1587
    %v1731 = vunpack.c.l.b16 %v1588
    %v1732 = vunpack.c.h.b16 %v1588
    %v1733 = vunpack.c.l.b16 %v1589
    %v1734 = vunpack.c.h.b16 %v1589
    %v1735 = vunpack.c.l.b16 %v1590
    %v1736 = vunpack.c.h.b16 %v1590
    %v1737 = vunpack.c.l.b16 %v1591
    %v1738 = vunpack.c.h.b16 %v1591
    %v1739 = vunpack.c.l.b16 %v1592
    %v1740 = vunpack.c.h.b16 %v1592
    %v1741 = vunpack.c.l.b16 %v1593
    %v1742 = vunpack.c.h.b16 %v1593
    %v1743 = vunpack.c.l.b16 %v1594
    %v1744 = vunpack.c.h.b16 %v1594
    %v1745 = vunpack.c.l.b16 %v1595
    %v1746 = vunpack.c.h.b16 %v1595
    %v1747 = vunpack.c.l.b16 %v1596
    %v1748 = vunpack.c.h.b16 %v1596
    %v1749 = vunpack.c.l.b16 %v1597
    %v1750 = vunpack.c.h.b16 %v1597
    %v1751 = vunpack.c.l.b16 %v1598
    %v1752 = vunpack.c.h.b16 %v1598
    %v1753 = vunpack.c.l.b16 %v1599
    %v1754 = vunpack.c.h.b16 %v1599
    %v1755 = vunpack.c.l.b16 %v1600
    %v1756 = vunpack.c.h.b16 %v1600
    %v1757 = vunpack.c.l.b16 %v1601
    %v1758 = vunpack.c.h.b16 %v1601
    %v1759 = vunpack.c.l.b16 %v1602
    %v1760 = vunpack.c.h.b16 %v1602
    %v1761 = vunpack.c.l.b16 %v1603
    %v1762 = vunpack.c.h.b16 %v1603
    %v1763 = vunpack.c.l.b16 %v1604
    %v1764 = vunpack.c.h.b16 %v1604
    %v1765 = vunpack.c.l.b16 %v1605
    %v1766 = vunpack.c.h.b16 %v1605
    %v1767 = vunpack.c.l.b16 %v1606
    %v1768 = vunpack.c.h.b16 %v1606
    %v1769 = vunpack.c.l.b16 %v1607
    %v1770 = vunpack.c.h.b16 %v1607
    %v1771 = vunpack.c.l.b16 %v1608
    %v1772 = vunpack.c.h.b16 %v1608
    %v1773 = vunpack.c.l.b16 %v1609
    %v1774 = vunpack.c.h.b16 %v1609
    %v1775 = vunpack.c.l.b16 %v1610
    %v1776 = vunpack.c.h.b16 %v1610
    %v1777 = vunpack.c.l.b16 %v1611
    %v1778 = vunpack.c.h.b16 %v1611
    %v1779 = vunpack.c.l.b16 %v1612
    %v1780 = vunpack.c.h.b16 %v1612
    %v1781 = vunpack.c.l.b16 %v1613
    %v1782 = vunpack.c.h.b16 %v1613
    %v1783 = vunpack.c.l.b16 %v1614
    %v1784 = vunpack.c.h.b16 %v1614
    %v1785 = vunpack.c.l.b16 %v1615
    %v1786 = vunpack.c.h.b16 %v1615
    %v1787 = vunpack.c.l.b16 %v1616
    %v1788 = vunpack.c.h.b16 %v1616
    %v1789 = vunpack.c.l.b16 %v1617
    %v1790 = vunpack.c.h.b16 %v1617
    %v1791 = vunpack.c.l.b16 %v1618
    %v1792 = vunpack.c.h.b16 %v1618
    %v1793 = vunpack.c.l.b16 %v1619
    %v1794 = vunpack.c.h.b16 %v1619
    %v1795 = vunpack.c.l.b16 %v1620
    %v1796 = vunpack.c.h.b16 %v1620
    %v1797 = vunpack.c.l.b16 %v1621
    %v1798 = vunpack.c.h.b16 %v1621
    %v1799 = vunpack.c.l.b16 %v1622
    %v1800 = vunpack.c.h.b16 %v1622
    %v1801 = vunpack.c.l.b16 %v1623
    %v1802 = vunpack.c.h.b16 %v1623
    %v1803 = vunpack.c.l.b16 %v1624
    %v1804 = vunpack.c.h.b16 %v1624
    %v1805 = vunpack.c.l.b16 %v1625
    %v1806 = vunpack.c.h.b16 %v1625
    %v1807 = vunpack.c.l.b16 %v1626
    %v1808 = vunpack.c.h.b16 %v1626
    %v1809 = vunpack.c.l.b16 %v1627
    %v1810 = vunpack.c.h.b16 %v1627
    %v1811 = vunpack.c.l.b16 %v1628
    %v1812 = vunpack.c.h.b16 %v1628
    %v1813 = vunpack.c.l.b16 %v1629
    %v1814 = vunpack.c.h.b16 %v1629
    %v1815 = vunpack.c.l.b16 %v1630
    %v1816 = vunpack.c.h.b16 %v1630
    %v1817 = vunpack.c.l.b16 %v1631
    %v1818 = vunpack.c.h.b16 %v1631
    %v1819 = vunpack.c.l.b16 %v1632
    %v1820 = vunpack.c.h.b16 %v1632
    %v1821 = vunpack.c.l.b16 %v1633
    %v1822 = vunpack.c.h.b16 %v1633
    %v1823 = vunpack.c.l.b16 %v1634
    %v1824 = vunpack.c.h.b16 %v1634
    %v1825 = vunpack.c.l.b16 %v1635
    %v1826 = vunpack.c.h.b16 %v1635
    %v1827 = vunpack.c.l.b16 %v1636
    %v1828 = vunpack.c.h.b16 %v1636
    %v1829 = vunpack.c.l.b16 %v1637
    %v1830 = vunpack.c.h.b16 %v1637
    %v1831 = vunpack.c.l.b16 %v1638
    %v1832 = vunpack.c.h.b16 %v1638
    %v1833 = vunpack.c.l.b16 %v1639
    %v1834 = vunpack.c.h.b16 %v1639
    %v1835 = vunpack.c.l.b16 %v1640
    %v1836 = vunpack.c.h.b16 %v1640
    %v1837 = vunpack.c.l.b16 %v1641
    %v1838 = vunpack.c.h.b16 %v1641
    %v1839 = vunpack.c.l.b16 %v1642
    %v1840 = vunpack.c.h.b16 %v1642
    %v1841 = vunpack.c.l.b16 %v1643
    %v1842 = vunpack.c.h.b16 %v1643
    %v1843 = vunpack.c.l.b16 %v1644
    %v1844 = vunpack.c.h.b16 %v1644
    %v1845 = vunpack.c.l.b16 %v1645
    %v1846 = vunpack.c.h.b16 %v1645
    %v1847 = vunpack.c.l.b16 %v1646
    %v1848 = vunpack.c.h.b16 %v1646
    %v1849 = vunpack.c.l.b16 %v1647
    %v1850 = vunpack.c.h.b16 %v1647
    %v1851 = vunpack.c.l.b16 %v1648
    %v1852 = vunpack.c.h.b16 %v1648
    %v1853 = vpack.c.b16 %v1727, %v1725
    %v1854 = vpack.c.b16 %v1728, %v1726
    %v1855 = vpack.c.b16 %v1731, %v1729
    %v1856 = vpack.c.b16 %v1732, %v1730
    %v1857 = vpack.c.b16 %v1735, %v1733
    %v1858 = vpack.c.b16 %v1736, %v1734
    %v1859 = vpack.c.b16 %v1739, %v1737
    %v1860 = vpack.c.b16 %v1740, %v1738
    %v1861 = vpack.c.b16 %v1743, %v1741
    %v1862 = vpack.c.b16 %v1744, %v1742
    %v1863 = vpack.c.b16 %v1747, %v1745
    %v1864 = vpack.c.b16 %v1748, %v1746
    %v1865 = vpack.c.b16 %v1751, %v1749
    %v1866 = vpack.c.b16 %v1752, %v1750
    %v1867 = vpack.c.b16 %v1755, %v1753
    %v1868 = vpack.c.b16 %v1756, %v1754
    %v1869 = vpack.c.b16 %v1759, %v1757
    %v1870 = vpack.c.b16 %v1760, %v1758
    %v1871 = vpack.c.b16 %v1763, %v1761
    %v1872 = vpack.c.b16 %v1764, %v1762
    %v1873 = vpack.c.b16 %v1767, %v1765
    %v1874 = vpack.c.b16 %v1768, %v1766
    %v1875 = vpack.c.b16 %v1771, %v1769
    %v1876 = vpack.c.b16 %v1772, %v1770
    %v1877 = vpack.c.b16 %v1775, %v1773
    %v1878 = vpack.c.b16 %v1776, %v1774
    %v1879 = vpack.c.b16 %v1779, %v1777
    %v1880 = vpack.c.b16 %v1780, %v1778
    %v1881 = vpack.c.b16 %v1783, %v1781
    %v1882 = vpack.c.b16 %v1784, %v1782
    %v1883 = vpack.c.b16 %v1787, %v1785
    %v1884 = vpack.c.b16 %v1788, %v1786
    %v1885 = vpack.c.b16 %v1791, %v1789
    %v1886 = vpack.c.b16 %v1792, %v1790
    %v1887 = vpack.c.b16 %v1795, %v1793
    %v1888 = vpack.c.b16 %v1796, %v1794
    %v1889 = vpack.c.b16 %v1799, %v1797
    %v1890 = vpack.c.b16 %v1800, %v1798
    %v1891 = vpack.c.b16 %v1803, %v1801
    %v1892 = vpack.c.b16 %v1804, %v1802
    %v1893 = vpack.c.b16 %v1807, %v1805
    %v1894 = vpack.c.b16 %v1808, %v1806
    %v1895 = vpack.c.b16 %v1811, %v1809
    %v1896 = vpack.c.b16 %v1812, %v1810
    %v1897 = vpack.c.b16 %v1815, %v1813
    %v1898 = vpack.c.b16 %v1816, %v1814
    %v1899 = vpack.c.b16 %v1819, %v1817
    %v1900 = vpack.c.b16 %v1820, %v1818
    %v1901 = vpack.c.b16 %v1823, %v1821
    %v1902 = vpack.c.b16 %v1824, %v1822
    %v1903 = vpack.c.b16 %v1827, %v1825
    %v1904 = vpack.c.b16 %v1828, %v1826
    %v1905 = vpack.c.b16 %v1831, %v1829
    %v1906 = vpack.c.b16 %v1832, %v1830
    %v1907 = vpack.c.b16 %v1835, %v1833
    %v1908 = vpack.c.b16 %v1836, %v1834
    %v1909 = vpack.c.b16 %v1839, %v1837
    %v1910 = vpack.c.b16 %v1840, %v1838
    %v1911 = vpack.c.b16 %v1843, %v1841
    %v1912 = vpack.c.b16 %v1844, %v1842
    %v1913 = vpack.c.b16 %v1847, %v1845
    %v1914 = vpack.c.b16 %v1848, %v1846
    %v1915 = vpack.c.b16 %v1851, %v1849
    %v1916 = vpack.c.b16 %v1852, %v1850
    %1981 = vmatprep.subr.bf16.mxu0 %v1868
    %1982 = vmatpush1.bf16.msra.mxu0 %v1867
    %1983 = vmatprep.subr.bf16.mxu0 %v1866
    %1984 = vmatpush1.bf16.msra.mxu0 %v1865
    %1985 = vmatprep.subr.bf16.mxu0 %v1864
    %1986 = vmatpush1.bf16.msra.mxu0 %v1863
    %1987 = vmatprep.subr.bf16.mxu0 %v1862
    %1988 = vmatpush1.bf16.msra.mxu0 %v1861
    %1989 = vmatprep.subr.bf16.mxu0 %v1860
    %1990 = vmatpush1.bf16.msra.mxu0 %v1859
    %1991 = vmatprep.subr.bf16.mxu0 %v1858
    %1992 = vmatpush1.bf16.msra.mxu0 %v1857
    %1993 = vmatprep.subr.bf16.mxu0 %v1856
    %1994 = vmatpush1.bf16.msra.mxu0 %v1855
    %1995 = vmatprep.subr.bf16.mxu0 %v1854
    %1996 = vmatpush1.bf16.msra.mxu0 %v1853
    %1997 = vmatprep.subr.bf16.mxu0 %v1884
    %1998 = vmatpush2.bf16.msra.mxu0 %v1883
    %1999 = vmatprep.subr.bf16.mxu0 %v1882
    %2000 = vmatpush2.bf16.msra.mxu0 %v1881
    %2001 = vmatprep.subr.bf16.mxu0 %v1880
    %2002 = vmatpush2.bf16.msra.mxu0 %v1879
    %2003 = vmatprep.subr.bf16.mxu0 %v1878
    %2004 = vmatpush2.bf16.msra.mxu0 %v1877
    %2005 = vmatprep.subr.bf16.mxu0 %v1876
    %2006 = vmatpush2.bf16.msra.mxu0 %v1875
    %2007 = vmatprep.subr.bf16.mxu0 %v1874
    %2008 = vmatpush2.bf16.msra.mxu0 %v1873
    %2009 = vmatprep.subr.bf16.mxu0 %v1872
    %2010 = vmatpush2.bf16.msra.mxu0 %v1871
    %2011 = vmatprep.subr.bf16.mxu0 %v1870
    %2012 = vmatpush2.bf16.msra.mxu0 %v1869
    %2013 = vmatprep.mubr.bf16.mxu0 %v1582
    %2014 = vmatmul.mubr.bf16.gmra.mxu0 %v1581
    %v2015 = vpop.f32.mrf.mxu0
    %v2016 = vadd.f32 %v1654, %v2015
    %v2017 = vpop.f32.mrf.mxu0
    %v2018 = vadd.f32 %v1658, %v2017
    %v2019 = vpop.f32.mrf.mxu0
    %v2020 = vpop.f32.mrf.mxu0
    %2021 = vdwg.mxu0
    %2022 = vmatprep.subr.bf16.mxu0 %v1900
    %2023 = vmatpush1.bf16.msra.mxu0 %v1899
    %2024 = vmatprep.subr.bf16.mxu0 %v1898
    %2025 = vmatpush1.bf16.msra.mxu0 %v1897
    %2026 = vmatprep.subr.bf16.mxu0 %v1896
    %2027 = vmatpush1.bf16.msra.mxu0 %v1895
    %2028 = vmatprep.subr.bf16.mxu0 %v1894
    %2029 = vmatpush1.bf16.msra.mxu0 %v1893
    %2030 = vmatprep.subr.bf16.mxu0 %v1892
    %2031 = vmatpush1.bf16.msra.mxu0 %v1891
    %2032 = vmatprep.subr.bf16.mxu0 %v1890
    %2033 = vmatpush1.bf16.msra.mxu0 %v1889
    %2034 = vmatprep.subr.bf16.mxu0 %v1888
    %2035 = vmatpush1.bf16.msra.mxu0 %v1887
    %2036 = vmatprep.subr.bf16.mxu0 %v1886
    %2037 = vmatpush1.bf16.msra.mxu0 %v1885
    %2038 = vmatprep.subr.bf16.mxu0 %v1916
    %2039 = vmatpush2.bf16.msra.mxu0 %v1915
    %2040 = vmatprep.subr.bf16.mxu0 %v1914
    %2041 = vmatpush2.bf16.msra.mxu0 %v1913
    %2042 = vmatprep.subr.bf16.mxu0 %v1912
    %2043 = vmatpush2.bf16.msra.mxu0 %v1911
    %2044 = vmatprep.subr.bf16.mxu0 %v1910
    %2045 = vmatpush2.bf16.msra.mxu0 %v1909
    %2046 = vmatprep.subr.bf16.mxu0 %v1908
    %2047 = vmatpush2.bf16.msra.mxu0 %v1907
    %2048 = vmatprep.subr.bf16.mxu0 %v1906
    %2049 = vmatpush2.bf16.msra.mxu0 %v1905
    %2050 = vmatprep.subr.bf16.mxu0 %v1904
    %2051 = vmatpush2.bf16.msra.mxu0 %v1903
    %2052 = vmatprep.subr.bf16.mxu0 %v1902
    %2053 = vmatpush2.bf16.msra.mxu0 %v1901
    %2054 = vmatprep.mubr.bf16.mxu0 %v1584
    %2055 = vmatmul.mubr.bf16.gmra.mxu0 %v1583
    %v2056 = vpop.f32.mrf.mxu0
    %v2057 = vadd.f32 %v2016, %v2056
    %v2058 = vpop.f32.mrf.mxu0
    %v2059 = vadd.f32 %v2018, %v2058
    %v2060 = vpop.f32.mrf.mxu0
    %v2061 = vpop.f32.mrf.mxu0
    %2062 = vdwg.mxu0
    %v2063 = vmax.f32 %v2057, 0.0
    %v2064 = vmax.f32 %v2059, 0.0
    %v2065 = vpack.c.bf16 %v2063, %v2063
    %v2066 = vpack.c.bf16 %v2064, %v2064
    %v2067 = vld [vmem:[#allocation14] sm:$0xf]
    %v2068 = vld [vmem:[#allocation14 + $0x4] sm:$0xf]
    %v2069 = vld [vmem:[#allocation14 + $0x8] sm:$0xf]
    %v2070 = vld [vmem:[#allocation14 + $0xc] sm:$0xf]
    %v2071 = vld [vmem:[#allocation14 + $0x10] sm:$0xf]
    %v2072 = vld [vmem:[#allocation14 + $0x14] sm:$0xf]
    %v2073 = vld [vmem:[#allocation14 + $0x18] sm:$0xf]
    %v2074 = vld [vmem:[#allocation14 + $0x1c] sm:$0xf]
    %v2075 = vld [vmem:[#allocation14 + $0x20] sm:$0xf]
    %v2076 = vld [vmem:[#allocation14 + $0x24] sm:$0xf]
    %v2077 = vld [vmem:[#allocation14 + $0x28] sm:$0xf]
    %v2078 = vld [vmem:[#allocation14 + $0x2c] sm:$0xf]
    %v2079 = vld [vmem:[#allocation14 + $0x30] sm:$0xf]
    %v2080 = vld [vmem:[#allocation14 + $0x34] sm:$0xf]
    %v2081 = vld [vmem:[#allocation14 + $0x38] sm:$0xf]
    %v2082 = vld [vmem:[#allocation14 + $0x3c] sm:$0xf]
    %v2083 = vld [vmem:[#allocation14 + $0x40] sm:$0xf]
    %v2084 = vld [vmem:[#allocation14 + $0x44] sm:$0xf]
    %v2085 = vld [vmem:[#allocation14 + $0x48] sm:$0xf]
    %v2086 = vld [vmem:[#allocation14 + $0x4c] sm:$0xf]
    %v2087 = vld [vmem:[#allocation14 + $0x50] sm:$0xf]
    %v2088 = vld [vmem:[#allocation14 + $0x54] sm:$0xf]
    %v2089 = vld [vmem:[#allocation14 + $0x58] sm:$0xf]
    %v2090 = vld [vmem:[#allocation14 + $0x5c] sm:$0xf]
    %v2091 = vld [vmem:[#allocation14 + $0x60] sm:$0xf]
    %v2092 = vld [vmem:[#allocation14 + $0x64] sm:$0xf]
    %v2093 = vld [vmem:[#allocation14 + $0x68] sm:$0xf]
    %v2094 = vld [vmem:[#allocation14 + $0x6c] sm:$0xf]
    %v2095 = vld [vmem:[#allocation14 + $0x70] sm:$0xf]
    %v2096 = vld [vmem:[#allocation14 + $0x74] sm:$0xf]
    %v2097 = vld [vmem:[#allocation14 + $0x78] sm:$0xf]
    %v2098 = vld [vmem:[#allocation14 + $0x7c] sm:$0xf]
    %v2099 = vld [vmem:[#allocation16] sm:$0x1]
    %v2101 = vlaneseq
    %v2102 = vshrl.u32 %v2101, 7
    %v2103 = vsub.s32 0, %v2102
    %v2104 = vrot.slane %v2099, %v2103
    %v2138 = vunpack.c.l.b16 %v2067
    %v2139 = vunpack.c.l.b16 %v2068
    %v2140 = vunpack.c.l.b16 %v2069
    %v2141 = vunpack.c.l.b16 %v2070
    %v2142 = vunpack.c.l.b16 %v2071
    %v2143 = vunpack.c.l.b16 %v2072
    %v2144 = vunpack.c.l.b16 %v2073
    %v2145 = vunpack.c.l.b16 %v2074
    %v2146 = vunpack.c.l.b16 %v2075
    %v2147 = vunpack.c.l.b16 %v2076
    %v2148 = vunpack.c.l.b16 %v2077
    %v2149 = vunpack.c.l.b16 %v2078
    %v2150 = vunpack.c.l.b16 %v2079
    %v2151 = vunpack.c.l.b16 %v2080
    %v2152 = vunpack.c.l.b16 %v2081
    %v2153 = vunpack.c.l.b16 %v2082
    %v2154 = vunpack.c.l.b16 %v2083
    %v2155 = vunpack.c.l.b16 %v2084
    %v2156 = vunpack.c.l.b16 %v2085
    %v2157 = vunpack.c.l.b16 %v2086
    %v2158 = vunpack.c.l.b16 %v2087
    %v2159 = vunpack.c.l.b16 %v2088
    %v2160 = vunpack.c.l.b16 %v2089
    %v2161 = vunpack.c.l.b16 %v2090
    %v2162 = vunpack.c.l.b16 %v2091
    %v2163 = vunpack.c.l.b16 %v2092
    %v2164 = vunpack.c.l.b16 %v2093
    %v2165 = vunpack.c.l.b16 %v2094
    %v2166 = vunpack.c.l.b16 %v2095
    %v2167 = vunpack.c.l.b16 %v2096
    %v2168 = vunpack.c.l.b16 %v2097
    %v2169 = vunpack.c.l.b16 %v2098
    %v2170 = vpack.c.b16 %v2139, %v2138
    %v2171 = vpack.c.b16 %v2141, %v2140
    %v2172 = vpack.c.b16 %v2143, %v2142
    %v2173 = vpack.c.b16 %v2145, %v2144
    %v2174 = vpack.c.b16 %v2147, %v2146
    %v2175 = vpack.c.b16 %v2149, %v2148
    %v2176 = vpack.c.b16 %v2151, %v2150
    %v2177 = vpack.c.b16 %v2153, %v2152
    %v2178 = vpack.c.b16 %v2155, %v2154
    %v2179 = vpack.c.b16 %v2157, %v2156
    %v2180 = vpack.c.b16 %v2159, %v2158
    %v2181 = vpack.c.b16 %v2161, %v2160
    %v2182 = vpack.c.b16 %v2163, %v2162
    %v2183 = vpack.c.b16 %v2165, %v2164
    %v2184 = vpack.c.b16 %v2167, %v2166
    %v2185 = vpack.c.b16 %v2169, %v2168
    %2202 = vmatprep.subr.bf16.mxu0 0
    %2203 = vmatpush1.bf16.msra.mxu0 %v2177
    %2204 = vmatprep.subr.bf16.mxu0 0
    %2205 = vmatpush1.bf16.msra.mxu0 %v2176
    %2206 = vmatprep.subr.bf16.mxu0 0
    %2207 = vmatpush1.bf16.msra.mxu0 %v2175
    %2208 = vmatprep.subr.bf16.mxu0 0
    %2209 = vmatpush1.bf16.msra.mxu0 %v2174
    %2210 = vmatprep.subr.bf16.mxu0 0
    %2211 = vmatpush1.bf16.msra.mxu0 %v2173
    %2212 = vmatprep.subr.bf16.mxu0 0
    %2213 = vmatpush1.bf16.msra.mxu0 %v2172
    %2214 = vmatprep.subr.bf16.mxu0 0
    %2215 = vmatpush1.bf16.msra.mxu0 %v2171
    %2216 = vmatprep.subr.bf16.mxu0 0
    %2217 = vmatpush1.bf16.msra.mxu0 %v2170
    %2218 = vmatprep.subr.bf16.mxu0 0
    %2219 = vmatpush2.bf16.msra.mxu0 %v2185
    %2220 = vmatprep.subr.bf16.mxu0 0
    %2221 = vmatpush2.bf16.msra.mxu0 %v2184
    %2222 = vmatprep.subr.bf16.mxu0 0
    %2223 = vmatpush2.bf16.msra.mxu0 %v2183
    %2224 = vmatprep.subr.bf16.mxu0 0
    %2225 = vmatpush2.bf16.msra.mxu0 %v2182
    %2226 = vmatprep.subr.bf16.mxu0 0
    %2227 = vmatpush2.bf16.msra.mxu0 %v2181
    %2228 = vmatprep.subr.bf16.mxu0 0
    %2229 = vmatpush2.bf16.msra.mxu0 %v2180
    %2230 = vmatprep.subr.bf16.mxu0 0
    %2231 = vmatpush2.bf16.msra.mxu0 %v2179
    %2232 = vmatprep.subr.bf16.mxu0 0
    %2233 = vmatpush2.bf16.msra.mxu0 %v2178
    %2234 = vmatprep.mubr.bf16.mxu0 %v2066
    %2235 = vmatmul.mubr.bf16.gmra.mxu0 %v2065
    %v2236 = vpop.f32.mrf.mxu0
    %v2237 = vadd.f32 %v2104, %v2236
    %v2238 = vpop.f32.mrf.mxu0
    %v2239 = vpop.f32.mrf.mxu0
    %v2240 = vpop.f32.mrf.mxu0
    %2241 = vdwg.mxu0
    %v2242 = vsel %vm310, %v2237, -1e+30
    %2243 = vmax.xlane.f32.xlu0 %v2242
    %v2244 = vpop.xlane.xlu0 %2243
    %v2245 = vsub.f32 %v2242, %v2244
    %v2246 = vmul.f32 %v2245, 1.442695
    %v2247 = vpow.pop %v2246
    %v2248 = vsel %vm310, %v2247, 0.0
    %2249 = vadd.xlane.f32.xlu0 %v2248
    %v2250 = vpop.xlane.xlu0 %2249
    %v2251 = vrcp.pop %v2250
    %v2252 = vmul.f32 %v2248, %v2251
    %v2253 = vld [vmem:[#allocation5] sm:$0xff]
    %v2254 = vmul.f32 %v2253, %v2253
    %2255 = vadd.xlane.f32.xlu0 %v2254
    %v2256 = vpop.xlane.xlu0 %2255
    %v2257 = vmax.f32 %v2256, 1e-24
    %v2258 = vrsqrt.pop %v2257
    %v2259 = vmul.f32 %v2253, %v2258
    %v2260 = vpack.c.bf16 %v2259, %v2259
    %v2261 = vld [vmem:[#allocation17] sm:$0xff]
    %v2262 = vld [vmem:[#allocation17 + $0x8] sm:$0xff]
    %v2263 = vld [vmem:[#allocation17 + $0x10] sm:$0xff]
    %v2264 = vld [vmem:[#allocation17 + $0x18] sm:$0xff]
    %v2265 = vld [vmem:[#allocation17 + $0x20] sm:$0xff]
    %v2266 = vld [vmem:[#allocation17 + $0x28] sm:$0xff]
    %v2267 = vld [vmem:[#allocation17 + $0x30] sm:$0xff]
    %v2268 = vld [vmem:[#allocation17 + $0x38] sm:$0xff]
    %v2269 = vld [vmem:[#allocation17 + $0x40] sm:$0xff]
    %v2270 = vld [vmem:[#allocation17 + $0x48] sm:$0xff]
    %v2271 = vld [vmem:[#allocation17 + $0x50] sm:$0xff]
    %v2272 = vld [vmem:[#allocation17 + $0x58] sm:$0xff]
    %v2273 = vld [vmem:[#allocation17 + $0x60] sm:$0xff]
    %v2274 = vld [vmem:[#allocation17 + $0x68] sm:$0xff]
    %v2275 = vld [vmem:[#allocation17 + $0x70] sm:$0xff]
    %v2276 = vld [vmem:[#allocation17 + $0x78] sm:$0xff]
    %v2277 = vld [vmem:[#allocation17 + $0x80] sm:$0xff]
    %v2278 = vld [vmem:[#allocation17 + $0x88] sm:$0xff]
    %v2279 = vld [vmem:[#allocation17 + $0x90] sm:$0xff]
    %v2280 = vld [vmem:[#allocation17 + $0x98] sm:$0xff]
    %v2281 = vld [vmem:[#allocation17 + $0xa0] sm:$0xff]
    %v2282 = vld [vmem:[#allocation17 + $0xa8] sm:$0xff]
    %v2283 = vld [vmem:[#allocation17 + $0xb0] sm:$0xff]
    %v2284 = vld [vmem:[#allocation17 + $0xb8] sm:$0xff]
    %v2285 = vld [vmem:[#allocation17 + $0xc0] sm:$0xff]
    %v2286 = vld [vmem:[#allocation17 + $0xc8] sm:$0xff]
    %v2287 = vld [vmem:[#allocation17 + $0xd0] sm:$0xff]
    %v2288 = vld [vmem:[#allocation17 + $0xd8] sm:$0xff]
    %v2289 = vld [vmem:[#allocation17 + $0xe0] sm:$0xff]
    %v2290 = vld [vmem:[#allocation17 + $0xe8] sm:$0xff]
    %v2291 = vld [vmem:[#allocation17 + $0xf0] sm:$0xff]
    %v2292 = vld [vmem:[#allocation17 + $0xf8] sm:$0xff]
    %v2293 = vld [vmem:[%s12] sm:$0xf]
    %v2295 = vlaneseq
    %v2296 = vshrl.u32 %v2295, 7
    %v2297 = vsub.s32 0, %v2296
    %v2298 = vrot.slane %v2293, %v2297
    %v2299 = vlaneseq
    %v2300 = vshrl.u32 %v2299, 7
    %v2301 = vsub.s32 1, %v2300
    %v2302 = vrot.slane %v2293, %v2301
    %v2303 = vlaneseq
    %v2304 = vshrl.u32 %v2303, 7
    %v2305 = vsub.s32 2, %v2304
    %v2306 = vrot.slane %v2293, %v2305
    %v2307 = vlaneseq
    %v2308 = vshrl.u32 %v2307, 7
    %v2309 = vsub.s32 3, %v2308
    %v2310 = vrot.slane %v2293, %v2309
    %v2347 = vunpack.c.l.b16 %v2261
    %v2348 = vunpack.c.h.b16 %v2261
    %v2349 = vunpack.c.l.b16 %v2262
    %v2350 = vunpack.c.h.b16 %v2262
    %v2351 = vunpack.c.l.b16 %v2263
    %v2352 = vunpack.c.h.b16 %v2263
    %v2353 = vunpack.c.l.b16 %v2264
    %v2354 = vunpack.c.h.b16 %v2264
    %v2355 = vunpack.c.l.b16 %v2265
    %v2356 = vunpack.c.h.b16 %v2265
    %v2357 = vunpack.c.l.b16 %v2266
    %v2358 = vunpack.c.h.b16 %v2266
    %v2359 = vunpack.c.l.b16 %v2267
    %v2360 = vunpack.c.h.b16 %v2267
    %v2361 = vunpack.c.l.b16 %v2268
    %v2362 = vunpack.c.h.b16 %v2268
    %v2363 = vunpack.c.l.b16 %v2269
    %v2364 = vunpack.c.h.b16 %v2269
    %v2365 = vunpack.c.l.b16 %v2270
    %v2366 = vunpack.c.h.b16 %v2270
    %v2367 = vunpack.c.l.b16 %v2271
    %v2368 = vunpack.c.h.b16 %v2271
    %v2369 = vunpack.c.l.b16 %v2272
    %v2370 = vunpack.c.h.b16 %v2272
    %v2371 = vunpack.c.l.b16 %v2273
    %v2372 = vunpack.c.h.b16 %v2273
    %v2373 = vunpack.c.l.b16 %v2274
    %v2374 = vunpack.c.h.b16 %v2274
    %v2375 = vunpack.c.l.b16 %v2275
    %v2376 = vunpack.c.h.b16 %v2275
    %v2377 = vunpack.c.l.b16 %v2276
    %v2378 = vunpack.c.h.b16 %v2276
    %v2379 = vunpack.c.l.b16 %v2277
    %v2380 = vunpack.c.h.b16 %v2277
    %v2381 = vunpack.c.l.b16 %v2278
    %v2382 = vunpack.c.h.b16 %v2278
    %v2383 = vunpack.c.l.b16 %v2279
    %v2384 = vunpack.c.h.b16 %v2279
    %v2385 = vunpack.c.l.b16 %v2280
    %v2386 = vunpack.c.h.b16 %v2280
    %v2387 = vunpack.c.l.b16 %v2281
    %v2388 = vunpack.c.h.b16 %v2281
    %v2389 = vunpack.c.l.b16 %v2282
    %v2390 = vunpack.c.h.b16 %v2282
    %v2391 = vunpack.c.l.b16 %v2283
    %v2392 = vunpack.c.h.b16 %v2283
    %v2393 = vunpack.c.l.b16 %v2284
    %v2394 = vunpack.c.h.b16 %v2284
    %v2395 = vunpack.c.l.b16 %v2285
    %v2396 = vunpack.c.h.b16 %v2285
    %v2397 = vunpack.c.l.b16 %v2286
    %v2398 = vunpack.c.h.b16 %v2286
    %v2399 = vunpack.c.l.b16 %v2287
    %v2400 = vunpack.c.h.b16 %v2287
    %v2401 = vunpack.c.l.b16 %v2288
    %v2402 = vunpack.c.h.b16 %v2288
    %v2403 = vunpack.c.l.b16 %v2289
    %v2404 = vunpack.c.h.b16 %v2289
    %v2405 = vunpack.c.l.b16 %v2290
    %v2406 = vunpack.c.h.b16 %v2290
    %v2407 = vunpack.c.l.b16 %v2291
    %v2408 = vunpack.c.h.b16 %v2291
    %v2409 = vunpack.c.l.b16 %v2292
    %v2410 = vunpack.c.h.b16 %v2292
    %v2411 = vpack.c.b16 %v2351, %v2347
    %v2412 = vpack.c.b16 %v2352, %v2348
    %v2413 = vpack.c.b16 %v2353, %v2349
    %v2414 = vpack.c.b16 %v2354, %v2350
    %v2415 = vpack.c.b16 %v2359, %v2355
    %v2416 = vpack.c.b16 %v2360, %v2356
    %v2417 = vpack.c.b16 %v2361, %v2357
    %v2418 = vpack.c.b16 %v2362, %v2358
    %v2419 = vpack.c.b16 %v2367, %v2363
    %v2420 = vpack.c.b16 %v2368, %v2364
    %v2421 = vpack.c.b16 %v2369, %v2365
    %v2422 = vpack.c.b16 %v2370, %v2366
    %v2423 = vpack.c.b16 %v2375, %v2371
    %v2424 = vpack.c.b16 %v2376, %v2372
    %v2425 = vpack.c.b16 %v2377, %v2373
    %v2426 = vpack.c.b16 %v2378, %v2374
    %v2427 = vpack.c.b16 %v2383, %v2379
    %v2428 = vpack.c.b16 %v2384, %v2380
    %v2429 = vpack.c.b16 %v2385, %v2381
    %v2430 = vpack.c.b16 %v2386, %v2382
    %v2431 = vpack.c.b16 %v2391, %v2387
    %v2432 = vpack.c.b16 %v2392, %v2388
    %v2433 = vpack.c.b16 %v2393, %v2389
    %v2434 = vpack.c.b16 %v2394, %v2390
    %v2435 = vpack.c.b16 %v2399, %v2395
    %v2436 = vpack.c.b16 %v2400, %v2396
    %v2437 = vpack.c.b16 %v2401, %v2397
    %v2438 = vpack.c.b16 %v2402, %v2398
    %v2439 = vpack.c.b16 %v2407, %v2403
    %v2440 = vpack.c.b16 %v2408, %v2404
    %v2441 = vpack.c.b16 %v2409, %v2405
    %v2442 = vpack.c.b16 %v2410, %v2406
    %2475 = vmatprep.subr.bf16.mxu0 %v2440
    %2476 = vmatpush1.bf16.msra.mxu0 %v2439
    %2477 = vmatprep.subr.bf16.mxu0 %v2436
    %2478 = vmatpush1.bf16.msra.mxu0 %v2435
    %2479 = vmatprep.subr.bf16.mxu0 %v2432
    %2480 = vmatpush1.bf16.msra.mxu0 %v2431
    %2481 = vmatprep.subr.bf16.mxu0 %v2428
    %2482 = vmatpush1.bf16.msra.mxu0 %v2427
    %2483 = vmatprep.subr.bf16.mxu0 %v2424
    %2484 = vmatpush1.bf16.msra.mxu0 %v2423
    %2485 = vmatprep.subr.bf16.mxu0 %v2420
    %2486 = vmatpush1.bf16.msra.mxu0 %v2419
    %2487 = vmatprep.subr.bf16.mxu0 %v2416
    %2488 = vmatpush1.bf16.msra.mxu0 %v2415
    %2489 = vmatprep.subr.bf16.mxu0 %v2412
    %2490 = vmatpush1.bf16.msra.mxu0 %v2411
    %2491 = vmatprep.subr.bf16.mxu0 0
    %2492 = vmatpush2.bf16.msra.mxu0 0
    %2493 = vmatprep.subr.bf16.mxu0 0
    %2494 = vmatpush2.bf16.msra.mxu0 0
    %2495 = vmatprep.subr.bf16.mxu0 0
    %2496 = vmatpush2.bf16.msra.mxu0 0
    %2497 = vmatprep.subr.bf16.mxu0 0
    %2498 = vmatpush2.bf16.msra.mxu0 0
    %2499 = vmatprep.subr.bf16.mxu0 0
    %2500 = vmatpush2.bf16.msra.mxu0 0
    %2501 = vmatprep.subr.bf16.mxu0 0
    %2502 = vmatpush2.bf16.msra.mxu0 0
    %2503 = vmatprep.subr.bf16.mxu0 0
    %2504 = vmatpush2.bf16.msra.mxu0 0
    %2505 = vmatprep.subr.bf16.mxu0 0
    %2506 = vmatpush2.bf16.msra.mxu0 0
    %2507 = vmatprep.mubr.bf16.mxu0 0
    %2508 = vmatmul.mubr.bf16.gmra.mxu0 %v2260
    %v2509 = vpop.f32.mrf.mxu0
    %v2510 = vadd.f32 %v2298, %v2509
    %v2511 = vpop.f32.mrf.mxu0
    %v2512 = vadd.f32 %v2302, %v2511
    %v2513 = vpop.f32.mrf.mxu0
    %v2514 = vpop.f32.mrf.mxu0
    %2515 = vdwg.mxu0
    %2516 = vmatprep.subr.bf16.mxu0 %v2442
    %2517 = vmatpush1.bf16.msra.mxu0 %v2441
    %2518 = vmatprep.subr.bf16.mxu0 %v2438
    %2519 = vmatpush1.bf16.msra.mxu0 %v2437
    %2520 = vmatprep.subr.bf16.mxu0 %v2434
    %2521 = vmatpush1.bf16.msra.mxu0 %v2433
    %2522 = vmatprep.subr.bf16.mxu0 %v2430
    %2523 = vmatpush1.bf16.msra.mxu0 %v2429
    %2524 = vmatprep.subr.bf16.mxu0 %v2426
    %2525 = vmatpush1.bf16.msra.mxu0 %v2425
    %2526 = vmatprep.subr.bf16.mxu0 %v2422
    %2527 = vmatpush1.bf16.msra.mxu0 %v2421
    %2528 = vmatprep.subr.bf16.mxu0 %v2418
    %2529 = vmatpush1.bf16.msra.mxu0 %v2417
    %2530 = vmatprep.subr.bf16.mxu0 %v2414
    %2531 = vmatpush1.bf16.msra.mxu0 %v2413
    %2532 = vmatprep.subr.bf16.mxu0 0
    %2533 = vmatpush2.bf16.msra.mxu0 0
    %2534 = vmatprep.subr.bf16.mxu0 0
    %2535 = vmatpush2.bf16.msra.mxu0 0
    %2536 = vmatprep.subr.bf16.mxu0 0
    %2537 = vmatpush2.bf16.msra.mxu0 0
    %2538 = vmatprep.subr.bf16.mxu0 0
    %2539 = vmatpush2.bf16.msra.mxu0 0
    %2540 = vmatprep.subr.bf16.mxu0 0
    %2541 = vmatpush2.bf16.msra.mxu0 0
    %2542 = vmatprep.subr.bf16.mxu0 0
    %2543 = vmatpush2.bf16.msra.mxu0 0
    %2544 = vmatprep.subr.bf16.mxu0 0
    %2545 = vmatpush2.bf16.msra.mxu0 0
    %2546 = vmatprep.subr.bf16.mxu0 0
    %2547 = vmatpush2.bf16.msra.mxu0 0
    %2548 = vmatprep.mubr.bf16.mxu0 0
    %2549 = vmatmul.mubr.bf16.gmra.mxu0 %v2260
    %v2550 = vpop.f32.mrf.mxu0
    %v2551 = vadd.f32 %v2306, %v2550
    %v2552 = vpop.f32.mrf.mxu0
    %v2553 = vadd.f32 %v2310, %v2552
    %v2554 = vpop.f32.mrf.mxu0
    %v2555 = vpop.f32.mrf.mxu0
    %2556 = vdwg.mxu0
    %v2557 = vmax.f32 %v2510, 0.0
    %v2558 = vmax.f32 %v2512, 0.0
    %v2559 = vmax.f32 %v2551, 0.0
    %v2560 = vmax.f32 %v2553, 0.0
    %v2561 = vpack.c.bf16 %v2557, %v2557
    %v2562 = vpack.c.bf16 %v2558, %v2558
    %v2563 = vpack.c.bf16 %v2559, %v2559
    %v2564 = vpack.c.bf16 %v2560, %v2560
    %v2565 = vld [vmem:[#allocation19] sm:$0xff]
    %v2566 = vld [vmem:[#allocation19 + $0x8] sm:$0xff]
    %v2567 = vld [vmem:[#allocation19 + $0x10] sm:$0xff]
    %v2568 = vld [vmem:[#allocation19 + $0x18] sm:$0xff]
    %v2569 = vld [vmem:[#allocation19 + $0x20] sm:$0xff]
    %v2570 = vld [vmem:[#allocation19 + $0x28] sm:$0xff]
    %v2571 = vld [vmem:[#allocation19 + $0x30] sm:$0xff]
    %v2572 = vld [vmem:[#allocation19 + $0x38] sm:$0xff]
    %v2573 = vld [vmem:[#allocation19 + $0x40] sm:$0xff]
    %v2574 = vld [vmem:[#allocation19 + $0x48] sm:$0xff]
    %v2575 = vld [vmem:[#allocation19 + $0x50] sm:$0xff]
    %v2576 = vld [vmem:[#allocation19 + $0x58] sm:$0xff]
    %v2577 = vld [vmem:[#allocation19 + $0x60] sm:$0xff]
    %v2578 = vld [vmem:[#allocation19 + $0x68] sm:$0xff]
    %v2579 = vld [vmem:[#allocation19 + $0x70] sm:$0xff]
    %v2580 = vld [vmem:[#allocation19 + $0x78] sm:$0xff]
    %v2581 = vld [vmem:[#allocation19 + $0x80] sm:$0xff]
    %v2582 = vld [vmem:[#allocation19 + $0x88] sm:$0xff]
    %v2583 = vld [vmem:[#allocation19 + $0x90] sm:$0xff]
    %v2584 = vld [vmem:[#allocation19 + $0x98] sm:$0xff]
    %v2585 = vld [vmem:[#allocation19 + $0xa0] sm:$0xff]
    %v2586 = vld [vmem:[#allocation19 + $0xa8] sm:$0xff]
    %v2587 = vld [vmem:[#allocation19 + $0xb0] sm:$0xff]
    %v2588 = vld [vmem:[#allocation19 + $0xb8] sm:$0xff]
    %v2589 = vld [vmem:[#allocation19 + $0xc0] sm:$0xff]
    %v2590 = vld [vmem:[#allocation19 + $0xc8] sm:$0xff]
    %v2591 = vld [vmem:[#allocation19 + $0xd0] sm:$0xff]
    %v2592 = vld [vmem:[#allocation19 + $0xd8] sm:$0xff]
    %v2593 = vld [vmem:[#allocation19 + $0xe0] sm:$0xff]
    %v2594 = vld [vmem:[#allocation19 + $0xe8] sm:$0xff]
    %v2595 = vld [vmem:[#allocation19 + $0xf0] sm:$0xff]
    %v2596 = vld [vmem:[#allocation19 + $0xf8] sm:$0xff]
    %v2597 = vld [vmem:[#allocation19 + $0x100] sm:$0xff]
    %v2598 = vld [vmem:[#allocation19 + $0x108] sm:$0xff]
    %v2599 = vld [vmem:[#allocation19 + $0x110] sm:$0xff]
    %v2600 = vld [vmem:[#allocation19 + $0x118] sm:$0xff]
    %v2601 = vld [vmem:[#allocation19 + $0x120] sm:$0xff]
    %v2602 = vld [vmem:[#allocation19 + $0x128] sm:$0xff]
    %v2603 = vld [vmem:[#allocation19 + $0x130] sm:$0xff]
    %v2604 = vld [vmem:[#allocation19 + $0x138] sm:$0xff]
    %v2605 = vld [vmem:[#allocation19 + $0x140] sm:$0xff]
    %v2606 = vld [vmem:[#allocation19 + $0x148] sm:$0xff]
    %v2607 = vld [vmem:[#allocation19 + $0x150] sm:$0xff]
    %v2608 = vld [vmem:[#allocation19 + $0x158] sm:$0xff]
    %v2609 = vld [vmem:[#allocation19 + $0x160] sm:$0xff]
    %v2610 = vld [vmem:[#allocation19 + $0x168] sm:$0xff]
    %v2611 = vld [vmem:[#allocation19 + $0x170] sm:$0xff]
    %v2612 = vld [vmem:[#allocation19 + $0x178] sm:$0xff]
    %v2613 = vld [vmem:[#allocation19 + $0x180] sm:$0xff]
    %v2614 = vld [vmem:[#allocation19 + $0x188] sm:$0xff]
    %v2615 = vld [vmem:[#allocation19 + $0x190] sm:$0xff]
    %v2616 = vld [vmem:[#allocation19 + $0x198] sm:$0xff]
    %v2617 = vld [vmem:[#allocation19 + $0x1a0] sm:$0xff]
    %v2618 = vld [vmem:[#allocation19 + $0x1a8] sm:$0xff]
    %v2619 = vld [vmem:[#allocation19 + $0x1b0] sm:$0xff]
    %v2620 = vld [vmem:[#allocation19 + $0x1b8] sm:$0xff]
    %v2621 = vld [vmem:[#allocation19 + $0x1c0] sm:$0xff]
    %v2622 = vld [vmem:[#allocation19 + $0x1c8] sm:$0xff]
    %v2623 = vld [vmem:[#allocation19 + $0x1d0] sm:$0xff]
    %v2624 = vld [vmem:[#allocation19 + $0x1d8] sm:$0xff]
    %v2625 = vld [vmem:[#allocation19 + $0x1e0] sm:$0xff]
    %v2626 = vld [vmem:[#allocation19 + $0x1e8] sm:$0xff]
    %v2627 = vld [vmem:[#allocation19 + $0x1f0] sm:$0xff]
    %v2628 = vld [vmem:[#allocation19 + $0x1f8] sm:$0xff]
    %v2629 = vld [vmem:[#allocation19 + $0x200] sm:$0xff]
    %v2630 = vld [vmem:[#allocation19 + $0x208] sm:$0xff]
    %v2631 = vld [vmem:[#allocation19 + $0x210] sm:$0xff]
    %v2632 = vld [vmem:[#allocation19 + $0x218] sm:$0xff]
    %v2633 = vld [vmem:[#allocation19 + $0x220] sm:$0xff]
    %v2634 = vld [vmem:[#allocation19 + $0x228] sm:$0xff]
    %v2635 = vld [vmem:[#allocation19 + $0x230] sm:$0xff]
    %v2636 = vld [vmem:[#allocation19 + $0x238] sm:$0xff]
    %v2637 = vld [vmem:[#allocation19 + $0x240] sm:$0xff]
    %v2638 = vld [vmem:[#allocation19 + $0x248] sm:$0xff]
    %v2639 = vld [vmem:[#allocation19 + $0x250] sm:$0xff]
    %v2640 = vld [vmem:[#allocation19 + $0x258] sm:$0xff]
    %v2641 = vld [vmem:[#allocation19 + $0x260] sm:$0xff]
    %v2642 = vld [vmem:[#allocation19 + $0x268] sm:$0xff]
    %v2643 = vld [vmem:[#allocation19 + $0x270] sm:$0xff]
    %v2644 = vld [vmem:[#allocation19 + $0x278] sm:$0xff]
    %v2645 = vld [vmem:[#allocation19 + $0x280] sm:$0xff]
    %v2646 = vld [vmem:[#allocation19 + $0x288] sm:$0xff]
    %v2647 = vld [vmem:[#allocation19 + $0x290] sm:$0xff]
    %v2648 = vld [vmem:[#allocation19 + $0x298] sm:$0xff]
    %v2649 = vld [vmem:[#allocation19 + $0x2a0] sm:$0xff]
    %v2650 = vld [vmem:[#allocation19 + $0x2a8] sm:$0xff]
    %v2651 = vld [vmem:[#allocation19 + $0x2b0] sm:$0xff]
    %v2652 = vld [vmem:[#allocation19 + $0x2b8] sm:$0xff]
    %v2653 = vld [vmem:[#allocation19 + $0x2c0] sm:$0xff]
    %v2654 = vld [vmem:[#allocation19 + $0x2c8] sm:$0xff]
    %v2655 = vld [vmem:[#allocation19 + $0x2d0] sm:$0xff]
    %v2656 = vld [vmem:[#allocation19 + $0x2d8] sm:$0xff]
    %v2657 = vld [vmem:[#allocation19 + $0x2e0] sm:$0xff]
    %v2658 = vld [vmem:[#allocation19 + $0x2e8] sm:$0xff]
    %v2659 = vld [vmem:[#allocation19 + $0x2f0] sm:$0xff]
    %v2660 = vld [vmem:[#allocation19 + $0x2f8] sm:$0xff]
    %v2661 = vld [vmem:[#allocation19 + $0x300] sm:$0xff]
    %v2662 = vld [vmem:[#allocation19 + $0x308] sm:$0xff]
    %v2663 = vld [vmem:[#allocation19 + $0x310] sm:$0xff]
    %v2664 = vld [vmem:[#allocation19 + $0x318] sm:$0xff]
    %v2665 = vld [vmem:[#allocation19 + $0x320] sm:$0xff]
    %v2666 = vld [vmem:[#allocation19 + $0x328] sm:$0xff]
    %v2667 = vld [vmem:[#allocation19 + $0x330] sm:$0xff]
    %v2668 = vld [vmem:[#allocation19 + $0x338] sm:$0xff]
    %v2669 = vld [vmem:[#allocation19 + $0x340] sm:$0xff]
    %v2670 = vld [vmem:[#allocation19 + $0x348] sm:$0xff]
    %v2671 = vld [vmem:[#allocation19 + $0x350] sm:$0xff]
    %v2672 = vld [vmem:[#allocation19 + $0x358] sm:$0xff]
    %v2673 = vld [vmem:[#allocation19 + $0x360] sm:$0xff]
    %v2674 = vld [vmem:[#allocation19 + $0x368] sm:$0xff]
    %v2675 = vld [vmem:[#allocation19 + $0x370] sm:$0xff]
    %v2676 = vld [vmem:[#allocation19 + $0x378] sm:$0xff]
    %v2677 = vld [vmem:[#allocation19 + $0x380] sm:$0xff]
    %v2678 = vld [vmem:[#allocation19 + $0x388] sm:$0xff]
    %v2679 = vld [vmem:[#allocation19 + $0x390] sm:$0xff]
    %v2680 = vld [vmem:[#allocation19 + $0x398] sm:$0xff]
    %v2681 = vld [vmem:[#allocation19 + $0x3a0] sm:$0xff]
    %v2682 = vld [vmem:[#allocation19 + $0x3a8] sm:$0xff]
    %v2683 = vld [vmem:[#allocation19 + $0x3b0] sm:$0xff]
    %v2684 = vld [vmem:[#allocation19 + $0x3b8] sm:$0xff]
    %v2685 = vld [vmem:[#allocation19 + $0x3c0] sm:$0xff]
    %v2686 = vld [vmem:[#allocation19 + $0x3c8] sm:$0xff]
    %v2687 = vld [vmem:[#allocation19 + $0x3d0] sm:$0xff]
    %v2688 = vld [vmem:[#allocation19 + $0x3d8] sm:$0xff]
    %v2689 = vld [vmem:[#allocation19 + $0x3e0] sm:$0xff]
    %v2690 = vld [vmem:[#allocation19 + $0x3e8] sm:$0xff]
    %v2691 = vld [vmem:[#allocation19 + $0x3f0] sm:$0xff]
    %v2692 = vld [vmem:[#allocation19 + $0x3f8] sm:$0xff]
    %v2693 = vld [vmem:[%s14] sm:$0xf]
    %v2695 = vlaneseq
    %v2696 = vshrl.u32 %v2695, 7
    %v2697 = vsub.s32 0, %v2696
    %v2698 = vrot.slane %v2693, %v2697
    %v2699 = vlaneseq
    %v2700 = vshrl.u32 %v2699, 7
    %v2701 = vsub.s32 1, %v2700
    %v2702 = vrot.slane %v2693, %v2701
    %v2703 = vlaneseq
    %v2704 = vshrl.u32 %v2703, 7
    %v2705 = vsub.s32 2, %v2704
    %v2706 = vrot.slane %v2693, %v2705
    %v2707 = vlaneseq
    %v2708 = vshrl.u32 %v2707, 7
    %v2709 = vsub.s32 3, %v2708
    %v2710 = vrot.slane %v2693, %v2709
    %v2843 = vunpack.c.l.b16 %v2565
    %v2844 = vunpack.c.h.b16 %v2565
    %v2845 = vunpack.c.l.b16 %v2566
    %v2846 = vunpack.c.h.b16 %v2566
    %v2847 = vunpack.c.l.b16 %v2567
    %v2848 = vunpack.c.h.b16 %v2567
    %v2849 = vunpack.c.l.b16 %v2568
    %v2850 = vunpack.c.h.b16 %v2568
    %v2851 = vunpack.c.l.b16 %v2569
    %v2852 = vunpack.c.h.b16 %v2569
    %v2853 = vunpack.c.l.b16 %v2570
    %v2854 = vunpack.c.h.b16 %v2570
    %v2855 = vunpack.c.l.b16 %v2571
    %v2856 = vunpack.c.h.b16 %v2571
    %v2857 = vunpack.c.l.b16 %v2572
    %v2858 = vunpack.c.h.b16 %v2572
    %v2859 = vunpack.c.l.b16 %v2573
    %v2860 = vunpack.c.h.b16 %v2573
    %v2861 = vunpack.c.l.b16 %v2574
    %v2862 = vunpack.c.h.b16 %v2574
    %v2863 = vunpack.c.l.b16 %v2575
    %v2864 = vunpack.c.h.b16 %v2575
    %v2865 = vunpack.c.l.b16 %v2576
    %v2866 = vunpack.c.h.b16 %v2576
    %v2867 = vunpack.c.l.b16 %v2577
    %v2868 = vunpack.c.h.b16 %v2577
    %v2869 = vunpack.c.l.b16 %v2578
    %v2870 = vunpack.c.h.b16 %v2578
    %v2871 = vunpack.c.l.b16 %v2579
    %v2872 = vunpack.c.h.b16 %v2579
    %v2873 = vunpack.c.l.b16 %v2580
    %v2874 = vunpack.c.h.b16 %v2580
    %v2875 = vunpack.c.l.b16 %v2581
    %v2876 = vunpack.c.h.b16 %v2581
    %v2877 = vunpack.c.l.b16 %v2582
    %v2878 = vunpack.c.h.b16 %v2582
    %v2879 = vunpack.c.l.b16 %v2583
    %v2880 = vunpack.c.h.b16 %v2583
    %v2881 = vunpack.c.l.b16 %v2584
    %v2882 = vunpack.c.h.b16 %v2584
    %v2883 = vunpack.c.l.b16 %v2585
    %v2884 = vunpack.c.h.b16 %v2585
    %v2885 = vunpack.c.l.b16 %v2586
    %v2886 = vunpack.c.h.b16 %v2586
    %v2887 = vunpack.c.l.b16 %v2587
    %v2888 = vunpack.c.h.b16 %v2587
    %v2889 = vunpack.c.l.b16 %v2588
    %v2890 = vunpack.c.h.b16 %v2588
    %v2891 = vunpack.c.l.b16 %v2589
    %v2892 = vunpack.c.h.b16 %v2589
    %v2893 = vunpack.c.l.b16 %v2590
    %v2894 = vunpack.c.h.b16 %v2590
    %v2895 = vunpack.c.l.b16 %v2591
    %v2896 = vunpack.c.h.b16 %v2591
    %v2897 = vunpack.c.l.b16 %v2592
    %v2898 = vunpack.c.h.b16 %v2592
    %v2899 = vunpack.c.l.b16 %v2593
    %v2900 = vunpack.c.h.b16 %v2593
    %v2901 = vunpack.c.l.b16 %v2594
    %v2902 = vunpack.c.h.b16 %v2594
    %v2903 = vunpack.c.l.b16 %v2595
    %v2904 = vunpack.c.h.b16 %v2595
    %v2905 = vunpack.c.l.b16 %v2596
    %v2906 = vunpack.c.h.b16 %v2596
    %v2907 = vunpack.c.l.b16 %v2597
    %v2908 = vunpack.c.h.b16 %v2597
    %v2909 = vunpack.c.l.b16 %v2598
    %v2910 = vunpack.c.h.b16 %v2598
    %v2911 = vunpack.c.l.b16 %v2599
    %v2912 = vunpack.c.h.b16 %v2599
    %v2913 = vunpack.c.l.b16 %v2600
    %v2914 = vunpack.c.h.b16 %v2600
    %v2915 = vunpack.c.l.b16 %v2601
    %v2916 = vunpack.c.h.b16 %v2601
    %v2917 = vunpack.c.l.b16 %v2602
    %v2918 = vunpack.c.h.b16 %v2602
    %v2919 = vunpack.c.l.b16 %v2603
    %v2920 = vunpack.c.h.b16 %v2603
    %v2921 = vunpack.c.l.b16 %v2604
    %v2922 = vunpack.c.h.b16 %v2604
    %v2923 = vunpack.c.l.b16 %v2605
    %v2924 = vunpack.c.h.b16 %v2605
    %v2925 = vunpack.c.l.b16 %v2606
    %v2926 = vunpack.c.h.b16 %v2606
    %v2927 = vunpack.c.l.b16 %v2607
    %v2928 = vunpack.c.h.b16 %v2607
    %v2929 = vunpack.c.l.b16 %v2608
    %v2930 = vunpack.c.h.b16 %v2608
    %v2931 = vunpack.c.l.b16 %v2609
    %v2932 = vunpack.c.h.b16 %v2609
    %v2933 = vunpack.c.l.b16 %v2610
    %v2934 = vunpack.c.h.b16 %v2610
    %v2935 = vunpack.c.l.b16 %v2611
    %v2936 = vunpack.c.h.b16 %v2611
    %v2937 = vunpack.c.l.b16 %v2612
    %v2938 = vunpack.c.h.b16 %v2612
    %v2939 = vunpack.c.l.b16 %v2613
    %v2940 = vunpack.c.h.b16 %v2613
    %v2941 = vunpack.c.l.b16 %v2614
    %v2942 = vunpack.c.h.b16 %v2614
    %v2943 = vunpack.c.l.b16 %v2615
    %v2944 = vunpack.c.h.b16 %v2615
    %v2945 = vunpack.c.l.b16 %v2616
    %v2946 = vunpack.c.h.b16 %v2616
    %v2947 = vunpack.c.l.b16 %v2617
    %v2948 = vunpack.c.h.b16 %v2617
    %v2949 = vunpack.c.l.b16 %v2618
    %v2950 = vunpack.c.h.b16 %v2618
    %v2951 = vunpack.c.l.b16 %v2619
    %v2952 = vunpack.c.h.b16 %v2619
    %v2953 = vunpack.c.l.b16 %v2620
    %v2954 = vunpack.c.h.b16 %v2620
    %v2955 = vunpack.c.l.b16 %v2621
    %v2956 = vunpack.c.h.b16 %v2621
    %v2957 = vunpack.c.l.b16 %v2622
    %v2958 = vunpack.c.h.b16 %v2622
    %v2959 = vunpack.c.l.b16 %v2623
    %v2960 = vunpack.c.h.b16 %v2623
    %v2961 = vunpack.c.l.b16 %v2624
    %v2962 = vunpack.c.h.b16 %v2624
    %v2963 = vunpack.c.l.b16 %v2625
    %v2964 = vunpack.c.h.b16 %v2625
    %v2965 = vunpack.c.l.b16 %v2626
    %v2966 = vunpack.c.h.b16 %v2626
    %v2967 = vunpack.c.l.b16 %v2627
    %v2968 = vunpack.c.h.b16 %v2627
    %v2969 = vunpack.c.l.b16 %v2628
    %v2970 = vunpack.c.h.b16 %v2628
    %v2971 = vunpack.c.l.b16 %v2629
    %v2972 = vunpack.c.h.b16 %v2629
    %v2973 = vunpack.c.l.b16 %v2630
    %v2974 = vunpack.c.h.b16 %v2630
    %v2975 = vunpack.c.l.b16 %v2631
    %v2976 = vunpack.c.h.b16 %v2631
    %v2977 = vunpack.c.l.b16 %v2632
    %v2978 = vunpack.c.h.b16 %v2632
    %v2979 = vunpack.c.l.b16 %v2633
    %v2980 = vunpack.c.h.b16 %v2633
    %v2981 = vunpack.c.l.b16 %v2634
    %v2982 = vunpack.c.h.b16 %v2634
    %v2983 = vunpack.c.l.b16 %v2635
    %v2984 = vunpack.c.h.b16 %v2635
    %v2985 = vunpack.c.l.b16 %v2636
    %v2986 = vunpack.c.h.b16 %v2636
    %v2987 = vunpack.c.l.b16 %v2637
    %v2988 = vunpack.c.h.b16 %v2637
    %v2989 = vunpack.c.l.b16 %v2638
    %v2990 = vunpack.c.h.b16 %v2638
    %v2991 = vunpack.c.l.b16 %v2639
    %v2992 = vunpack.c.h.b16 %v2639
    %v2993 = vunpack.c.l.b16 %v2640
    %v2994 = vunpack.c.h.b16 %v2640
    %v2995 = vunpack.c.l.b16 %v2641
    %v2996 = vunpack.c.h.b16 %v2641
    %v2997 = vunpack.c.l.b16 %v2642
    %v2998 = vunpack.c.h.b16 %v2642
    %v2999 = vunpack.c.l.b16 %v2643
    %v3000 = vunpack.c.h.b16 %v2643
    %v3001 = vunpack.c.l.b16 %v2644
    %v3002 = vunpack.c.h.b16 %v2644
    %v3003 = vunpack.c.l.b16 %v2645
    %v3004 = vunpack.c.h.b16 %v2645
    %v3005 = vunpack.c.l.b16 %v2646
    %v3006 = vunpack.c.h.b16 %v2646
    %v3007 = vunpack.c.l.b16 %v2647
    %v3008 = vunpack.c.h.b16 %v2647
    %v3009 = vunpack.c.l.b16 %v2648
    %v3010 = vunpack.c.h.b16 %v2648
    %v3011 = vunpack.c.l.b16 %v2649
    %v3012 = vunpack.c.h.b16 %v2649
    %v3013 = vunpack.c.l.b16 %v2650
    %v3014 = vunpack.c.h.b16 %v2650
    %v3015 = vunpack.c.l.b16 %v2651
    %v3016 = vunpack.c.h.b16 %v2651
    %v3017 = vunpack.c.l.b16 %v2652
    %v3018 = vunpack.c.h.b16 %v2652
    %v3019 = vunpack.c.l.b16 %v2653
    %v3020 = vunpack.c.h.b16 %v2653
    %v3021 = vunpack.c.l.b16 %v2654
    %v3022 = vunpack.c.h.b16 %v2654
    %v3023 = vunpack.c.l.b16 %v2655
    %v3024 = vunpack.c.h.b16 %v2655
    %v3025 = vunpack.c.l.b16 %v2656
    %v3026 = vunpack.c.h.b16 %v2656
    %v3027 = vunpack.c.l.b16 %v2657
    %v3028 = vunpack.c.h.b16 %v2657
    %v3029 = vunpack.c.l.b16 %v2658
    %v3030 = vunpack.c.h.b16 %v2658
    %v3031 = vunpack.c.l.b16 %v2659
    %v3032 = vunpack.c.h.b16 %v2659
    %v3033 = vunpack.c.l.b16 %v2660
    %v3034 = vunpack.c.h.b16 %v2660
    %v3035 = vunpack.c.l.b16 %v2661
    %v3036 = vunpack.c.h.b16 %v2661
    %v3037 = vunpack.c.l.b16 %v2662
    %v3038 = vunpack.c.h.b16 %v2662
    %v3039 = vunpack.c.l.b16 %v2663
    %v3040 = vunpack.c.h.b16 %v2663
    %v3041 = vunpack.c.l.b16 %v2664
    %v3042 = vunpack.c.h.b16 %v2664
    %v3043 = vunpack.c.l.b16 %v2665
    %v3044 = vunpack.c.h.b16 %v2665
    %v3045 = vunpack.c.l.b16 %v2666
    %v3046 = vunpack.c.h.b16 %v2666
    %v3047 = vunpack.c.l.b16 %v2667
    %v3048 = vunpack.c.h.b16 %v2667
    %v3049 = vunpack.c.l.b16 %v2668
    %v3050 = vunpack.c.h.b16 %v2668
    %v3051 = vunpack.c.l.b16 %v2669
    %v3052 = vunpack.c.h.b16 %v2669
    %v3053 = vunpack.c.l.b16 %v2670
    %v3054 = vunpack.c.h.b16 %v2670
    %v3055 = vunpack.c.l.b16 %v2671
    %v3056 = vunpack.c.h.b16 %v2671
    %v3057 = vunpack.c.l.b16 %v2672
    %v3058 = vunpack.c.h.b16 %v2672
    %v3059 = vunpack.c.l.b16 %v2673
    %v3060 = vunpack.c.h.b16 %v2673
    %v3061 = vunpack.c.l.b16 %v2674
    %v3062 = vunpack.c.h.b16 %v2674
    %v3063 = vunpack.c.l.b16 %v2675
    %v3064 = vunpack.c.h.b16 %v2675
    %v3065 = vunpack.c.l.b16 %v2676
    %v3066 = vunpack.c.h.b16 %v2676
    %v3067 = vunpack.c.l.b16 %v2677
    %v3068 = vunpack.c.h.b16 %v2677
    %v3069 = vunpack.c.l.b16 %v2678
    %v3070 = vunpack.c.h.b16 %v2678
    %v3071 = vunpack.c.l.b16 %v2679
    %v3072 = vunpack.c.h.b16 %v2679
    %v3073 = vunpack.c.l.b16 %v2680
    %v3074 = vunpack.c.h.b16 %v2680
    %v3075 = vunpack.c.l.b16 %v2681
    %v3076 = vunpack.c.h.b16 %v2681
    %v3077 = vunpack.c.l.b16 %v2682
    %v3078 = vunpack.c.h.b16 %v2682
    %v3079 = vunpack.c.l.b16 %v2683
    %v3080 = vunpack.c.h.b16 %v2683
    %v3081 = vunpack.c.l.b16 %v2684
    %v3082 = vunpack.c.h.b16 %v2684
    %v3083 = vunpack.c.l.b16 %v2685
    %v3084 = vunpack.c.h.b16 %v2685
    %v3085 = vunpack.c.l.b16 %v2686
    %v3086 = vunpack.c.h.b16 %v2686
    %v3087 = vunpack.c.l.b16 %v2687
    %v3088 = vunpack.c.h.b16 %v2687
    %v3089 = vunpack.c.l.b16 %v2688
    %v3090 = vunpack.c.h.b16 %v2688
    %v3091 = vunpack.c.l.b16 %v2689
    %v3092 = vunpack.c.h.b16 %v2689
    %v3093 = vunpack.c.l.b16 %v2690
    %v3094 = vunpack.c.h.b16 %v2690
    %v3095 = vunpack.c.l.b16 %v2691
    %v3096 = vunpack.c.h.b16 %v2691
    %v3097 = vunpack.c.l.b16 %v2692
    %v3098 = vunpack.c.h.b16 %v2692
    %v3099 = vpack.c.b16 %v2847, %v2843
    %v3100 = vpack.c.b16 %v2848, %v2844
    %v3101 = vpack.c.b16 %v2849, %v2845
    %v3102 = vpack.c.b16 %v2850, %v2846
    %v3103 = vpack.c.b16 %v2855, %v2851
    %v3104 = vpack.c.b16 %v2856, %v2852
    %v3105 = vpack.c.b16 %v2857, %v2853
    %v3106 = vpack.c.b16 %v2858, %v2854
    %v3107 = vpack.c.b16 %v2863, %v2859
    %v3108 = vpack.c.b16 %v2864, %v2860
    %v3109 = vpack.c.b16 %v2865, %v2861
    %v3110 = vpack.c.b16 %v2866, %v2862
    %v3111 = vpack.c.b16 %v2871, %v2867
    %v3112 = vpack.c.b16 %v2872, %v2868
    %v3113 = vpack.c.b16 %v2873, %v2869
    %v3114 = vpack.c.b16 %v2874, %v2870
    %v3115 = vpack.c.b16 %v2879, %v2875
    %v3116 = vpack.c.b16 %v2880, %v2876
    %v3117 = vpack.c.b16 %v2881, %v2877
    %v3118 = vpack.c.b16 %v2882, %v2878
    %v3119 = vpack.c.b16 %v2887, %v2883
    %v3120 = vpack.c.b16 %v2888, %v2884
    %v3121 = vpack.c.b16 %v2889, %v2885
    %v3122 = vpack.c.b16 %v2890, %v2886
    %v3123 = vpack.c.b16 %v2895, %v2891
    %v3124 = vpack.c.b16 %v2896, %v2892
    %v3125 = vpack.c.b16 %v2897, %v2893
    %v3126 = vpack.c.b16 %v2898, %v2894
    %v3127 = vpack.c.b16 %v2903, %v2899
    %v3128 = vpack.c.b16 %v2904, %v2900
    %v3129 = vpack.c.b16 %v2905, %v2901
    %v3130 = vpack.c.b16 %v2906, %v2902
    %v3131 = vpack.c.b16 %v2911, %v2907
    %v3132 = vpack.c.b16 %v2912, %v2908
    %v3133 = vpack.c.b16 %v2913, %v2909
    %v3134 = vpack.c.b16 %v2914, %v2910
    %v3135 = vpack.c.b16 %v2919, %v2915
    %v3136 = vpack.c.b16 %v2920, %v2916
    %v3137 = vpack.c.b16 %v2921, %v2917
    %v3138 = vpack.c.b16 %v2922, %v2918
    %v3139 = vpack.c.b16 %v2927, %v2923
    %v3140 = vpack.c.b16 %v2928, %v2924
    %v3141 = vpack.c.b16 %v2929, %v2925
    %v3142 = vpack.c.b16 %v2930, %v2926
    %v3143 = vpack.c.b16 %v2935, %v2931
    %v3144 = vpack.c.b16 %v2936, %v2932
    %v3145 = vpack.c.b16 %v2937, %v2933
    %v3146 = vpack.c.b16 %v2938, %v2934
    %v3147 = vpack.c.b16 %v2943, %v2939
    %v3148 = vpack.c.b16 %v2944, %v2940
    %v3149 = vpack.c.b16 %v2945, %v2941
    %v3150 = vpack.c.b16 %v2946, %v2942
    %v3151 = vpack.c.b16 %v2951, %v2947
    %v3152 = vpack.c.b16 %v2952, %v2948
    %v3153 = vpack.c.b16 %v2953, %v2949
    %v3154 = vpack.c.b16 %v2954, %v2950
    %v3155 = vpack.c.b16 %v2959, %v2955
    %v3156 = vpack.c.b16 %v2960, %v2956
    %v3157 = vpack.c.b16 %v2961, %v2957
    %v3158 = vpack.c.b16 %v2962, %v2958
    %v3159 = vpack.c.b16 %v2967, %v2963
    %v3160 = vpack.c.b16 %v2968, %v2964
    %v3161 = vpack.c.b16 %v2969, %v2965
    %v3162 = vpack.c.b16 %v2970, %v2966
    %v3163 = vpack.c.b16 %v2975, %v2971
    %v3164 = vpack.c.b16 %v2976, %v2972
    %v3165 = vpack.c.b16 %v2977, %v2973
    %v3166 = vpack.c.b16 %v2978, %v2974
    %v3167 = vpack.c.b16 %v2983, %v2979
    %v3168 = vpack.c.b16 %v2984, %v2980
    %v3169 = vpack.c.b16 %v2985, %v2981
    %v3170 = vpack.c.b16 %v2986, %v2982
    %v3171 = vpack.c.b16 %v2991, %v2987
    %v3172 = vpack.c.b16 %v2992, %v2988
    %v3173 = vpack.c.b16 %v2993, %v2989
    %v3174 = vpack.c.b16 %v2994, %v2990
    %v3175 = vpack.c.b16 %v2999, %v2995
    %v3176 = vpack.c.b16 %v3000, %v2996
    %v3177 = vpack.c.b16 %v3001, %v2997
    %v3178 = vpack.c.b16 %v3002, %v2998
    %v3179 = vpack.c.b16 %v3007, %v3003
    %v3180 = vpack.c.b16 %v3008, %v3004
    %v3181 = vpack.c.b16 %v3009, %v3005
    %v3182 = vpack.c.b16 %v3010, %v3006
    %v3183 = vpack.c.b16 %v3015, %v3011
    %v3184 = vpack.c.b16 %v3016, %v3012
    %v3185 = vpack.c.b16 %v3017, %v3013
    %v3186 = vpack.c.b16 %v3018, %v3014
    %v3187 = vpack.c.b16 %v3023, %v3019
    %v3188 = vpack.c.b16 %v3024, %v3020
    %v3189 = vpack.c.b16 %v3025, %v3021
    %v3190 = vpack.c.b16 %v3026, %v3022
    %v3191 = vpack.c.b16 %v3031, %v3027
    %v3192 = vpack.c.b16 %v3032, %v3028
    %v3193 = vpack.c.b16 %v3033, %v3029
    %v3194 = vpack.c.b16 %v3034, %v3030
    %v3195 = vpack.c.b16 %v3039, %v3035
    %v3196 = vpack.c.b16 %v3040, %v3036
    %v3197 = vpack.c.b16 %v3041, %v3037
    %v3198 = vpack.c.b16 %v3042, %v3038
    %v3199 = vpack.c.b16 %v3047, %v3043
    %v3200 = vpack.c.b16 %v3048, %v3044
    %v3201 = vpack.c.b16 %v3049, %v3045
    %v3202 = vpack.c.b16 %v3050, %v3046
    %v3203 = vpack.c.b16 %v3055, %v3051
    %v3204 = vpack.c.b16 %v3056, %v3052
    %v3205 = vpack.c.b16 %v3057, %v3053
    %v3206 = vpack.c.b16 %v3058, %v3054
    %v3207 = vpack.c.b16 %v3063, %v3059
    %v3208 = vpack.c.b16 %v3064, %v3060
    %v3209 = vpack.c.b16 %v3065, %v3061
    %v3210 = vpack.c.b16 %v3066, %v3062
    %v3211 = vpack.c.b16 %v3071, %v3067
    %v3212 = vpack.c.b16 %v3072, %v3068
    %v3213 = vpack.c.b16 %v3073, %v3069
    %v3214 = vpack.c.b16 %v3074, %v3070
    %v3215 = vpack.c.b16 %v3079, %v3075
    %v3216 = vpack.c.b16 %v3080, %v3076
    %v3217 = vpack.c.b16 %v3081, %v3077
    %v3218 = vpack.c.b16 %v3082, %v3078
    %v3219 = vpack.c.b16 %v3087, %v3083
    %v3220 = vpack.c.b16 %v3088, %v3084
    %v3221 = vpack.c.b16 %v3089, %v3085
    %v3222 = vpack.c.b16 %v3090, %v3086
    %v3223 = vpack.c.b16 %v3095, %v3091
    %v3224 = vpack.c.b16 %v3096, %v3092
    %v3225 = vpack.c.b16 %v3097, %v3093
    %v3226 = vpack.c.b16 %v3098, %v3094
    %3355 = vmatprep.subr.bf16.mxu0 %v3128
    %3356 = vmatpush1.bf16.msra.mxu0 %v3127
    %3357 = vmatprep.subr.bf16.mxu0 %v3124
    %3358 = vmatpush1.bf16.msra.mxu0 %v3123
    %3359 = vmatprep.subr.bf16.mxu0 %v3120
    %3360 = vmatpush1.bf16.msra.mxu0 %v3119
    %3361 = vmatprep.subr.bf16.mxu0 %v3116
    %3362 = vmatpush1.bf16.msra.mxu0 %v3115
    %3363 = vmatprep.subr.bf16.mxu0 %v3112
    %3364 = vmatpush1.bf16.msra.mxu0 %v3111
    %3365 = vmatprep.subr.bf16.mxu0 %v3108
    %3366 = vmatpush1.bf16.msra.mxu0 %v3107
    %3367 = vmatprep.subr.bf16.mxu0 %v3104
    %3368 = vmatpush1.bf16.msra.mxu0 %v3103
    %3369 = vmatprep.subr.bf16.mxu0 %v3100
    %3370 = vmatpush1.bf16.msra.mxu0 %v3099
    %3371 = vmatprep.subr.bf16.mxu0 %v3160
    %3372 = vmatpush2.bf16.msra.mxu0 %v3159
    %3373 = vmatprep.subr.bf16.mxu0 %v3156
    %3374 = vmatpush2.bf16.msra.mxu0 %v3155
    %3375 = vmatprep.subr.bf16.mxu0 %v3152
    %3376 = vmatpush2.bf16.msra.mxu0 %v3151
    %3377 = vmatprep.subr.bf16.mxu0 %v3148
    %3378 = vmatpush2.bf16.msra.mxu0 %v3147
    %3379 = vmatprep.subr.bf16.mxu0 %v3144
    %3380 = vmatpush2.bf16.msra.mxu0 %v3143
    %3381 = vmatprep.subr.bf16.mxu0 %v3140
    %3382 = vmatpush2.bf16.msra.mxu0 %v3139
    %3383 = vmatprep.subr.bf16.mxu0 %v3136
    %3384 = vmatpush2.bf16.msra.mxu0 %v3135
    %3385 = vmatprep.subr.bf16.mxu0 %v3132
    %3386 = vmatpush2.bf16.msra.mxu0 %v3131
    %3387 = vmatprep.mubr.bf16.mxu0 %v2562
    %3388 = vmatmul.mubr.bf16.gmra.mxu0 %v2561
    %v3389 = vpop.f32.mrf.mxu0
    %v3390 = vadd.f32 %v2698, %v3389
    %v3391 = vpop.f32.mrf.mxu0
    %v3392 = vadd.f32 %v2702, %v3391
    %v3393 = vpop.f32.mrf.mxu0
    %v3394 = vpop.f32.mrf.mxu0
    %3395 = vdwg.mxu0
    %3396 = vmatprep.subr.bf16.mxu0 %v3192
    %3397 = vmatpush1.bf16.msra.mxu0 %v3191
    %3398 = vmatprep.subr.bf16.mxu0 %v3188
    %3399 = vmatpush1.bf16.msra.mxu0 %v3187
    %3400 = vmatprep.subr.bf16.mxu0 %v3184
    %3401 = vmatpush1.bf16.msra.mxu0 %v3183
    %3402 = vmatprep.subr.bf16.mxu0 %v3180
    %3403 = vmatpush1.bf16.msra.mxu0 %v3179
    %3404 = vmatprep.subr.bf16.mxu0 %v3176
    %3405 = vmatpush1.bf16.msra.mxu0 %v3175
    %3406 = vmatprep.subr.bf16.mxu0 %v3172
    %3407 = vmatpush1.bf16.msra.mxu0 %v3171
    %3408 = vmatprep.subr.bf16.mxu0 %v3168
    %3409 = vmatpush1.bf16.msra.mxu0 %v3167
    %3410 = vmatprep.subr.bf16.mxu0 %v3164
    %3411 = vmatpush1.bf16.msra.mxu0 %v3163
    %3412 = vmatprep.subr.bf16.mxu0 %v3224
    %3413 = vmatpush2.bf16.msra.mxu0 %v3223
    %3414 = vmatprep.subr.bf16.mxu0 %v3220
    %3415 = vmatpush2.bf16.msra.mxu0 %v3219
    %3416 = vmatprep.subr.bf16.mxu0 %v3216
    %3417 = vmatpush2.bf16.msra.mxu0 %v3215
    %3418 = vmatprep.subr.bf16.mxu0 %v3212
    %3419 = vmatpush2.bf16.msra.mxu0 %v3211
    %3420 = vmatprep.subr.bf16.mxu0 %v3208
    %3421 = vmatpush2.bf16.msra.mxu0 %v3207
    %3422 = vmatprep.subr.bf16.mxu0 %v3204
    %3423 = vmatpush2.bf16.msra.mxu0 %v3203
    %3424 = vmatprep.subr.bf16.mxu0 %v3200
    %3425 = vmatpush2.bf16.msra.mxu0 %v3199
    %3426 = vmatprep.subr.bf16.mxu0 %v3196
    %3427 = vmatpush2.bf16.msra.mxu0 %v3195
    %3428 = vmatprep.mubr.bf16.mxu0 %v2564
    %3429 = vmatmul.mubr.bf16.gmra.mxu0 %v2563
    %v3430 = vpop.f32.mrf.mxu0
    %v3431 = vadd.f32 %v3390, %v3430
    %v3432 = vpop.f32.mrf.mxu0
    %v3433 = vadd.f32 %v3392, %v3432
    %v3434 = vpop.f32.mrf.mxu0
    %v3435 = vpop.f32.mrf.mxu0
    %3436 = vdwg.mxu0
    %3437 = vmatprep.subr.bf16.mxu0 %v3130
    %3438 = vmatpush1.bf16.msra.mxu0 %v3129
    %3439 = vmatprep.subr.bf16.mxu0 %v3126
    %3440 = vmatpush1.bf16.msra.mxu0 %v3125
    %3441 = vmatprep.subr.bf16.mxu0 %v3122
    %3442 = vmatpush1.bf16.msra.mxu0 %v3121
    %3443 = vmatprep.subr.bf16.mxu0 %v3118
    %3444 = vmatpush1.bf16.msra.mxu0 %v3117
    %3445 = vmatprep.subr.bf16.mxu0 %v3114
    %3446 = vmatpush1.bf16.msra.mxu0 %v3113
    %3447 = vmatprep.subr.bf16.mxu0 %v3110
    %3448 = vmatpush1.bf16.msra.mxu0 %v3109
    %3449 = vmatprep.subr.bf16.mxu0 %v3106
    %3450 = vmatpush1.bf16.msra.mxu0 %v3105
    %3451 = vmatprep.subr.bf16.mxu0 %v3102
    %3452 = vmatpush1.bf16.msra.mxu0 %v3101
    %3453 = vmatprep.subr.bf16.mxu0 %v3162
    %3454 = vmatpush2.bf16.msra.mxu0 %v3161
    %3455 = vmatprep.subr.bf16.mxu0 %v3158
    %3456 = vmatpush2.bf16.msra.mxu0 %v3157
    %3457 = vmatprep.subr.bf16.mxu0 %v3154
    %3458 = vmatpush2.bf16.msra.mxu0 %v3153
    %3459 = vmatprep.subr.bf16.mxu0 %v3150
    %3460 = vmatpush2.bf16.msra.mxu0 %v3149
    %3461 = vmatprep.subr.bf16.mxu0 %v3146
    %3462 = vmatpush2.bf16.msra.mxu0 %v3145
    %3463 = vmatprep.subr.bf16.mxu0 %v3142
    %3464 = vmatpush2.bf16.msra.mxu0 %v3141
    %3465 = vmatprep.subr.bf16.mxu0 %v3138
    %3466 = vmatpush2.bf16.msra.mxu0 %v3137
    %3467 = vmatprep.subr.bf16.mxu0 %v3134
    %3468 = vmatpush2.bf16.msra.mxu0 %v3133
    %3469 = vmatprep.mubr.bf16.mxu0 %v2562
    %3470 = vmatmul.mubr.bf16.gmra.mxu0 %v2561
    %v3471 = vpop.f32.mrf.mxu0
    %v3472 = vadd.f32 %v2706, %v3471
    %v3473 = vpop.f32.mrf.mxu0
    %v3474 = vadd.f32 %v2710, %v3473
    %v3475 = vpop.f32.mrf.mxu0
    %v3476 = vpop.f32.mrf.mxu0
    %3477 = vdwg.mxu0
    %3478 = vmatprep.subr.bf16.mxu0 %v3194
    %3479 = vmatpush1.bf16.msra.mxu0 %v3193
    %3480 = vmatprep.subr.bf16.mxu0 %v3190
    %3481 = vmatpush1.bf16.msra.mxu0 %v3189
    %3482 = vmatprep.subr.bf16.mxu0 %v3186
    %3483 = vmatpush1.bf16.msra.mxu0 %v3185
    %3484 = vmatprep.subr.bf16.mxu0 %v3182
    %3485 = vmatpush1.bf16.msra.mxu0 %v3181
    %3486 = vmatprep.subr.bf16.mxu0 %v3178
    %3487 = vmatpush1.bf16.msra.mxu0 %v3177
    %3488 = vmatprep.subr.bf16.mxu0 %v3174
    %3489 = vmatpush1.bf16.msra.mxu0 %v3173
    %3490 = vmatprep.subr.bf16.mxu0 %v3170
    %3491 = vmatpush1.bf16.msra.mxu0 %v3169
    %3492 = vmatprep.subr.bf16.mxu0 %v3166
    %3493 = vmatpush1.bf16.msra.mxu0 %v3165
    %3494 = vmatprep.subr.bf16.mxu0 %v3226
    %3495 = vmatpush2.bf16.msra.mxu0 %v3225
    %3496 = vmatprep.subr.bf16.mxu0 %v3222
    %3497 = vmatpush2.bf16.msra.mxu0 %v3221
    %3498 = vmatprep.subr.bf16.mxu0 %v3218
    %3499 = vmatpush2.bf16.msra.mxu0 %v3217
    %3500 = vmatprep.subr.bf16.mxu0 %v3214
    %3501 = vmatpush2.bf16.msra.mxu0 %v3213
    %3502 = vmatprep.subr.bf16.mxu0 %v3210
    %3503 = vmatpush2.bf16.msra.mxu0 %v3209
    %3504 = vmatprep.subr.bf16.mxu0 %v3206
    %3505 = vmatpush2.bf16.msra.mxu0 %v3205
    %3506 = vmatprep.subr.bf16.mxu0 %v3202
    %3507 = vmatpush2.bf16.msra.mxu0 %v3201
    %3508 = vmatprep.subr.bf16.mxu0 %v3198
    %3509 = vmatpush2.bf16.msra.mxu0 %v3197
    %3510 = vmatprep.mubr.bf16.mxu0 %v2564
    %3511 = vmatmul.mubr.bf16.gmra.mxu0 %v2563
    %v3512 = vpop.f32.mrf.mxu0
    %v3513 = vadd.f32 %v3472, %v3512
    %v3514 = vpop.f32.mrf.mxu0
    %v3515 = vadd.f32 %v3474, %v3514
    %v3516 = vpop.f32.mrf.mxu0
    %v3517 = vpop.f32.mrf.mxu0
    %3518 = vdwg.mxu0
    %v3519 = vmax.f32 %v3431, 0.0
    %v3520 = vmax.f32 %v3433, 0.0
    %v3521 = vmax.f32 %v3513, 0.0
    %v3522 = vmax.f32 %v3515, 0.0
    %v3523 = vpack.c.bf16 %v3519, %v3519
    %v3524 = vpack.c.bf16 %v3520, %v3520
    %v3525 = vpack.c.bf16 %v3521, %v3521
    %v3526 = vpack.c.bf16 %v3522, %v3522
    %v3527 = vld [vmem:[#allocation20] sm:$0xff]
    %v3528 = vld [vmem:[#allocation20 + $0x8] sm:$0xff]
    %v3529 = vld [vmem:[#allocation20 + $0x10] sm:$0xff]
    %v3530 = vld [vmem:[#allocation20 + $0x18] sm:$0xff]
    %v3531 = vld [vmem:[#allocation20 + $0x20] sm:$0xff]
    %v3532 = vld [vmem:[#allocation20 + $0x28] sm:$0xff]
    %v3533 = vld [vmem:[#allocation20 + $0x30] sm:$0xff]
    %v3534 = vld [vmem:[#allocation20 + $0x38] sm:$0xff]
    %v3535 = vld [vmem:[#allocation20 + $0x40] sm:$0xff]
    %v3536 = vld [vmem:[#allocation20 + $0x48] sm:$0xff]
    %v3537 = vld [vmem:[#allocation20 + $0x50] sm:$0xff]
    %v3538 = vld [vmem:[#allocation20 + $0x58] sm:$0xff]
    %v3539 = vld [vmem:[#allocation20 + $0x60] sm:$0xff]
    %v3540 = vld [vmem:[#allocation20 + $0x68] sm:$0xff]
    %v3541 = vld [vmem:[#allocation20 + $0x70] sm:$0xff]
    %v3542 = vld [vmem:[#allocation20 + $0x78] sm:$0xff]
    %v3543 = vld [vmem:[#allocation20 + $0x80] sm:$0xff]
    %v3544 = vld [vmem:[#allocation20 + $0x88] sm:$0xff]
    %v3545 = vld [vmem:[#allocation20 + $0x90] sm:$0xff]
    %v3546 = vld [vmem:[#allocation20 + $0x98] sm:$0xff]
    %v3547 = vld [vmem:[#allocation20 + $0xa0] sm:$0xff]
    %v3548 = vld [vmem:[#allocation20 + $0xa8] sm:$0xff]
    %v3549 = vld [vmem:[#allocation20 + $0xb0] sm:$0xff]
    %v3550 = vld [vmem:[#allocation20 + $0xb8] sm:$0xff]
    %v3551 = vld [vmem:[#allocation20 + $0xc0] sm:$0xff]
    %v3552 = vld [vmem:[#allocation20 + $0xc8] sm:$0xff]
    %v3553 = vld [vmem:[#allocation20 + $0xd0] sm:$0xff]
    %v3554 = vld [vmem:[#allocation20 + $0xd8] sm:$0xff]
    %v3555 = vld [vmem:[#allocation20 + $0xe0] sm:$0xff]
    %v3556 = vld [vmem:[#allocation20 + $0xe8] sm:$0xff]
    %v3557 = vld [vmem:[#allocation20 + $0xf0] sm:$0xff]
    %v3558 = vld [vmem:[#allocation20 + $0xf8] sm:$0xff]
    %v3559 = vld [vmem:[#allocation20 + $0x100] sm:$0xff]
    %v3560 = vld [vmem:[#allocation20 + $0x108] sm:$0xff]
    %v3561 = vld [vmem:[#allocation20 + $0x110] sm:$0xff]
    %v3562 = vld [vmem:[#allocation20 + $0x118] sm:$0xff]
    %v3563 = vld [vmem:[#allocation20 + $0x120] sm:$0xff]
    %v3564 = vld [vmem:[#allocation20 + $0x128] sm:$0xff]
    %v3565 = vld [vmem:[#allocation20 + $0x130] sm:$0xff]
    %v3566 = vld [vmem:[#allocation20 + $0x138] sm:$0xff]
    %v3567 = vld [vmem:[#allocation20 + $0x140] sm:$0xff]
    %v3568 = vld [vmem:[#allocation20 + $0x148] sm:$0xff]
    %v3569 = vld [vmem:[#allocation20 + $0x150] sm:$0xff]
    %v3570 = vld [vmem:[#allocation20 + $0x158] sm:$0xff]
    %v3571 = vld [vmem:[#allocation20 + $0x160] sm:$0xff]
    %v3572 = vld [vmem:[#allocation20 + $0x168] sm:$0xff]
    %v3573 = vld [vmem:[#allocation20 + $0x170] sm:$0xff]
    %v3574 = vld [vmem:[#allocation20 + $0x178] sm:$0xff]
    %v3575 = vld [vmem:[#allocation20 + $0x180] sm:$0xff]
    %v3576 = vld [vmem:[#allocation20 + $0x188] sm:$0xff]
    %v3577 = vld [vmem:[#allocation20 + $0x190] sm:$0xff]
    %v3578 = vld [vmem:[#allocation20 + $0x198] sm:$0xff]
    %v3579 = vld [vmem:[#allocation20 + $0x1a0] sm:$0xff]
    %v3580 = vld [vmem:[#allocation20 + $0x1a8] sm:$0xff]
    %v3581 = vld [vmem:[#allocation20 + $0x1b0] sm:$0xff]
    %v3582 = vld [vmem:[#allocation20 + $0x1b8] sm:$0xff]
    %v3583 = vld [vmem:[#allocation20 + $0x1c0] sm:$0xff]
    %v3584 = vld [vmem:[#allocation20 + $0x1c8] sm:$0xff]
    %v3585 = vld [vmem:[#allocation20 + $0x1d0] sm:$0xff]
    %v3586 = vld [vmem:[#allocation20 + $0x1d8] sm:$0xff]
    %v3587 = vld [vmem:[#allocation20 + $0x1e0] sm:$0xff]
    %v3588 = vld [vmem:[#allocation20 + $0x1e8] sm:$0xff]
    %v3589 = vld [vmem:[#allocation20 + $0x1f0] sm:$0xff]
    %v3590 = vld [vmem:[#allocation20 + $0x1f8] sm:$0xff]
    %v3591 = vld [vmem:[%s16] sm:$0x3]
    %v3593 = vlaneseq
    %v3594 = vshrl.u32 %v3593, 7
    %v3595 = vsub.s32 0, %v3594
    %v3596 = vrot.slane %v3591, %v3595
    %v3597 = vlaneseq
    %v3598 = vshrl.u32 %v3597, 7
    %v3599 = vsub.s32 1, %v3598
    %v3600 = vrot.slane %v3591, %v3599
    %v3667 = vunpack.c.l.b16 %v3527
    %v3668 = vunpack.c.h.b16 %v3527
    %v3669 = vunpack.c.l.b16 %v3528
    %v3670 = vunpack.c.h.b16 %v3528
    %v3671 = vunpack.c.l.b16 %v3529
    %v3672 = vunpack.c.h.b16 %v3529
    %v3673 = vunpack.c.l.b16 %v3530
    %v3674 = vunpack.c.h.b16 %v3530
    %v3675 = vunpack.c.l.b16 %v3531
    %v3676 = vunpack.c.h.b16 %v3531
    %v3677 = vunpack.c.l.b16 %v3532
    %v3678 = vunpack.c.h.b16 %v3532
    %v3679 = vunpack.c.l.b16 %v3533
    %v3680 = vunpack.c.h.b16 %v3533
    %v3681 = vunpack.c.l.b16 %v3534
    %v3682 = vunpack.c.h.b16 %v3534
    %v3683 = vunpack.c.l.b16 %v3535
    %v3684 = vunpack.c.h.b16 %v3535
    %v3685 = vunpack.c.l.b16 %v3536
    %v3686 = vunpack.c.h.b16 %v3536
    %v3687 = vunpack.c.l.b16 %v3537
    %v3688 = vunpack.c.h.b16 %v3537
    %v3689 = vunpack.c.l.b16 %v3538
    %v3690 = vunpack.c.h.b16 %v3538
    %v3691 = vunpack.c.l.b16 %v3539
    %v3692 = vunpack.c.h.b16 %v3539
    %v3693 = vunpack.c.l.b16 %v3540
    %v3694 = vunpack.c.h.b16 %v3540
    %v3695 = vunpack.c.l.b16 %v3541
    %v3696 = vunpack.c.h.b16 %v3541
    %v3697 = vunpack.c.l.b16 %v3542
    %v3698 = vunpack.c.h.b16 %v3542
    %v3699 = vunpack.c.l.b16 %v3543
    %v3700 = vunpack.c.h.b16 %v3543
    %v3701 = vunpack.c.l.b16 %v3544
    %v3702 = vunpack.c.h.b16 %v3544
    %v3703 = vunpack.c.l.b16 %v3545
    %v3704 = vunpack.c.h.b16 %v3545
    %v3705 = vunpack.c.l.b16 %v3546
    %v3706 = vunpack.c.h.b16 %v3546
    %v3707 = vunpack.c.l.b16 %v3547
    %v3708 = vunpack.c.h.b16 %v3547
    %v3709 = vunpack.c.l.b16 %v3548
    %v3710 = vunpack.c.h.b16 %v3548
    %v3711 = vunpack.c.l.b16 %v3549
    %v3712 = vunpack.c.h.b16 %v3549
    %v3713 = vunpack.c.l.b16 %v3550
    %v3714 = vunpack.c.h.b16 %v3550
    %v3715 = vunpack.c.l.b16 %v3551
    %v3716 = vunpack.c.h.b16 %v3551
    %v3717 = vunpack.c.l.b16 %v3552
    %v3718 = vunpack.c.h.b16 %v3552
    %v3719 = vunpack.c.l.b16 %v3553
    %v3720 = vunpack.c.h.b16 %v3553
    %v3721 = vunpack.c.l.b16 %v3554
    %v3722 = vunpack.c.h.b16 %v3554
    %v3723 = vunpack.c.l.b16 %v3555
    %v3724 = vunpack.c.h.b16 %v3555
    %v3725 = vunpack.c.l.b16 %v3556
    %v3726 = vunpack.c.h.b16 %v3556
    %v3727 = vunpack.c.l.b16 %v3557
    %v3728 = vunpack.c.h.b16 %v3557
    %v3729 = vunpack.c.l.b16 %v3558
    %v3730 = vunpack.c.h.b16 %v3558
    %v3731 = vunpack.c.l.b16 %v3559
    %v3732 = vunpack.c.h.b16 %v3559
    %v3733 = vunpack.c.l.b16 %v3560
    %v3734 = vunpack.c.h.b16 %v3560
    %v3735 = vunpack.c.l.b16 %v3561
    %v3736 = vunpack.c.h.b16 %v3561
    %v3737 = vunpack.c.l.b16 %v3562
    %v3738 = vunpack.c.h.b16 %v3562
    %v3739 = vunpack.c.l.b16 %v3563
    %v3740 = vunpack.c.h.b16 %v3563
    %v3741 = vunpack.c.l.b16 %v3564
    %v3742 = vunpack.c.h.b16 %v3564
    %v3743 = vunpack.c.l.b16 %v3565
    %v3744 = vunpack.c.h.b16 %v3565
    %v3745 = vunpack.c.l.b16 %v3566
    %v3746 = vunpack.c.h.b16 %v3566
    %v3747 = vunpack.c.l.b16 %v3567
    %v3748 = vunpack.c.h.b16 %v3567
    %v3749 = vunpack.c.l.b16 %v3568
    %v3750 = vunpack.c.h.b16 %v3568
    %v3751 = vunpack.c.l.b16 %v3569
    %v3752 = vunpack.c.h.b16 %v3569
    %v3753 = vunpack.c.l.b16 %v3570
    %v3754 = vunpack.c.h.b16 %v3570
    %v3755 = vunpack.c.l.b16 %v3571
    %v3756 = vunpack.c.h.b16 %v3571
    %v3757 = vunpack.c.l.b16 %v3572
    %v3758 = vunpack.c.h.b16 %v3572
    %v3759 = vunpack.c.l.b16 %v3573
    %v3760 = vunpack.c.h.b16 %v3573
    %v3761 = vunpack.c.l.b16 %v3574
    %v3762 = vunpack.c.h.b16 %v3574
    %v3763 = vunpack.c.l.b16 %v3575
    %v3764 = vunpack.c.h.b16 %v3575
    %v3765 = vunpack.c.l.b16 %v3576
    %v3766 = vunpack.c.h.b16 %v3576
    %v3767 = vunpack.c.l.b16 %v3577
    %v3768 = vunpack.c.h.b16 %v3577
    %v3769 = vunpack.c.l.b16 %v3578
    %v3770 = vunpack.c.h.b16 %v3578
    %v3771 = vunpack.c.l.b16 %v3579
    %v3772 = vunpack.c.h.b16 %v3579
    %v3773 = vunpack.c.l.b16 %v3580
    %v3774 = vunpack.c.h.b16 %v3580
    %v3775 = vunpack.c.l.b16 %v3581
    %v3776 = vunpack.c.h.b16 %v3581
    %v3777 = vunpack.c.l.b16 %v3582
    %v3778 = vunpack.c.h.b16 %v3582
    %v3779 = vunpack.c.l.b16 %v3583
    %v3780 = vunpack.c.h.b16 %v3583
    %v3781 = vunpack.c.l.b16 %v3584
    %v3782 = vunpack.c.h.b16 %v3584
    %v3783 = vunpack.c.l.b16 %v3585
    %v3784 = vunpack.c.h.b16 %v3585
    %v3785 = vunpack.c.l.b16 %v3586
    %v3786 = vunpack.c.h.b16 %v3586
    %v3787 = vunpack.c.l.b16 %v3587
    %v3788 = vunpack.c.h.b16 %v3587
    %v3789 = vunpack.c.l.b16 %v3588
    %v3790 = vunpack.c.h.b16 %v3588
    %v3791 = vunpack.c.l.b16 %v3589
    %v3792 = vunpack.c.h.b16 %v3589
    %v3793 = vunpack.c.l.b16 %v3590
    %v3794 = vunpack.c.h.b16 %v3590
    %v3795 = vpack.c.b16 %v3669, %v3667
    %v3796 = vpack.c.b16 %v3670, %v3668
    %v3797 = vpack.c.b16 %v3673, %v3671
    %v3798 = vpack.c.b16 %v3674, %v3672
    %v3799 = vpack.c.b16 %v3677, %v3675
    %v3800 = vpack.c.b16 %v3678, %v3676
    %v3801 = vpack.c.b16 %v3681, %v3679
    %v3802 = vpack.c.b16 %v3682, %v3680
    %v3803 = vpack.c.b16 %v3685, %v3683
    %v3804 = vpack.c.b16 %v3686, %v3684
    %v3805 = vpack.c.b16 %v3689, %v3687
    %v3806 = vpack.c.b16 %v3690, %v3688
    %v3807 = vpack.c.b16 %v3693, %v3691
    %v3808 = vpack.c.b16 %v3694, %v3692
    %v3809 = vpack.c.b16 %v3697, %v3695
    %v3810 = vpack.c.b16 %v3698, %v3696
    %v3811 = vpack.c.b16 %v3701, %v3699
    %v3812 = vpack.c.b16 %v3702, %v3700
    %v3813 = vpack.c.b16 %v3705, %v3703
    %v3814 = vpack.c.b16 %v3706, %v3704
    %v3815 = vpack.c.b16 %v3709, %v3707
    %v3816 = vpack.c.b16 %v3710, %v3708
    %v3817 = vpack.c.b16 %v3713, %v3711
    %v3818 = vpack.c.b16 %v3714, %v3712
    %v3819 = vpack.c.b16 %v3717, %v3715
    %v3820 = vpack.c.b16 %v3718, %v3716
    %v3821 = vpack.c.b16 %v3721, %v3719
    %v3822 = vpack.c.b16 %v3722, %v3720
    %v3823 = vpack.c.b16 %v3725, %v3723
    %v3824 = vpack.c.b16 %v3726, %v3724
    %v3825 = vpack.c.b16 %v3729, %v3727
    %v3826 = vpack.c.b16 %v3730, %v3728
    %v3827 = vpack.c.b16 %v3733, %v3731
    %v3828 = vpack.c.b16 %v3734, %v3732
    %v3829 = vpack.c.b16 %v3737, %v3735
    %v3830 = vpack.c.b16 %v3738, %v3736
    %v3831 = vpack.c.b16 %v3741, %v3739
    %v3832 = vpack.c.b16 %v3742, %v3740
    %v3833 = vpack.c.b16 %v3745, %v3743
    %v3834 = vpack.c.b16 %v3746, %v3744
    %v3835 = vpack.c.b16 %v3749, %v3747
    %v3836 = vpack.c.b16 %v3750, %v3748
    %v3837 = vpack.c.b16 %v3753, %v3751
    %v3838 = vpack.c.b16 %v3754, %v3752
    %v3839 = vpack.c.b16 %v3757, %v3755
    %v3840 = vpack.c.b16 %v3758, %v3756
    %v3841 = vpack.c.b16 %v3761, %v3759
    %v3842 = vpack.c.b16 %v3762, %v3760
    %v3843 = vpack.c.b16 %v3765, %v3763
    %v3844 = vpack.c.b16 %v3766, %v3764
    %v3845 = vpack.c.b16 %v3769, %v3767
    %v3846 = vpack.c.b16 %v3770, %v3768
    %v3847 = vpack.c.b16 %v3773, %v3771
    %v3848 = vpack.c.b16 %v3774, %v3772
    %v3849 = vpack.c.b16 %v3777, %v3775
    %v3850 = vpack.c.b16 %v3778, %v3776
    %v3851 = vpack.c.b16 %v3781, %v3779
    %v3852 = vpack.c.b16 %v3782, %v3780
    %v3853 = vpack.c.b16 %v3785, %v3783
    %v3854 = vpack.c.b16 %v3786, %v3784
    %v3855 = vpack.c.b16 %v3789, %v3787
    %v3856 = vpack.c.b16 %v3790, %v3788
    %v3857 = vpack.c.b16 %v3793, %v3791
    %v3858 = vpack.c.b16 %v3794, %v3792
    %3923 = vmatprep.subr.bf16.mxu0 %v3810
    %3924 = vmatpush1.bf16.msra.mxu0 %v3809
    %3925 = vmatprep.subr.bf16.mxu0 %v3808
    %3926 = vmatpush1.bf16.msra.mxu0 %v3807
    %3927 = vmatprep.subr.bf16.mxu0 %v3806
    %3928 = vmatpush1.bf16.msra.mxu0 %v3805
    %3929 = vmatprep.subr.bf16.mxu0 %v3804
    %3930 = vmatpush1.bf16.msra.mxu0 %v3803
    %3931 = vmatprep.subr.bf16.mxu0 %v3802
    %3932 = vmatpush1.bf16.msra.mxu0 %v3801
    %3933 = vmatprep.subr.bf16.mxu0 %v3800
    %3934 = vmatpush1.bf16.msra.mxu0 %v3799
    %3935 = vmatprep.subr.bf16.mxu0 %v3798
    %3936 = vmatpush1.bf16.msra.mxu0 %v3797
    %3937 = vmatprep.subr.bf16.mxu0 %v3796
    %3938 = vmatpush1.bf16.msra.mxu0 %v3795
    %3939 = vmatprep.subr.bf16.mxu0 %v3826
    %3940 = vmatpush2.bf16.msra.mxu0 %v3825
    %3941 = vmatprep.subr.bf16.mxu0 %v3824
    %3942 = vmatpush2.bf16.msra.mxu0 %v3823
    %3943 = vmatprep.subr.bf16.mxu0 %v3822
    %3944 = vmatpush2.bf16.msra.mxu0 %v3821
    %3945 = vmatprep.subr.bf16.mxu0 %v3820
    %3946 = vmatpush2.bf16.msra.mxu0 %v3819
    %3947 = vmatprep.subr.bf16.mxu0 %v3818
    %3948 = vmatpush2.bf16.msra.mxu0 %v3817
    %3949 = vmatprep.subr.bf16.mxu0 %v3816
    %3950 = vmatpush2.bf16.msra.mxu0 %v3815
    %3951 = vmatprep.subr.bf16.mxu0 %v3814
    %3952 = vmatpush2.bf16.msra.mxu0 %v3813
    %3953 = vmatprep.subr.bf16.mxu0 %v3812
    %3954 = vmatpush2.bf16.msra.mxu0 %v3811
    %3955 = vmatprep.mubr.bf16.mxu0 %v3524
    %3956 = vmatmul.mubr.bf16.gmra.mxu0 %v3523
    %v3957 = vpop.f32.mrf.mxu0
    %v3958 = vadd.f32 %v3596, %v3957
    %v3959 = vpop.f32.mrf.mxu0
    %v3960 = vadd.f32 %v3600, %v3959
    %v3961 = vpop.f32.mrf.mxu0
    %v3962 = vpop.f32.mrf.mxu0
    %3963 = vdwg.mxu0
    %3964 = vmatprep.subr.bf16.mxu0 %v3842
    %3965 = vmatpush1.bf16.msra.mxu0 %v3841
    %3966 = vmatprep.subr.bf16.mxu0 %v3840
    %3967 = vmatpush1.bf16.msra.mxu0 %v3839
    %3968 = vmatprep.subr.bf16.mxu0 %v3838
    %3969 = vmatpush1.bf16.msra.mxu0 %v3837
    %3970 = vmatprep.subr.bf16.mxu0 %v3836
    %3971 = vmatpush1.bf16.msra.mxu0 %v3835
    %3972 = vmatprep.subr.bf16.mxu0 %v3834
    %3973 = vmatpush1.bf16.msra.mxu0 %v3833
    %3974 = vmatprep.subr.bf16.mxu0 %v3832
    %3975 = vmatpush1.bf16.msra.mxu0 %v3831
    %3976 = vmatprep.subr.bf16.mxu0 %v3830
    %3977 = vmatpush1.bf16.msra.mxu0 %v3829
    %3978 = vmatprep.subr.bf16.mxu0 %v3828
    %3979 = vmatpush1.bf16.msra.mxu0 %v3827
    %3980 = vmatprep.subr.bf16.mxu0 %v3858
    %3981 = vmatpush2.bf16.msra.mxu0 %v3857
    %3982 = vmatprep.subr.bf16.mxu0 %v3856
    %3983 = vmatpush2.bf16.msra.mxu0 %v3855
    %3984 = vmatprep.subr.bf16.mxu0 %v3854
    %3985 = vmatpush2.bf16.msra.mxu0 %v3853
    %3986 = vmatprep.subr.bf16.mxu0 %v3852
    %3987 = vmatpush2.bf16.msra.mxu0 %v3851
    %3988 = vmatprep.subr.bf16.mxu0 %v3850
    %3989 = vmatpush2.bf16.msra.mxu0 %v3849
    %3990 = vmatprep.subr.bf16.mxu0 %v3848
    %3991 = vmatpush2.bf16.msra.mxu0 %v3847
    %3992 = vmatprep.subr.bf16.mxu0 %v3846
    %3993 = vmatpush2.bf16.msra.mxu0 %v3845
    %3994 = vmatprep.subr.bf16.mxu0 %v3844
    %3995 = vmatpush2.bf16.msra.mxu0 %v3843
    %3996 = vmatprep.mubr.bf16.mxu0 %v3526
    %3997 = vmatmul.mubr.bf16.gmra.mxu0 %v3525
    %v3998 = vpop.f32.mrf.mxu0
    %v3999 = vadd.f32 %v3958, %v3998
    %v4000 = vpop.f32.mrf.mxu0
    %v4001 = vadd.f32 %v3960, %v4000
    %v4002 = vpop.f32.mrf.mxu0
    %v4003 = vpop.f32.mrf.mxu0
    %4004 = vdwg.mxu0
    %v4005 = vmax.f32 %v3999, 0.0
    %v4006 = vmax.f32 %v4001, 0.0
    %v4007 = vpack.c.bf16 %v4005, %v4005
    %v4008 = vpack.c.bf16 %v4006, %v4006
    %v4009 = vld [vmem:[#allocation22] sm:$0xf]
    %v4010 = vld [vmem:[#allocation22 + $0x4] sm:$0xf]
    %v4011 = vld [vmem:[#allocation22 + $0x8] sm:$0xf]
    %v4012 = vld [vmem:[#allocation22 + $0xc] sm:$0xf]
    %v4013 = vld [vmem:[#allocation22 + $0x10] sm:$0xf]
    %v4014 = vld [vmem:[#allocation22 + $0x14] sm:$0xf]
    %v4015 = vld [vmem:[#allocation22 + $0x18] sm:$0xf]
    %v4016 = vld [vmem:[#allocation22 + $0x1c] sm:$0xf]
    %v4017 = vld [vmem:[#allocation22 + $0x20] sm:$0xf]
    %v4018 = vld [vmem:[#allocation22 + $0x24] sm:$0xf]
    %v4019 = vld [vmem:[#allocation22 + $0x28] sm:$0xf]
    %v4020 = vld [vmem:[#allocation22 + $0x2c] sm:$0xf]
    %v4021 = vld [vmem:[#allocation22 + $0x30] sm:$0xf]
    %v4022 = vld [vmem:[#allocation22 + $0x34] sm:$0xf]
    %v4023 = vld [vmem:[#allocation22 + $0x38] sm:$0xf]
    %v4024 = vld [vmem:[#allocation22 + $0x3c] sm:$0xf]
    %v4025 = vld [vmem:[#allocation22 + $0x40] sm:$0xf]
    %v4026 = vld [vmem:[#allocation22 + $0x44] sm:$0xf]
    %v4027 = vld [vmem:[#allocation22 + $0x48] sm:$0xf]
    %v4028 = vld [vmem:[#allocation22 + $0x4c] sm:$0xf]
    %v4029 = vld [vmem:[#allocation22 + $0x50] sm:$0xf]
    %v4030 = vld [vmem:[#allocation22 + $0x54] sm:$0xf]
    %v4031 = vld [vmem:[#allocation22 + $0x58] sm:$0xf]
    %v4032 = vld [vmem:[#allocation22 + $0x5c] sm:$0xf]
    %v4033 = vld [vmem:[#allocation22 + $0x60] sm:$0xf]
    %v4034 = vld [vmem:[#allocation22 + $0x64] sm:$0xf]
    %v4035 = vld [vmem:[#allocation22 + $0x68] sm:$0xf]
    %v4036 = vld [vmem:[#allocation22 + $0x6c] sm:$0xf]
    %v4037 = vld [vmem:[#allocation22 + $0x70] sm:$0xf]
    %v4038 = vld [vmem:[#allocation22 + $0x74] sm:$0xf]
    %v4039 = vld [vmem:[#allocation22 + $0x78] sm:$0xf]
    %v4040 = vld [vmem:[#allocation22 + $0x7c] sm:$0xf]
    %v4041 = vld [vmem:[%s18] sm:$0x1]
    %v4043 = vlaneseq
    %v4044 = vshrl.u32 %v4043, 7
    %v4045 = vsub.s32 0, %v4044
    %v4046 = vrot.slane %v4041, %v4045
    %v4080 = vunpack.c.l.b16 %v4009
    %v4081 = vunpack.c.l.b16 %v4010
    %v4082 = vunpack.c.l.b16 %v4011
    %v4083 = vunpack.c.l.b16 %v4012
    %v4084 = vunpack.c.l.b16 %v4013
    %v4085 = vunpack.c.l.b16 %v4014
    %v4086 = vunpack.c.l.b16 %v4015
    %v4087 = vunpack.c.l.b16 %v4016
    %v4088 = vunpack.c.l.b16 %v4017
    %v4089 = vunpack.c.l.b16 %v4018
    %v4090 = vunpack.c.l.b16 %v4019
    %v4091 = vunpack.c.l.b16 %v4020
    %v4092 = vunpack.c.l.b16 %v4021
    %v4093 = vunpack.c.l.b16 %v4022
    %v4094 = vunpack.c.l.b16 %v4023
    %v4095 = vunpack.c.l.b16 %v4024
    %v4096 = vunpack.c.l.b16 %v4025
    %v4097 = vunpack.c.l.b16 %v4026
    %v4098 = vunpack.c.l.b16 %v4027
    %v4099 = vunpack.c.l.b16 %v4028
    %v4100 = vunpack.c.l.b16 %v4029
    %v4101 = vunpack.c.l.b16 %v4030
    %v4102 = vunpack.c.l.b16 %v4031
    %v4103 = vunpack.c.l.b16 %v4032
    %v4104 = vunpack.c.l.b16 %v4033
    %v4105 = vunpack.c.l.b16 %v4034
    %v4106 = vunpack.c.l.b16 %v4035
    %v4107 = vunpack.c.l.b16 %v4036
    %v4108 = vunpack.c.l.b16 %v4037
    %v4109 = vunpack.c.l.b16 %v4038
    %v4110 = vunpack.c.l.b16 %v4039
    %v4111 = vunpack.c.l.b16 %v4040
    %v4112 = vpack.c.b16 %v4081, %v4080
    %v4113 = vpack.c.b16 %v4083, %v4082
    %v4114 = vpack.c.b16 %v4085, %v4084
    %v4115 = vpack.c.b16 %v4087, %v4086
    %v4116 = vpack.c.b16 %v4089, %v4088
    %v4117 = vpack.c.b16 %v4091, %v4090
    %v4118 = vpack.c.b16 %v4093, %v4092
    %v4119 = vpack.c.b16 %v4095, %v4094
    %v4120 = vpack.c.b16 %v4097, %v4096
    %v4121 = vpack.c.b16 %v4099, %v4098
    %v4122 = vpack.c.b16 %v4101, %v4100
    %v4123 = vpack.c.b16 %v4103, %v4102
    %v4124 = vpack.c.b16 %v4105, %v4104
    %v4125 = vpack.c.b16 %v4107, %v4106
    %v4126 = vpack.c.b16 %v4109, %v4108
    %v4127 = vpack.c.b16 %v4111, %v4110
    %4144 = vmatprep.subr.bf16.mxu0 0
    %4145 = vmatpush1.bf16.msra.mxu0 %v4119
    %4146 = vmatprep.subr.bf16.mxu0 0
    %4147 = vmatpush1.bf16.msra.mxu0 %v4118
    %4148 = vmatprep.subr.bf16.mxu0 0
    %4149 = vmatpush1.bf16.msra.mxu0 %v4117
    %4150 = vmatprep.subr.bf16.mxu0 0
    %4151 = vmatpush1.bf16.msra.mxu0 %v4116
    %4152 = vmatprep.subr.bf16.mxu0 0
    %4153 = vmatpush1.bf16.msra.mxu0 %v4115
    %4154 = vmatprep.subr.bf16.mxu0 0
    %4155 = vmatpush1.bf16.msra.mxu0 %v4114
    %4156 = vmatprep.subr.bf16.mxu0 0
    %4157 = vmatpush1.bf16.msra.mxu0 %v4113
    %4158 = vmatprep.subr.bf16.mxu0 0
    %4159 = vmatpush1.bf16.msra.mxu0 %v4112
    %4160 = vmatprep.subr.bf16.mxu0 0
    %4161 = vmatpush2.bf16.msra.mxu0 %v4127
    %4162 = vmatprep.subr.bf16.mxu0 0
    %4163 = vmatpush2.bf16.msra.mxu0 %v4126
    %4164 = vmatprep.subr.bf16.mxu0 0
    %4165 = vmatpush2.bf16.msra.mxu0 %v4125
    %4166 = vmatprep.subr.bf16.mxu0 0
    %4167 = vmatpush2.bf16.msra.mxu0 %v4124
    %4168 = vmatprep.subr.bf16.mxu0 0
    %4169 = vmatpush2.bf16.msra.mxu0 %v4123
    %4170 = vmatprep.subr.bf16.mxu0 0
    %4171 = vmatpush2.bf16.msra.mxu0 %v4122
    %4172 = vmatprep.subr.bf16.mxu0 0
    %4173 = vmatpush2.bf16.msra.mxu0 %v4121
    %4174 = vmatprep.subr.bf16.mxu0 0
    %4175 = vmatpush2.bf16.msra.mxu0 %v4120
    %4176 = vmatprep.mubr.bf16.mxu0 %v4008
    %4177 = vmatmul.mubr.bf16.gmra.mxu0 %v4007
    %v4178 = vpop.f32.mrf.mxu0
    %v4179 = vadd.f32 %v4046, %v4178
    %v4180 = vpop.f32.mrf.mxu0
    %v4181 = vpop.f32.mrf.mxu0
    %v4182 = vpop.f32.mrf.mxu0
    %4183 = vdwg.mxu0
    %v4184 = vsel %vm310, %v4179, -1e+30
    %4185 = vmax.xlane.f32.xlu0 %v4184
    %v4186 = vpop.xlane.xlu0 %4185
    %v4187 = vsub.f32 %v4184, %v4186
    %v4188 = vmul.f32 %v4187, 1.442695
    %v4189 = vpow.pop %v4188
    %v4190 = vsel %vm310, %v4189, 0.0
    %4191 = vadd.xlane.f32.xlu0 %v4190
    %v4192 = vpop.xlane.xlu0 %4191
    %v4193 = vrcp.pop %v4192
    %v4194 = vmul.f32 %v4190, %v4193
    %v4195 = vld [vmem:[#allocation7] sm:$0xff]
    %v4196 = vmul.f32 %v4195, %v4195
    %4197 = vadd.xlane.f32.xlu0 %v4196
    %v4198 = vpop.xlane.xlu0 %4197
    %v4199 = vmax.f32 %v4198, 1e-24
    %v4200 = vrsqrt.pop %v4199
    %v4201 = vmul.f32 %v4195, %v4200
    %v4202 = vpack.c.bf16 %v4201, %v4201
    %v4203 = vld [vmem:[#allocation23] sm:$0xff]
    %v4204 = vld [vmem:[#allocation23 + $0x8] sm:$0xff]
    %v4205 = vld [vmem:[#allocation23 + $0x10] sm:$0xff]
    %v4206 = vld [vmem:[#allocation23 + $0x18] sm:$0xff]
    %v4207 = vld [vmem:[#allocation23 + $0x20] sm:$0xff]
    %v4208 = vld [vmem:[#allocation23 + $0x28] sm:$0xff]
    %v4209 = vld [vmem:[#allocation23 + $0x30] sm:$0xff]
    %v4210 = vld [vmem:[#allocation23 + $0x38] sm:$0xff]
    %v4211 = vld [vmem:[#allocation23 + $0x40] sm:$0xff]
    %v4212 = vld [vmem:[#allocation23 + $0x48] sm:$0xff]
    %v4213 = vld [vmem:[#allocation23 + $0x50] sm:$0xff]
    %v4214 = vld [vmem:[#allocation23 + $0x58] sm:$0xff]
    %v4215 = vld [vmem:[#allocation23 + $0x60] sm:$0xff]
    %v4216 = vld [vmem:[#allocation23 + $0x68] sm:$0xff]
    %v4217 = vld [vmem:[#allocation23 + $0x70] sm:$0xff]
    %v4218 = vld [vmem:[#allocation23 + $0x78] sm:$0xff]
    %v4219 = vld [vmem:[#allocation23 + $0x80] sm:$0xff]
    %v4220 = vld [vmem:[#allocation23 + $0x88] sm:$0xff]
    %v4221 = vld [vmem:[#allocation23 + $0x90] sm:$0xff]
    %v4222 = vld [vmem:[#allocation23 + $0x98] sm:$0xff]
    %v4223 = vld [vmem:[#allocation23 + $0xa0] sm:$0xff]
    %v4224 = vld [vmem:[#allocation23 + $0xa8] sm:$0xff]
    %v4225 = vld [vmem:[#allocation23 + $0xb0] sm:$0xff]
    %v4226 = vld [vmem:[#allocation23 + $0xb8] sm:$0xff]
    %v4227 = vld [vmem:[#allocation23 + $0xc0] sm:$0xff]
    %v4228 = vld [vmem:[#allocation23 + $0xc8] sm:$0xff]
    %v4229 = vld [vmem:[#allocation23 + $0xd0] sm:$0xff]
    %v4230 = vld [vmem:[#allocation23 + $0xd8] sm:$0xff]
    %v4231 = vld [vmem:[#allocation23 + $0xe0] sm:$0xff]
    %v4232 = vld [vmem:[#allocation23 + $0xe8] sm:$0xff]
    %v4233 = vld [vmem:[#allocation23 + $0xf0] sm:$0xff]
    %v4234 = vld [vmem:[#allocation23 + $0xf8] sm:$0xff]
    %v4235 = vld [vmem:[%s20] sm:$0xf]
    %v4237 = vlaneseq
    %v4238 = vshrl.u32 %v4237, 7
    %v4239 = vsub.s32 0, %v4238
    %v4240 = vrot.slane %v4235, %v4239
    %v4241 = vlaneseq
    %v4242 = vshrl.u32 %v4241, 7
    %v4243 = vsub.s32 1, %v4242
    %v4244 = vrot.slane %v4235, %v4243
    %v4245 = vlaneseq
    %v4246 = vshrl.u32 %v4245, 7
    %v4247 = vsub.s32 2, %v4246
    %v4248 = vrot.slane %v4235, %v4247
    %v4249 = vlaneseq
    %v4250 = vshrl.u32 %v4249, 7
    %v4251 = vsub.s32 3, %v4250
    %v4252 = vrot.slane %v4235, %v4251
    %v4289 = vunpack.c.l.b16 %v4203
    %v4290 = vunpack.c.h.b16 %v4203
    %v4291 = vunpack.c.l.b16 %v4204
    %v4292 = vunpack.c.h.b16 %v4204
    %v4293 = vunpack.c.l.b16 %v4205
    %v4294 = vunpack.c.h.b16 %v4205
    %v4295 = vunpack.c.l.b16 %v4206
    %v4296 = vunpack.c.h.b16 %v4206
    %v4297 = vunpack.c.l.b16 %v4207
    %v4298 = vunpack.c.h.b16 %v4207
    %v4299 = vunpack.c.l.b16 %v4208
    %v4300 = vunpack.c.h.b16 %v4208
    %v4301 = vunpack.c.l.b16 %v4209
    %v4302 = vunpack.c.h.b16 %v4209
    %v4303 = vunpack.c.l.b16 %v4210
    %v4304 = vunpack.c.h.b16 %v4210
    %v4305 = vunpack.c.l.b16 %v4211
    %v4306 = vunpack.c.h.b16 %v4211
    %v4307 = vunpack.c.l.b16 %v4212
    %v4308 = vunpack.c.h.b16 %v4212
    %v4309 = vunpack.c.l.b16 %v4213
    %v4310 = vunpack.c.h.b16 %v4213
    %v4311 = vunpack.c.l.b16 %v4214
    %v4312 = vunpack.c.h.b16 %v4214
    %v4313 = vunpack.c.l.b16 %v4215
    %v4314 = vunpack.c.h.b16 %v4215
    %v4315 = vunpack.c.l.b16 %v4216
    %v4316 = vunpack.c.h.b16 %v4216
    %v4317 = vunpack.c.l.b16 %v4217
    %v4318 = vunpack.c.h.b16 %v4217
    %v4319 = vunpack.c.l.b16 %v4218
    %v4320 = vunpack.c.h.b16 %v4218
    %v4321 = vunpack.c.l.b16 %v4219
    %v4322 = vunpack.c.h.b16 %v4219
    %v4323 = vunpack.c.l.b16 %v4220
    %v4324 = vunpack.c.h.b16 %v4220
    %v4325 = vunpack.c.l.b16 %v4221
    %v4326 = vunpack.c.h.b16 %v4221
    %v4327 = vunpack.c.l.b16 %v4222
    %v4328 = vunpack.c.h.b16 %v4222
    %v4329 = vunpack.c.l.b16 %v4223
    %v4330 = vunpack.c.h.b16 %v4223
    %v4331 = vunpack.c.l.b16 %v4224
    %v4332 = vunpack.c.h.b16 %v4224
    %v4333 = vunpack.c.l.b16 %v4225
    %v4334 = vunpack.c.h.b16 %v4225
    %v4335 = vunpack.c.l.b16 %v4226
    %v4336 = vunpack.c.h.b16 %v4226
    %v4337 = vunpack.c.l.b16 %v4227
    %v4338 = vunpack.c.h.b16 %v4227
    %v4339 = vunpack.c.l.b16 %v4228
    %v4340 = vunpack.c.h.b16 %v4228
    %v4341 = vunpack.c.l.b16 %v4229
    %v4342 = vunpack.c.h.b16 %v4229
    %v4343 = vunpack.c.l.b16 %v4230
    %v4344 = vunpack.c.h.b16 %v4230
    %v4345 = vunpack.c.l.b16 %v4231
    %v4346 = vunpack.c.h.b16 %v4231
    %v4347 = vunpack.c.l.b16 %v4232
    %v4348 = vunpack.c.h.b16 %v4232
    %v4349 = vunpack.c.l.b16 %v4233
    %v4350 = vunpack.c.h.b16 %v4233
    %v4351 = vunpack.c.l.b16 %v4234
    %v4352 = vunpack.c.h.b16 %v4234
    %v4353 = vpack.c.b16 %v4293, %v4289
    %v4354 = vpack.c.b16 %v4294, %v4290
    %v4355 = vpack.c.b16 %v4295, %v4291
    %v4356 = vpack.c.b16 %v4296, %v4292
    %v4357 = vpack.c.b16 %v4301, %v4297
    %v4358 = vpack.c.b16 %v4302, %v4298
    %v4359 = vpack.c.b16 %v4303, %v4299
    %v4360 = vpack.c.b16 %v4304, %v4300
    %v4361 = vpack.c.b16 %v4309, %v4305
    %v4362 = vpack.c.b16 %v4310, %v4306
    %v4363 = vpack.c.b16 %v4311, %v4307
    %v4364 = vpack.c.b16 %v4312, %v4308
    %v4365 = vpack.c.b16 %v4317, %v4313
    %v4366 = vpack.c.b16 %v4318, %v4314
    %v4367 = vpack.c.b16 %v4319, %v4315
    %v4368 = vpack.c.b16 %v4320, %v4316
    %v4369 = vpack.c.b16 %v4325, %v4321
    %v4370 = vpack.c.b16 %v4326, %v4322
    %v4371 = vpack.c.b16 %v4327, %v4323
    %v4372 = vpack.c.b16 %v4328, %v4324
    %v4373 = vpack.c.b16 %v4333, %v4329
    %v4374 = vpack.c.b16 %v4334, %v4330
    %v4375 = vpack.c.b16 %v4335, %v4331
    %v4376 = vpack.c.b16 %v4336, %v4332
    %v4377 = vpack.c.b16 %v4341, %v4337
    %v4378 = vpack.c.b16 %v4342, %v4338
    %v4379 = vpack.c.b16 %v4343, %v4339
    %v4380 = vpack.c.b16 %v4344, %v4340
    %v4381 = vpack.c.b16 %v4349, %v4345
    %v4382 = vpack.c.b16 %v4350, %v4346
    %v4383 = vpack.c.b16 %v4351, %v4347
    %v4384 = vpack.c.b16 %v4352, %v4348
    %4417 = vmatprep.subr.bf16.mxu0 %v4382
    %4418 = vmatpush1.bf16.msra.mxu0 %v4381
    %4419 = vmatprep.subr.bf16.mxu0 %v4378
    %4420 = vmatpush1.bf16.msra.mxu0 %v4377
    %4421 = vmatprep.subr.bf16.mxu0 %v4374
    %4422 = vmatpush1.bf16.msra.mxu0 %v4373
    %4423 = vmatprep.subr.bf16.mxu0 %v4370
    %4424 = vmatpush1.bf16.msra.mxu0 %v4369
    %4425 = vmatprep.subr.bf16.mxu0 %v4366
    %4426 = vmatpush1.bf16.msra.mxu0 %v4365
    %4427 = vmatprep.subr.bf16.mxu0 %v4362
    %4428 = vmatpush1.bf16.msra.mxu0 %v4361
    %4429 = vmatprep.subr.bf16.mxu0 %v4358
    %4430 = vmatpush1.bf16.msra.mxu0 %v4357
    %4431 = vmatprep.subr.bf16.mxu0 %v4354
    %4432 = vmatpush1.bf16.msra.mxu0 %v4353
    %4433 = vmatprep.subr.bf16.mxu0 0
    %4434 = vmatpush2.bf16.msra.mxu0 0
    %4435 = vmatprep.subr.bf16.mxu0 0
    %4436 = vmatpush2.bf16.msra.mxu0 0
    %4437 = vmatprep.subr.bf16.mxu0 0
    %4438 = vmatpush2.bf16.msra.mxu0 0
    %4439 = vmatprep.subr.bf16.mxu0 0
    %4440 = vmatpush2.bf16.msra.mxu0 0
    %4441 = vmatprep.subr.bf16.mxu0 0
    %4442 = vmatpush2.bf16.msra.mxu0 0
    %4443 = vmatprep.subr.bf16.mxu0 0
    %4444 = vmatpush2.bf16.msra.mxu0 0
    %4445 = vmatprep.subr.bf16.mxu0 0
    %4446 = vmatpush2.bf16.msra.mxu0 0
    %4447 = vmatprep.subr.bf16.mxu0 0
    %4448 = vmatpush2.bf16.msra.mxu0 0
    %4449 = vmatprep.mubr.bf16.mxu0 0
    %4450 = vmatmul.mubr.bf16.gmra.mxu0 %v4202
    %v4451 = vpop.f32.mrf.mxu0
    %v4452 = vadd.f32 %v4240, %v4451
    %v4453 = vpop.f32.mrf.mxu0
    %v4454 = vadd.f32 %v4244, %v4453
    %v4455 = vpop.f32.mrf.mxu0
    %v4456 = vpop.f32.mrf.mxu0
    %4457 = vdwg.mxu0
    %4458 = vmatprep.subr.bf16.mxu0 %v4384
    %4459 = vmatpush1.bf16.msra.mxu0 %v4383
    %4460 = vmatprep.subr.bf16.mxu0 %v4380
    %4461 = vmatpush1.bf16.msra.mxu0 %v4379
    %4462 = vmatprep.subr.bf16.mxu0 %v4376
    %4463 = vmatpush1.bf16.msra.mxu0 %v4375
    %4464 = vmatprep.subr.bf16.mxu0 %v4372
    %4465 = vmatpush1.bf16.msra.mxu0 %v4371
    %4466 = vmatprep.subr.bf16.mxu0 %v4368
    %4467 = vmatpush1.bf16.msra.mxu0 %v4367
    %4468 = vmatprep.subr.bf16.mxu0 %v4364
    %4469 = vmatpush1.bf16.msra.mxu0 %v4363
    %4470 = vmatprep.subr.bf16.mxu0 %v4360
    %4471 = vmatpush1.bf16.msra.mxu0 %v4359
    %4472 = vmatprep.subr.bf16.mxu0 %v4356
    %4473 = vmatpush1.bf16.msra.mxu0 %v4355
    %4474 = vmatprep.subr.bf16.mxu0 0
    %4475 = vmatpush2.bf16.msra.mxu0 0
    %4476 = vmatprep.subr.bf16.mxu0 0
    %4477 = vmatpush2.bf16.msra.mxu0 0
    %4478 = vmatprep.subr.bf16.mxu0 0
    %4479 = vmatpush2.bf16.msra.mxu0 0
    %4480 = vmatprep.subr.bf16.mxu0 0
    %4481 = vmatpush2.bf16.msra.mxu0 0
    %4482 = vmatprep.subr.bf16.mxu0 0
    %4483 = vmatpush2.bf16.msra.mxu0 0
    %4484 = vmatprep.subr.bf16.mxu0 0
    %4485 = vmatpush2.bf16.msra.mxu0 0
    %4486 = vmatprep.subr.bf16.mxu0 0
    %4487 = vmatpush2.bf16.msra.mxu0 0
    %4488 = vmatprep.subr.bf16.mxu0 0
    %4489 = vmatpush2.bf16.msra.mxu0 0
    %4490 = vmatprep.mubr.bf16.mxu0 0
    %4491 = vmatmul.mubr.bf16.gmra.mxu0 %v4202
    %v4492 = vpop.f32.mrf.mxu0
    %v4493 = vadd.f32 %v4248, %v4492
    %v4494 = vpop.f32.mrf.mxu0
    %v4495 = vadd.f32 %v4252, %v4494
    %v4496 = vpop.f32.mrf.mxu0
    %v4497 = vpop.f32.mrf.mxu0
    %4498 = vdwg.mxu0
    %v4499 = vmax.f32 %v4452, 0.0
    %v4500 = vmax.f32 %v4454, 0.0
    %v4501 = vmax.f32 %v4493, 0.0
    %v4502 = vmax.f32 %v4495, 0.0
    %v4503 = vpack.c.bf16 %v4499, %v4499
    %v4504 = vpack.c.bf16 %v4500, %v4500
    %v4505 = vpack.c.bf16 %v4501, %v4501
    %v4506 = vpack.c.bf16 %v4502, %v4502
    %v4507 = vld [vmem:[#allocation25] sm:$0xff]
    %v4508 = vld [vmem:[#allocation25 + $0x8] sm:$0xff]
    %v4509 = vld [vmem:[#allocation25 + $0x10] sm:$0xff]
    %v4510 = vld [vmem:[#allocation25 + $0x18] sm:$0xff]
    %v4511 = vld [vmem:[#allocation25 + $0x20] sm:$0xff]
    %v4512 = vld [vmem:[#allocation25 + $0x28] sm:$0xff]
    %v4513 = vld [vmem:[#allocation25 + $0x30] sm:$0xff]
    %v4514 = vld [vmem:[#allocation25 + $0x38] sm:$0xff]
    %v4515 = vld [vmem:[#allocation25 + $0x40] sm:$0xff]
    %v4516 = vld [vmem:[#allocation25 + $0x48] sm:$0xff]
    %v4517 = vld [vmem:[#allocation25 + $0x50] sm:$0xff]
    %v4518 = vld [vmem:[#allocation25 + $0x58] sm:$0xff]
    %v4519 = vld [vmem:[#allocation25 + $0x60] sm:$0xff]
    %v4520 = vld [vmem:[#allocation25 + $0x68] sm:$0xff]
    %v4521 = vld [vmem:[#allocation25 + $0x70] sm:$0xff]
    %v4522 = vld [vmem:[#allocation25 + $0x78] sm:$0xff]
    %v4523 = vld [vmem:[#allocation25 + $0x80] sm:$0xff]
    %v4524 = vld [vmem:[#allocation25 + $0x88] sm:$0xff]
    %v4525 = vld [vmem:[#allocation25 + $0x90] sm:$0xff]
    %v4526 = vld [vmem:[#allocation25 + $0x98] sm:$0xff]
    %v4527 = vld [vmem:[#allocation25 + $0xa0] sm:$0xff]
    %v4528 = vld [vmem:[#allocation25 + $0xa8] sm:$0xff]
    %v4529 = vld [vmem:[#allocation25 + $0xb0] sm:$0xff]
    %v4530 = vld [vmem:[#allocation25 + $0xb8] sm:$0xff]
    %v4531 = vld [vmem:[#allocation25 + $0xc0] sm:$0xff]
    %v4532 = vld [vmem:[#allocation25 + $0xc8] sm:$0xff]
    %v4533 = vld [vmem:[#allocation25 + $0xd0] sm:$0xff]
    %v4534 = vld [vmem:[#allocation25 + $0xd8] sm:$0xff]
    %v4535 = vld [vmem:[#allocation25 + $0xe0] sm:$0xff]
    %v4536 = vld [vmem:[#allocation25 + $0xe8] sm:$0xff]
    %v4537 = vld [vmem:[#allocation25 + $0xf0] sm:$0xff]
    %v4538 = vld [vmem:[#allocation25 + $0xf8] sm:$0xff]
    %v4539 = vld [vmem:[#allocation25 + $0x100] sm:$0xff]
    %v4540 = vld [vmem:[#allocation25 + $0x108] sm:$0xff]
    %v4541 = vld [vmem:[#allocation25 + $0x110] sm:$0xff]
    %v4542 = vld [vmem:[#allocation25 + $0x118] sm:$0xff]
    %v4543 = vld [vmem:[#allocation25 + $0x120] sm:$0xff]
    %v4544 = vld [vmem:[#allocation25 + $0x128] sm:$0xff]
    %v4545 = vld [vmem:[#allocation25 + $0x130] sm:$0xff]
    %v4546 = vld [vmem:[#allocation25 + $0x138] sm:$0xff]
    %v4547 = vld [vmem:[#allocation25 + $0x140] sm:$0xff]
    %v4548 = vld [vmem:[#allocation25 + $0x148] sm:$0xff]
    %v4549 = vld [vmem:[#allocation25 + $0x150] sm:$0xff]
    %v4550 = vld [vmem:[#allocation25 + $0x158] sm:$0xff]
    %v4551 = vld [vmem:[#allocation25 + $0x160] sm:$0xff]
    %v4552 = vld [vmem:[#allocation25 + $0x168] sm:$0xff]
    %v4553 = vld [vmem:[#allocation25 + $0x170] sm:$0xff]
    %v4554 = vld [vmem:[#allocation25 + $0x178] sm:$0xff]
    %v4555 = vld [vmem:[#allocation25 + $0x180] sm:$0xff]
    %v4556 = vld [vmem:[#allocation25 + $0x188] sm:$0xff]
    %v4557 = vld [vmem:[#allocation25 + $0x190] sm:$0xff]
    %v4558 = vld [vmem:[#allocation25 + $0x198] sm:$0xff]
    %v4559 = vld [vmem:[#allocation25 + $0x1a0] sm:$0xff]
    %v4560 = vld [vmem:[#allocation25 + $0x1a8] sm:$0xff]
    %v4561 = vld [vmem:[#allocation25 + $0x1b0] sm:$0xff]
    %v4562 = vld [vmem:[#allocation25 + $0x1b8] sm:$0xff]
    %v4563 = vld [vmem:[#allocation25 + $0x1c0] sm:$0xff]
    %v4564 = vld [vmem:[#allocation25 + $0x1c8] sm:$0xff]
    %v4565 = vld [vmem:[#allocation25 + $0x1d0] sm:$0xff]
    %v4566 = vld [vmem:[#allocation25 + $0x1d8] sm:$0xff]
    %v4567 = vld [vmem:[#allocation25 + $0x1e0] sm:$0xff]
    %v4568 = vld [vmem:[#allocation25 + $0x1e8] sm:$0xff]
    %v4569 = vld [vmem:[#allocation25 + $0x1f0] sm:$0xff]
    %v4570 = vld [vmem:[#allocation25 + $0x1f8] sm:$0xff]
    %v4571 = vld [vmem:[#allocation25 + $0x200] sm:$0xff]
    %v4572 = vld [vmem:[#allocation25 + $0x208] sm:$0xff]
    %v4573 = vld [vmem:[#allocation25 + $0x210] sm:$0xff]
    %v4574 = vld [vmem:[#allocation25 + $0x218] sm:$0xff]
    %v4575 = vld [vmem:[#allocation25 + $0x220] sm:$0xff]
    %v4576 = vld [vmem:[#allocation25 + $0x228] sm:$0xff]
    %v4577 = vld [vmem:[#allocation25 + $0x230] sm:$0xff]
    %v4578 = vld [vmem:[#allocation25 + $0x238] sm:$0xff]
    %v4579 = vld [vmem:[#allocation25 + $0x240] sm:$0xff]
    %v4580 = vld [vmem:[#allocation25 + $0x248] sm:$0xff]
    %v4581 = vld [vmem:[#allocation25 + $0x250] sm:$0xff]
    %v4582 = vld [vmem:[#allocation25 + $0x258] sm:$0xff]
    %v4583 = vld [vmem:[#allocation25 + $0x260] sm:$0xff]
    %v4584 = vld [vmem:[#allocation25 + $0x268] sm:$0xff]
    %v4585 = vld [vmem:[#allocation25 + $0x270] sm:$0xff]
    %v4586 = vld [vmem:[#allocation25 + $0x278] sm:$0xff]
    %v4587 = vld [vmem:[#allocation25 + $0x280] sm:$0xff]
    %v4588 = vld [vmem:[#allocation25 + $0x288] sm:$0xff]
    %v4589 = vld [vmem:[#allocation25 + $0x290] sm:$0xff]
    %v4590 = vld [vmem:[#allocation25 + $0x298] sm:$0xff]
    %v4591 = vld [vmem:[#allocation25 + $0x2a0] sm:$0xff]
    %v4592 = vld [vmem:[#allocation25 + $0x2a8] sm:$0xff]
    %v4593 = vld [vmem:[#allocation25 + $0x2b0] sm:$0xff]
    %v4594 = vld [vmem:[#allocation25 + $0x2b8] sm:$0xff]
    %v4595 = vld [vmem:[#allocation25 + $0x2c0] sm:$0xff]
    %v4596 = vld [vmem:[#allocation25 + $0x2c8] sm:$0xff]
    %v4597 = vld [vmem:[#allocation25 + $0x2d0] sm:$0xff]
    %v4598 = vld [vmem:[#allocation25 + $0x2d8] sm:$0xff]
    %v4599 = vld [vmem:[#allocation25 + $0x2e0] sm:$0xff]
    %v4600 = vld [vmem:[#allocation25 + $0x2e8] sm:$0xff]
    %v4601 = vld [vmem:[#allocation25 + $0x2f0] sm:$0xff]
    %v4602 = vld [vmem:[#allocation25 + $0x2f8] sm:$0xff]
    %v4603 = vld [vmem:[#allocation25 + $0x300] sm:$0xff]
    %v4604 = vld [vmem:[#allocation25 + $0x308] sm:$0xff]
    %v4605 = vld [vmem:[#allocation25 + $0x310] sm:$0xff]
    %v4606 = vld [vmem:[#allocation25 + $0x318] sm:$0xff]
    %v4607 = vld [vmem:[#allocation25 + $0x320] sm:$0xff]
    %v4608 = vld [vmem:[#allocation25 + $0x328] sm:$0xff]
    %v4609 = vld [vmem:[#allocation25 + $0x330] sm:$0xff]
    %v4610 = vld [vmem:[#allocation25 + $0x338] sm:$0xff]
    %v4611 = vld [vmem:[#allocation25 + $0x340] sm:$0xff]
    %v4612 = vld [vmem:[#allocation25 + $0x348] sm:$0xff]
    %v4613 = vld [vmem:[#allocation25 + $0x350] sm:$0xff]
    %v4614 = vld [vmem:[#allocation25 + $0x358] sm:$0xff]
    %v4615 = vld [vmem:[#allocation25 + $0x360] sm:$0xff]
    %v4616 = vld [vmem:[#allocation25 + $0x368] sm:$0xff]
    %v4617 = vld [vmem:[#allocation25 + $0x370] sm:$0xff]
    %v4618 = vld [vmem:[#allocation25 + $0x378] sm:$0xff]
    %v4619 = vld [vmem:[#allocation25 + $0x380] sm:$0xff]
    %v4620 = vld [vmem:[#allocation25 + $0x388] sm:$0xff]
    %v4621 = vld [vmem:[#allocation25 + $0x390] sm:$0xff]
    %v4622 = vld [vmem:[#allocation25 + $0x398] sm:$0xff]
    %v4623 = vld [vmem:[#allocation25 + $0x3a0] sm:$0xff]
    %v4624 = vld [vmem:[#allocation25 + $0x3a8] sm:$0xff]
    %v4625 = vld [vmem:[#allocation25 + $0x3b0] sm:$0xff]
    %v4626 = vld [vmem:[#allocation25 + $0x3b8] sm:$0xff]
    %v4627 = vld [vmem:[#allocation25 + $0x3c0] sm:$0xff]
    %v4628 = vld [vmem:[#allocation25 + $0x3c8] sm:$0xff]
    %v4629 = vld [vmem:[#allocation25 + $0x3d0] sm:$0xff]
    %v4630 = vld [vmem:[#allocation25 + $0x3d8] sm:$0xff]
    %v4631 = vld [vmem:[#allocation25 + $0x3e0] sm:$0xff]
    %v4632 = vld [vmem:[#allocation25 + $0x3e8] sm:$0xff]
    %v4633 = vld [vmem:[#allocation25 + $0x3f0] sm:$0xff]
    %v4634 = vld [vmem:[#allocation25 + $0x3f8] sm:$0xff]
    %v4635 = vld [vmem:[%s22] sm:$0xf]
    %v4637 = vlaneseq
    %v4638 = vshrl.u32 %v4637, 7
    %v4639 = vsub.s32 0, %v4638
    %v4640 = vrot.slane %v4635, %v4639
    %v4641 = vlaneseq
    %v4642 = vshrl.u32 %v4641, 7
    %v4643 = vsub.s32 1, %v4642
    %v4644 = vrot.slane %v4635, %v4643
    %v4645 = vlaneseq
    %v4646 = vshrl.u32 %v4645, 7
    %v4647 = vsub.s32 2, %v4646
    %v4648 = vrot.slane %v4635, %v4647
    %v4649 = vlaneseq
    %v4650 = vshrl.u32 %v4649, 7
    %v4651 = vsub.s32 3, %v4650
    %v4652 = vrot.slane %v4635, %v4651
    %v4785 = vunpack.c.l.b16 %v4507
    %v4786 = vunpack.c.h.b16 %v4507
    %v4787 = vunpack.c.l.b16 %v4508
    %v4788 = vunpack.c.h.b16 %v4508
    %v4789 = vunpack.c.l.b16 %v4509
    %v4790 = vunpack.c.h.b16 %v4509
    %v4791 = vunpack.c.l.b16 %v4510
    %v4792 = vunpack.c.h.b16 %v4510
    %v4793 = vunpack.c.l.b16 %v4511
    %v4794 = vunpack.c.h.b16 %v4511
    %v4795 = vunpack.c.l.b16 %v4512
    %v4796 = vunpack.c.h.b16 %v4512
    %v4797 = vunpack.c.l.b16 %v4513
    %v4798 = vunpack.c.h.b16 %v4513
    %v4799 = vunpack.c.l.b16 %v4514
    %v4800 = vunpack.c.h.b16 %v4514
    %v4801 = vunpack.c.l.b16 %v4515
    %v4802 = vunpack.c.h.b16 %v4515
    %v4803 = vunpack.c.l.b16 %v4516
    %v4804 = vunpack.c.h.b16 %v4516
    %v4805 = vunpack.c.l.b16 %v4517
    %v4806 = vunpack.c.h.b16 %v4517
    %v4807 = vunpack.c.l.b16 %v4518
    %v4808 = vunpack.c.h.b16 %v4518
    %v4809 = vunpack.c.l.b16 %v4519
    %v4810 = vunpack.c.h.b16 %v4519
    %v4811 = vunpack.c.l.b16 %v4520
    %v4812 = vunpack.c.h.b16 %v4520
    %v4813 = vunpack.c.l.b16 %v4521
    %v4814 = vunpack.c.h.b16 %v4521
    %v4815 = vunpack.c.l.b16 %v4522
    %v4816 = vunpack.c.h.b16 %v4522
    %v4817 = vunpack.c.l.b16 %v4523
    %v4818 = vunpack.c.h.b16 %v4523
    %v4819 = vunpack.c.l.b16 %v4524
    %v4820 = vunpack.c.h.b16 %v4524
    %v4821 = vunpack.c.l.b16 %v4525
    %v4822 = vunpack.c.h.b16 %v4525
    %v4823 = vunpack.c.l.b16 %v4526
    %v4824 = vunpack.c.h.b16 %v4526
    %v4825 = vunpack.c.l.b16 %v4527
    %v4826 = vunpack.c.h.b16 %v4527
    %v4827 = vunpack.c.l.b16 %v4528
    %v4828 = vunpack.c.h.b16 %v4528
    %v4829 = vunpack.c.l.b16 %v4529
    %v4830 = vunpack.c.h.b16 %v4529
    %v4831 = vunpack.c.l.b16 %v4530
    %v4832 = vunpack.c.h.b16 %v4530
    %v4833 = vunpack.c.l.b16 %v4531
    %v4834 = vunpack.c.h.b16 %v4531
    %v4835 = vunpack.c.l.b16 %v4532
    %v4836 = vunpack.c.h.b16 %v4532
    %v4837 = vunpack.c.l.b16 %v4533
    %v4838 = vunpack.c.h.b16 %v4533
    %v4839 = vunpack.c.l.b16 %v4534
    %v4840 = vunpack.c.h.b16 %v4534
    %v4841 = vunpack.c.l.b16 %v4535
    %v4842 = vunpack.c.h.b16 %v4535
    %v4843 = vunpack.c.l.b16 %v4536
    %v4844 = vunpack.c.h.b16 %v4536
    %v4845 = vunpack.c.l.b16 %v4537
    %v4846 = vunpack.c.h.b16 %v4537
    %v4847 = vunpack.c.l.b16 %v4538
    %v4848 = vunpack.c.h.b16 %v4538
    %v4849 = vunpack.c.l.b16 %v4539
    %v4850 = vunpack.c.h.b16 %v4539
    %v4851 = vunpack.c.l.b16 %v4540
    %v4852 = vunpack.c.h.b16 %v4540
    %v4853 = vunpack.c.l.b16 %v4541
    %v4854 = vunpack.c.h.b16 %v4541
    %v4855 = vunpack.c.l.b16 %v4542
    %v4856 = vunpack.c.h.b16 %v4542
    %v4857 = vunpack.c.l.b16 %v4543
    %v4858 = vunpack.c.h.b16 %v4543
    %v4859 = vunpack.c.l.b16 %v4544
    %v4860 = vunpack.c.h.b16 %v4544
    %v4861 = vunpack.c.l.b16 %v4545
    %v4862 = vunpack.c.h.b16 %v4545
    %v4863 = vunpack.c.l.b16 %v4546
    %v4864 = vunpack.c.h.b16 %v4546
    %v4865 = vunpack.c.l.b16 %v4547
    %v4866 = vunpack.c.h.b16 %v4547
    %v4867 = vunpack.c.l.b16 %v4548
    %v4868 = vunpack.c.h.b16 %v4548
    %v4869 = vunpack.c.l.b16 %v4549
    %v4870 = vunpack.c.h.b16 %v4549
    %v4871 = vunpack.c.l.b16 %v4550
    %v4872 = vunpack.c.h.b16 %v4550
    %v4873 = vunpack.c.l.b16 %v4551
    %v4874 = vunpack.c.h.b16 %v4551
    %v4875 = vunpack.c.l.b16 %v4552
    %v4876 = vunpack.c.h.b16 %v4552
    %v4877 = vunpack.c.l.b16 %v4553
    %v4878 = vunpack.c.h.b16 %v4553
    %v4879 = vunpack.c.l.b16 %v4554
    %v4880 = vunpack.c.h.b16 %v4554
    %v4881 = vunpack.c.l.b16 %v4555
    %v4882 = vunpack.c.h.b16 %v4555
    %v4883 = vunpack.c.l.b16 %v4556
    %v4884 = vunpack.c.h.b16 %v4556
    %v4885 = vunpack.c.l.b16 %v4557
    %v4886 = vunpack.c.h.b16 %v4557
    %v4887 = vunpack.c.l.b16 %v4558
    %v4888 = vunpack.c.h.b16 %v4558
    %v4889 = vunpack.c.l.b16 %v4559
    %v4890 = vunpack.c.h.b16 %v4559
    %v4891 = vunpack.c.l.b16 %v4560
    %v4892 = vunpack.c.h.b16 %v4560
    %v4893 = vunpack.c.l.b16 %v4561
    %v4894 = vunpack.c.h.b16 %v4561
    %v4895 = vunpack.c.l.b16 %v4562
    %v4896 = vunpack.c.h.b16 %v4562
    %v4897 = vunpack.c.l.b16 %v4563
    %v4898 = vunpack.c.h.b16 %v4563
    %v4899 = vunpack.c.l.b16 %v4564
    %v4900 = vunpack.c.h.b16 %v4564
    %v4901 = vunpack.c.l.b16 %v4565
    %v4902 = vunpack.c.h.b16 %v4565
    %v4903 = vunpack.c.l.b16 %v4566
    %v4904 = vunpack.c.h.b16 %v4566
    %v4905 = vunpack.c.l.b16 %v4567
    %v4906 = vunpack.c.h.b16 %v4567
    %v4907 = vunpack.c.l.b16 %v4568
    %v4908 = vunpack.c.h.b16 %v4568
    %v4909 = vunpack.c.l.b16 %v4569
    %v4910 = vunpack.c.h.b16 %v4569
    %v4911 = vunpack.c.l.b16 %v4570
    %v4912 = vunpack.c.h.b16 %v4570
    %v4913 = vunpack.c.l.b16 %v4571
    %v4914 = vunpack.c.h.b16 %v4571
    %v4915 = vunpack.c.l.b16 %v4572
    %v4916 = vunpack.c.h.b16 %v4572
    %v4917 = vunpack.c.l.b16 %v4573
    %v4918 = vunpack.c.h.b16 %v4573
    %v4919 = vunpack.c.l.b16 %v4574
    %v4920 = vunpack.c.h.b16 %v4574
    %v4921 = vunpack.c.l.b16 %v4575
    %v4922 = vunpack.c.h.b16 %v4575
    %v4923 = vunpack.c.l.b16 %v4576
    %v4924 = vunpack.c.h.b16 %v4576
    %v4925 = vunpack.c.l.b16 %v4577
    %v4926 = vunpack.c.h.b16 %v4577
    %v4927 = vunpack.c.l.b16 %v4578
    %v4928 = vunpack.c.h.b16 %v4578
    %v4929 = vunpack.c.l.b16 %v4579
    %v4930 = vunpack.c.h.b16 %v4579
    %v4931 = vunpack.c.l.b16 %v4580
    %v4932 = vunpack.c.h.b16 %v4580
    %v4933 = vunpack.c.l.b16 %v4581
    %v4934 = vunpack.c.h.b16 %v4581
    %v4935 = vunpack.c.l.b16 %v4582
    %v4936 = vunpack.c.h.b16 %v4582
    %v4937 = vunpack.c.l.b16 %v4583
    %v4938 = vunpack.c.h.b16 %v4583
    %v4939 = vunpack.c.l.b16 %v4584
    %v4940 = vunpack.c.h.b16 %v4584
    %v4941 = vunpack.c.l.b16 %v4585
    %v4942 = vunpack.c.h.b16 %v4585
    %v4943 = vunpack.c.l.b16 %v4586
    %v4944 = vunpack.c.h.b16 %v4586
    %v4945 = vunpack.c.l.b16 %v4587
    %v4946 = vunpack.c.h.b16 %v4587
    %v4947 = vunpack.c.l.b16 %v4588
    %v4948 = vunpack.c.h.b16 %v4588
    %v4949 = vunpack.c.l.b16 %v4589
    %v4950 = vunpack.c.h.b16 %v4589
    %v4951 = vunpack.c.l.b16 %v4590
    %v4952 = vunpack.c.h.b16 %v4590
    %v4953 = vunpack.c.l.b16 %v4591
    %v4954 = vunpack.c.h.b16 %v4591
    %v4955 = vunpack.c.l.b16 %v4592
    %v4956 = vunpack.c.h.b16 %v4592
    %v4957 = vunpack.c.l.b16 %v4593
    %v4958 = vunpack.c.h.b16 %v4593
    %v4959 = vunpack.c.l.b16 %v4594
    %v4960 = vunpack.c.h.b16 %v4594
    %v4961 = vunpack.c.l.b16 %v4595
    %v4962 = vunpack.c.h.b16 %v4595
    %v4963 = vunpack.c.l.b16 %v4596
    %v4964 = vunpack.c.h.b16 %v4596
    %v4965 = vunpack.c.l.b16 %v4597
    %v4966 = vunpack.c.h.b16 %v4597
    %v4967 = vunpack.c.l.b16 %v4598
    %v4968 = vunpack.c.h.b16 %v4598
    %v4969 = vunpack.c.l.b16 %v4599
    %v4970 = vunpack.c.h.b16 %v4599
    %v4971 = vunpack.c.l.b16 %v4600
    %v4972 = vunpack.c.h.b16 %v4600
    %v4973 = vunpack.c.l.b16 %v4601
    %v4974 = vunpack.c.h.b16 %v4601
    %v4975 = vunpack.c.l.b16 %v4602
    %v4976 = vunpack.c.h.b16 %v4602
    %v4977 = vunpack.c.l.b16 %v4603
    %v4978 = vunpack.c.h.b16 %v4603
    %v4979 = vunpack.c.l.b16 %v4604
    %v4980 = vunpack.c.h.b16 %v4604
    %v4981 = vunpack.c.l.b16 %v4605
    %v4982 = vunpack.c.h.b16 %v4605
    %v4983 = vunpack.c.l.b16 %v4606
    %v4984 = vunpack.c.h.b16 %v4606
    %v4985 = vunpack.c.l.b16 %v4607
    %v4986 = vunpack.c.h.b16 %v4607
    %v4987 = vunpack.c.l.b16 %v4608
    %v4988 = vunpack.c.h.b16 %v4608
    %v4989 = vunpack.c.l.b16 %v4609
    %v4990 = vunpack.c.h.b16 %v4609
    %v4991 = vunpack.c.l.b16 %v4610
    %v4992 = vunpack.c.h.b16 %v4610
    %v4993 = vunpack.c.l.b16 %v4611
    %v4994 = vunpack.c.h.b16 %v4611
    %v4995 = vunpack.c.l.b16 %v4612
    %v4996 = vunpack.c.h.b16 %v4612
    %v4997 = vunpack.c.l.b16 %v4613
    %v4998 = vunpack.c.h.b16 %v4613
    %v4999 = vunpack.c.l.b16 %v4614
    %v5000 = vunpack.c.h.b16 %v4614
    %v5001 = vunpack.c.l.b16 %v4615
    %v5002 = vunpack.c.h.b16 %v4615
    %v5003 = vunpack.c.l.b16 %v4616
    %v5004 = vunpack.c.h.b16 %v4616
    %v5005 = vunpack.c.l.b16 %v4617
    %v5006 = vunpack.c.h.b16 %v4617
    %v5007 = vunpack.c.l.b16 %v4618
    %v5008 = vunpack.c.h.b16 %v4618
    %v5009 = vunpack.c.l.b16 %v4619
    %v5010 = vunpack.c.h.b16 %v4619
    %v5011 = vunpack.c.l.b16 %v4620
    %v5012 = vunpack.c.h.b16 %v4620
    %v5013 = vunpack.c.l.b16 %v4621
    %v5014 = vunpack.c.h.b16 %v4621
    %v5015 = vunpack.c.l.b16 %v4622
    %v5016 = vunpack.c.h.b16 %v4622
    %v5017 = vunpack.c.l.b16 %v4623
    %v5018 = vunpack.c.h.b16 %v4623
    %v5019 = vunpack.c.l.b16 %v4624
    %v5020 = vunpack.c.h.b16 %v4624
    %v5021 = vunpack.c.l.b16 %v4625
    %v5022 = vunpack.c.h.b16 %v4625
    %v5023 = vunpack.c.l.b16 %v4626
    %v5024 = vunpack.c.h.b16 %v4626
    %v5025 = vunpack.c.l.b16 %v4627
    %v5026 = vunpack.c.h.b16 %v4627
    %v5027 = vunpack.c.l.b16 %v4628
    %v5028 = vunpack.c.h.b16 %v4628
    %v5029 = vunpack.c.l.b16 %v4629
    %v5030 = vunpack.c.h.b16 %v4629
    %v5031 = vunpack.c.l.b16 %v4630
    %v5032 = vunpack.c.h.b16 %v4630
    %v5033 = vunpack.c.l.b16 %v4631
    %v5034 = vunpack.c.h.b16 %v4631
    %v5035 = vunpack.c.l.b16 %v4632
    %v5036 = vunpack.c.h.b16 %v4632
    %v5037 = vunpack.c.l.b16 %v4633
    %v5038 = vunpack.c.h.b16 %v4633
    %v5039 = vunpack.c.l.b16 %v4634
    %v5040 = vunpack.c.h.b16 %v4634
    %v5041 = vpack.c.b16 %v4789, %v4785
    %v5042 = vpack.c.b16 %v4790, %v4786
    %v5043 = vpack.c.b16 %v4791, %v4787
    %v5044 = vpack.c.b16 %v4792, %v4788
    %v5045 = vpack.c.b16 %v4797, %v4793
    %v5046 = vpack.c.b16 %v4798, %v4794
    %v5047 = vpack.c.b16 %v4799, %v4795
    %v5048 = vpack.c.b16 %v4800, %v4796
    %v5049 = vpack.c.b16 %v4805, %v4801
    %v5050 = vpack.c.b16 %v4806, %v4802
    %v5051 = vpack.c.b16 %v4807, %v4803
    %v5052 = vpack.c.b16 %v4808, %v4804
    %v5053 = vpack.c.b16 %v4813, %v4809
    %v5054 = vpack.c.b16 %v4814, %v4810
    %v5055 = vpack.c.b16 %v4815, %v4811
    %v5056 = vpack.c.b16 %v4816, %v4812
    %v5057 = vpack.c.b16 %v4821, %v4817
    %v5058 = vpack.c.b16 %v4822, %v4818
    %v5059 = vpack.c.b16 %v4823, %v4819
    %v5060 = vpack.c.b16 %v4824, %v4820
    %v5061 = vpack.c.b16 %v4829, %v4825
    %v5062 = vpack.c.b16 %v4830, %v4826
    %v5063 = vpack.c.b16 %v4831, %v4827
    %v5064 = vpack.c.b16 %v4832, %v4828
    %v5065 = vpack.c.b16 %v4837, %v4833
    %v5066 = vpack.c.b16 %v4838, %v4834
    %v5067 = vpack.c.b16 %v4839, %v4835
    %v5068 = vpack.c.b16 %v4840, %v4836
    %v5069 = vpack.c.b16 %v4845, %v4841
    %v5070 = vpack.c.b16 %v4846, %v4842
    %v5071 = vpack.c.b16 %v4847, %v4843
    %v5072 = vpack.c.b16 %v4848, %v4844
    %v5073 = vpack.c.b16 %v4853, %v4849
    %v5074 = vpack.c.b16 %v4854, %v4850
    %v5075 = vpack.c.b16 %v4855, %v4851
    %v5076 = vpack.c.b16 %v4856, %v4852
    %v5077 = vpack.c.b16 %v4861, %v4857
    %v5078 = vpack.c.b16 %v4862, %v4858
    %v5079 = vpack.c.b16 %v4863, %v4859
    %v5080 = vpack.c.b16 %v4864, %v4860
    %v5081 = vpack.c.b16 %v4869, %v4865
    %v5082 = vpack.c.b16 %v4870, %v4866
    %v5083 = vpack.c.b16 %v4871, %v4867
    %v5084 = vpack.c.b16 %v4872, %v4868
    %v5085 = vpack.c.b16 %v4877, %v4873
    %v5086 = vpack.c.b16 %v4878, %v4874
    %v5087 = vpack.c.b16 %v4879, %v4875
    %v5088 = vpack.c.b16 %v4880, %v4876
    %v5089 = vpack.c.b16 %v4885, %v4881
    %v5090 = vpack.c.b16 %v4886, %v4882
    %v5091 = vpack.c.b16 %v4887, %v4883
    %v5092 = vpack.c.b16 %v4888, %v4884
    %v5093 = vpack.c.b16 %v4893, %v4889
    %v5094 = vpack.c.b16 %v4894, %v4890
    %v5095 = vpack.c.b16 %v4895, %v4891
    %v5096 = vpack.c.b16 %v4896, %v4892
    %v5097 = vpack.c.b16 %v4901, %v4897
    %v5098 = vpack.c.b16 %v4902, %v4898
    %v5099 = vpack.c.b16 %v4903, %v4899
    %v5100 = vpack.c.b16 %v4904, %v4900
    %v5101 = vpack.c.b16 %v4909, %v4905
    %v5102 = vpack.c.b16 %v4910, %v4906
    %v5103 = vpack.c.b16 %v4911, %v4907
    %v5104 = vpack.c.b16 %v4912, %v4908
    %v5105 = vpack.c.b16 %v4917, %v4913
    %v5106 = vpack.c.b16 %v4918, %v4914
    %v5107 = vpack.c.b16 %v4919, %v4915
    %v5108 = vpack.c.b16 %v4920, %v4916
    %v5109 = vpack.c.b16 %v4925, %v4921
    %v5110 = vpack.c.b16 %v4926, %v4922
    %v5111 = vpack.c.b16 %v4927, %v4923
    %v5112 = vpack.c.b16 %v4928, %v4924
    %v5113 = vpack.c.b16 %v4933, %v4929
    %v5114 = vpack.c.b16 %v4934, %v4930
    %v5115 = vpack.c.b16 %v4935, %v4931
    %v5116 = vpack.c.b16 %v4936, %v4932
    %v5117 = vpack.c.b16 %v4941, %v4937
    %v5118 = vpack.c.b16 %v4942, %v4938
    %v5119 = vpack.c.b16 %v4943, %v4939
    %v5120 = vpack.c.b16 %v4944, %v4940
    %v5121 = vpack.c.b16 %v4949, %v4945
    %v5122 = vpack.c.b16 %v4950, %v4946
    %v5123 = vpack.c.b16 %v4951, %v4947
    %v5124 = vpack.c.b16 %v4952, %v4948
    %v5125 = vpack.c.b16 %v4957, %v4953
    %v5126 = vpack.c.b16 %v4958, %v4954
    %v5127 = vpack.c.b16 %v4959, %v4955
    %v5128 = vpack.c.b16 %v4960, %v4956
    %v5129 = vpack.c.b16 %v4965, %v4961
    %v5130 = vpack.c.b16 %v4966, %v4962
    %v5131 = vpack.c.b16 %v4967, %v4963
    %v5132 = vpack.c.b16 %v4968, %v4964
    %v5133 = vpack.c.b16 %v4973, %v4969
    %v5134 = vpack.c.b16 %v4974, %v4970
    %v5135 = vpack.c.b16 %v4975, %v4971
    %v5136 = vpack.c.b16 %v4976, %v4972
    %v5137 = vpack.c.b16 %v4981, %v4977
    %v5138 = vpack.c.b16 %v4982, %v4978
    %v5139 = vpack.c.b16 %v4983, %v4979
    %v5140 = vpack.c.b16 %v4984, %v4980
    %v5141 = vpack.c.b16 %v4989, %v4985
    %v5142 = vpack.c.b16 %v4990, %v4986
    %v5143 = vpack.c.b16 %v4991, %v4987
    %v5144 = vpack.c.b16 %v4992, %v4988
    %v5145 = vpack.c.b16 %v4997, %v4993
    %v5146 = vpack.c.b16 %v4998, %v4994
    %v5147 = vpack.c.b16 %v4999, %v4995
    %v5148 = vpack.c.b16 %v5000, %v4996
    %v5149 = vpack.c.b16 %v5005, %v5001
    %v5150 = vpack.c.b16 %v5006, %v5002
    %v5151 = vpack.c.b16 %v5007, %v5003
    %v5152 = vpack.c.b16 %v5008, %v5004
    %v5153 = vpack.c.b16 %v5013, %v5009
    %v5154 = vpack.c.b16 %v5014, %v5010
    %v5155 = vpack.c.b16 %v5015, %v5011
    %v5156 = vpack.c.b16 %v5016, %v5012
    %v5157 = vpack.c.b16 %v5021, %v5017
    %v5158 = vpack.c.b16 %v5022, %v5018
    %v5159 = vpack.c.b16 %v5023, %v5019
    %v5160 = vpack.c.b16 %v5024, %v5020
    %v5161 = vpack.c.b16 %v5029, %v5025
    %v5162 = vpack.c.b16 %v5030, %v5026
    %v5163 = vpack.c.b16 %v5031, %v5027
    %v5164 = vpack.c.b16 %v5032, %v5028
    %v5165 = vpack.c.b16 %v5037, %v5033
    %v5166 = vpack.c.b16 %v5038, %v5034
    %v5167 = vpack.c.b16 %v5039, %v5035
    %v5168 = vpack.c.b16 %v5040, %v5036
    %5297 = vmatprep.subr.bf16.mxu0 %v5070
    %5298 = vmatpush1.bf16.msra.mxu0 %v5069
    %5299 = vmatprep.subr.bf16.mxu0 %v5066
    %5300 = vmatpush1.bf16.msra.mxu0 %v5065
    %5301 = vmatprep.subr.bf16.mxu0 %v5062
    %5302 = vmatpush1.bf16.msra.mxu0 %v5061
    %5303 = vmatprep.subr.bf16.mxu0 %v5058
    %5304 = vmatpush1.bf16.msra.mxu0 %v5057
    %5305 = vmatprep.subr.bf16.mxu0 %v5054
    %5306 = vmatpush1.bf16.msra.mxu0 %v5053
    %5307 = vmatprep.subr.bf16.mxu0 %v5050
    %5308 = vmatpush1.bf16.msra.mxu0 %v5049
    %5309 = vmatprep.subr.bf16.mxu0 %v5046
    %5310 = vmatpush1.bf16.msra.mxu0 %v5045
    %5311 = vmatprep.subr.bf16.mxu0 %v5042
    %5312 = vmatpush1.bf16.msra.mxu0 %v5041
    %5313 = vmatprep.subr.bf16.mxu0 %v5102
    %5314 = vmatpush2.bf16.msra.mxu0 %v5101
    %5315 = vmatprep.subr.bf16.mxu0 %v5098
    %5316 = vmatpush2.bf16.msra.mxu0 %v5097
    %5317 = vmatprep.subr.bf16.mxu0 %v5094
    %5318 = vmatpush2.bf16.msra.mxu0 %v5093
    %5319 = vmatprep.subr.bf16.mxu0 %v5090
    %5320 = vmatpush2.bf16.msra.mxu0 %v5089
    %5321 = vmatprep.subr.bf16.mxu0 %v5086
    %5322 = vmatpush2.bf16.msra.mxu0 %v5085
    %5323 = vmatprep.subr.bf16.mxu0 %v5082
    %5324 = vmatpush2.bf16.msra.mxu0 %v5081
    %5325 = vmatprep.subr.bf16.mxu0 %v5078
    %5326 = vmatpush2.bf16.msra.mxu0 %v5077
    %5327 = vmatprep.subr.bf16.mxu0 %v5074
    %5328 = vmatpush2.bf16.msra.mxu0 %v5073
    %5329 = vmatprep.mubr.bf16.mxu0 %v4504
    %5330 = vmatmul.mubr.bf16.gmra.mxu0 %v4503
    %v5331 = vpop.f32.mrf.mxu0
    %v5332 = vadd.f32 %v4640, %v5331
    %v5333 = vpop.f32.mrf.mxu0
    %v5334 = vadd.f32 %v4644, %v5333
    %v5335 = vpop.f32.mrf.mxu0
    %v5336 = vpop.f32.mrf.mxu0
    %5337 = vdwg.mxu0
    %5338 = vmatprep.subr.bf16.mxu0 %v5134
    %5339 = vmatpush1.bf16.msra.mxu0 %v5133
    %5340 = vmatprep.subr.bf16.mxu0 %v5130
    %5341 = vmatpush1.bf16.msra.mxu0 %v5129
    %5342 = vmatprep.subr.bf16.mxu0 %v5126
    %5343 = vmatpush1.bf16.msra.mxu0 %v5125
    %5344 = vmatprep.subr.bf16.mxu0 %v5122
    %5345 = vmatpush1.bf16.msra.mxu0 %v5121
    %5346 = vmatprep.subr.bf16.mxu0 %v5118
    %5347 = vmatpush1.bf16.msra.mxu0 %v5117
    %5348 = vmatprep.subr.bf16.mxu0 %v5114
    %5349 = vmatpush1.bf16.msra.mxu0 %v5113
    %5350 = vmatprep.subr.bf16.mxu0 %v5110
    %5351 = vmatpush1.bf16.msra.mxu0 %v5109
    %5352 = vmatprep.subr.bf16.mxu0 %v5106
    %5353 = vmatpush1.bf16.msra.mxu0 %v5105
    %5354 = vmatprep.subr.bf16.mxu0 %v5166
    %5355 = vmatpush2.bf16.msra.mxu0 %v5165
    %5356 = vmatprep.subr.bf16.mxu0 %v5162
    %5357 = vmatpush2.bf16.msra.mxu0 %v5161
    %5358 = vmatprep.subr.bf16.mxu0 %v5158
    %5359 = vmatpush2.bf16.msra.mxu0 %v5157
    %5360 = vmatprep.subr.bf16.mxu0 %v5154
    %5361 = vmatpush2.bf16.msra.mxu0 %v5153
    %5362 = vmatprep.subr.bf16.mxu0 %v5150
    %5363 = vmatpush2.bf16.msra.mxu0 %v5149
    %5364 = vmatprep.subr.bf16.mxu0 %v5146
    %5365 = vmatpush2.bf16.msra.mxu0 %v5145
    %5366 = vmatprep.subr.bf16.mxu0 %v5142
    %5367 = vmatpush2.bf16.msra.mxu0 %v5141
    %5368 = vmatprep.subr.bf16.mxu0 %v5138
    %5369 = vmatpush2.bf16.msra.mxu0 %v5137
    %5370 = vmatprep.mubr.bf16.mxu0 %v4506
    %5371 = vmatmul.mubr.bf16.gmra.mxu0 %v4505
    %v5372 = vpop.f32.mrf.mxu0
    %v5373 = vadd.f32 %v5332, %v5372
    %v5374 = vpop.f32.mrf.mxu0
    %v5375 = vadd.f32 %v5334, %v5374
    %v5376 = vpop.f32.mrf.mxu0
    %v5377 = vpop.f32.mrf.mxu0
    %5378 = vdwg.mxu0
    %5379 = vmatprep.subr.bf16.mxu0 %v5072
    %5380 = vmatpush1.bf16.msra.mxu0 %v5071
    %5381 = vmatprep.subr.bf16.mxu0 %v5068
    %5382 = vmatpush1.bf16.msra.mxu0 %v5067
    %5383 = vmatprep.subr.bf16.mxu0 %v5064
    %5384 = vmatpush1.bf16.msra.mxu0 %v5063
    %5385 = vmatprep.subr.bf16.mxu0 %v5060
    %5386 = vmatpush1.bf16.msra.mxu0 %v5059
    %5387 = vmatprep.subr.bf16.mxu0 %v5056
    %5388 = vmatpush1.bf16.msra.mxu0 %v5055
    %5389 = vmatprep.subr.bf16.mxu0 %v5052
    %5390 = vmatpush1.bf16.msra.mxu0 %v5051
    %5391 = vmatprep.subr.bf16.mxu0 %v5048
    %5392 = vmatpush1.bf16.msra.mxu0 %v5047
    %5393 = vmatprep.subr.bf16.mxu0 %v5044
    %5394 = vmatpush1.bf16.msra.mxu0 %v5043
    %5395 = vmatprep.subr.bf16.mxu0 %v5104
    %5396 = vmatpush2.bf16.msra.mxu0 %v5103
    %5397 = vmatprep.subr.bf16.mxu0 %v5100
    %5398 = vmatpush2.bf16.msra.mxu0 %v5099
    %5399 = vmatprep.subr.bf16.mxu0 %v5096
    %5400 = vmatpush2.bf16.msra.mxu0 %v5095
    %5401 = vmatprep.subr.bf16.mxu0 %v5092
    %5402 = vmatpush2.bf16.msra.mxu0 %v5091
    %5403 = vmatprep.subr.bf16.mxu0 %v5088
    %5404 = vmatpush2.bf16.msra.mxu0 %v5087
    %5405 = vmatprep.subr.bf16.mxu0 %v5084
    %5406 = vmatpush2.bf16.msra.mxu0 %v5083
    %5407 = vmatprep.subr.bf16.mxu0 %v5080
    %5408 = vmatpush2.bf16.msra.mxu0 %v5079
    %5409 = vmatprep.subr.bf16.mxu0 %v5076
    %5410 = vmatpush2.bf16.msra.mxu0 %v5075
    %5411 = vmatprep.mubr.bf16.mxu0 %v4504
    %5412 = vmatmul.mubr.bf16.gmra.mxu0 %v4503
    %v5413 = vpop.f32.mrf.mxu0
    %v5414 = vadd.f32 %v4648, %v5413
    %v5415 = vpop.f32.mrf.mxu0
    %v5416 = vadd.f32 %v4652, %v5415
    %v5417 = vpop.f32.mrf.mxu0
    %v5418 = vpop.f32.mrf.mxu0
    %5419 = vdwg.mxu0
    %5420 = vmatprep.subr.bf16.mxu0 %v5136
    %5421 = vmatpush1.bf16.msra.mxu0 %v5135
    %5422 = vmatprep.subr.bf16.mxu0 %v5132
    %5423 = vmatpush1.bf16.msra.mxu0 %v5131
    %5424 = vmatprep.subr.bf16.mxu0 %v5128
    %5425 = vmatpush1.bf16.msra.mxu0 %v5127
    %5426 = vmatprep.subr.bf16.mxu0 %v5124
    %5427 = vmatpush1.bf16.msra.mxu0 %v5123
    %5428 = vmatprep.subr.bf16.mxu0 %v5120
    %5429 = vmatpush1.bf16.msra.mxu0 %v5119
    %5430 = vmatprep.subr.bf16.mxu0 %v5116
    %5431 = vmatpush1.bf16.msra.mxu0 %v5115
    %5432 = vmatprep.subr.bf16.mxu0 %v5112
    %5433 = vmatpush1.bf16.msra.mxu0 %v5111
    %5434 = vmatprep.subr.bf16.mxu0 %v5108
    %5435 = vmatpush1.bf16.msra.mxu0 %v5107
    %5436 = vmatprep.subr.bf16.mxu0 %v5168
    %5437 = vmatpush2.bf16.msra.mxu0 %v5167
    %5438 = vmatprep.subr.bf16.mxu0 %v5164
    %5439 = vmatpush2.bf16.msra.mxu0 %v5163
    %5440 = vmatprep.subr.bf16.mxu0 %v5160
    %5441 = vmatpush2.bf16.msra.mxu0 %v5159
    %5442 = vmatprep.subr.bf16.mxu0 %v5156
    %5443 = vmatpush2.bf16.msra.mxu0 %v5155
    %5444 = vmatprep.subr.bf16.mxu0 %v5152
    %5445 = vmatpush2.bf16.msra.mxu0 %v5151
    %5446 = vmatprep.subr.bf16.mxu0 %v5148
    %5447 = vmatpush2.bf16.msra.mxu0 %v5147
    %5448 = vmatprep.subr.bf16.mxu0 %v5144
    %5449 = vmatpush2.bf16.msra.mxu0 %v5143
    %5450 = vmatprep.subr.bf16.mxu0 %v5140
    %5451 = vmatpush2.bf16.msra.mxu0 %v5139
    %5452 = vmatprep.mubr.bf16.mxu0 %v4506
    %5453 = vmatmul.mubr.bf16.gmra.mxu0 %v4505
    %v5454 = vpop.f32.mrf.mxu0
    %v5455 = vadd.f32 %v5414, %v5454
    %v5456 = vpop.f32.mrf.mxu0
    %v5457 = vadd.f32 %v5416, %v5456
    %v5458 = vpop.f32.mrf.mxu0
    %v5459 = vpop.f32.mrf.mxu0
    %5460 = vdwg.mxu0
    %v5461 = vmax.f32 %v5373, 0.0
    %v5462 = vmax.f32 %v5375, 0.0
    %v5463 = vmax.f32 %v5455, 0.0
    %v5464 = vmax.f32 %v5457, 0.0
    %v5465 = vpack.c.bf16 %v5461, %v5461
    %v5466 = vpack.c.bf16 %v5462, %v5462
    %v5467 = vpack.c.bf16 %v5463, %v5463
    %v5468 = vpack.c.bf16 %v5464, %v5464
    %v5469 = vld [vmem:[#allocation26] sm:$0xff]
    %v5470 = vld [vmem:[#allocation26 + $0x8] sm:$0xff]
    %v5471 = vld [vmem:[#allocation26 + $0x10] sm:$0xff]
    %v5472 = vld [vmem:[#allocation26 + $0x18] sm:$0xff]
    %v5473 = vld [vmem:[#allocation26 + $0x20] sm:$0xff]
    %v5474 = vld [vmem:[#allocation26 + $0x28] sm:$0xff]
    %v5475 = vld [vmem:[#allocation26 + $0x30] sm:$0xff]
    %v5476 = vld [vmem:[#allocation26 + $0x38] sm:$0xff]
    %v5477 = vld [vmem:[#allocation26 + $0x40] sm:$0xff]
    %v5478 = vld [vmem:[#allocation26 + $0x48] sm:$0xff]
    %v5479 = vld [vmem:[#allocation26 + $0x50] sm:$0xff]
    %v5480 = vld [vmem:[#allocation26 + $0x58] sm:$0xff]
    %v5481 = vld [vmem:[#allocation26 + $0x60] sm:$0xff]
    %v5482 = vld [vmem:[#allocation26 + $0x68] sm:$0xff]
    %v5483 = vld [vmem:[#allocation26 + $0x70] sm:$0xff]
    %v5484 = vld [vmem:[#allocation26 + $0x78] sm:$0xff]
    %v5485 = vld [vmem:[#allocation26 + $0x80] sm:$0xff]
    %v5486 = vld [vmem:[#allocation26 + $0x88] sm:$0xff]
    %v5487 = vld [vmem:[#allocation26 + $0x90] sm:$0xff]
    %v5488 = vld [vmem:[#allocation26 + $0x98] sm:$0xff]
    %v5489 = vld [vmem:[#allocation26 + $0xa0] sm:$0xff]
    %v5490 = vld [vmem:[#allocation26 + $0xa8] sm:$0xff]
    %v5491 = vld [vmem:[#allocation26 + $0xb0] sm:$0xff]
    %v5492 = vld [vmem:[#allocation26 + $0xb8] sm:$0xff]
    %v5493 = vld [vmem:[#allocation26 + $0xc0] sm:$0xff]
    %v5494 = vld [vmem:[#allocation26 + $0xc8] sm:$0xff]
    %v5495 = vld [vmem:[#allocation26 + $0xd0] sm:$0xff]
    %v5496 = vld [vmem:[#allocation26 + $0xd8] sm:$0xff]
    %v5497 = vld [vmem:[#allocation26 + $0xe0] sm:$0xff]
    %v5498 = vld [vmem:[#allocation26 + $0xe8] sm:$0xff]
    %v5499 = vld [vmem:[#allocation26 + $0xf0] sm:$0xff]
    %v5500 = vld [vmem:[#allocation26 + $0xf8] sm:$0xff]
    %v5501 = vld [vmem:[#allocation26 + $0x100] sm:$0xff]
    %v5502 = vld [vmem:[#allocation26 + $0x108] sm:$0xff]
    %v5503 = vld [vmem:[#allocation26 + $0x110] sm:$0xff]
    %v5504 = vld [vmem:[#allocation26 + $0x118] sm:$0xff]
    %v5505 = vld [vmem:[#allocation26 + $0x120] sm:$0xff]
    %v5506 = vld [vmem:[#allocation26 + $0x128] sm:$0xff]
    %v5507 = vld [vmem:[#allocation26 + $0x130] sm:$0xff]
    %v5508 = vld [vmem:[#allocation26 + $0x138] sm:$0xff]
    %v5509 = vld [vmem:[#allocation26 + $0x140] sm:$0xff]
    %v5510 = vld [vmem:[#allocation26 + $0x148] sm:$0xff]
    %v5511 = vld [vmem:[#allocation26 + $0x150] sm:$0xff]
    %v5512 = vld [vmem:[#allocation26 + $0x158] sm:$0xff]
    %v5513 = vld [vmem:[#allocation26 + $0x160] sm:$0xff]
    %v5514 = vld [vmem:[#allocation26 + $0x168] sm:$0xff]
    %v5515 = vld [vmem:[#allocation26 + $0x170] sm:$0xff]
    %v5516 = vld [vmem:[#allocation26 + $0x178] sm:$0xff]
    %v5517 = vld [vmem:[#allocation26 + $0x180] sm:$0xff]
    %v5518 = vld [vmem:[#allocation26 + $0x188] sm:$0xff]
    %v5519 = vld [vmem:[#allocation26 + $0x190] sm:$0xff]
    %v5520 = vld [vmem:[#allocation26 + $0x198] sm:$0xff]
    %v5521 = vld [vmem:[#allocation26 + $0x1a0] sm:$0xff]
    %v5522 = vld [vmem:[#allocation26 + $0x1a8] sm:$0xff]
    %v5523 = vld [vmem:[#allocation26 + $0x1b0] sm:$0xff]
    %v5524 = vld [vmem:[#allocation26 + $0x1b8] sm:$0xff]
    %v5525 = vld [vmem:[#allocation26 + $0x1c0] sm:$0xff]
    %v5526 = vld [vmem:[#allocation26 + $0x1c8] sm:$0xff]
    %v5527 = vld [vmem:[#allocation26 + $0x1d0] sm:$0xff]
    %v5528 = vld [vmem:[#allocation26 + $0x1d8] sm:$0xff]
    %v5529 = vld [vmem:[#allocation26 + $0x1e0] sm:$0xff]
    %v5530 = vld [vmem:[#allocation26 + $0x1e8] sm:$0xff]
    %v5531 = vld [vmem:[#allocation26 + $0x1f0] sm:$0xff]
    %v5532 = vld [vmem:[#allocation26 + $0x1f8] sm:$0xff]
    %v5533 = vld [vmem:[%s24] sm:$0x3]
    %v5535 = vlaneseq
    %v5536 = vshrl.u32 %v5535, 7
    %v5537 = vsub.s32 0, %v5536
    %v5538 = vrot.slane %v5533, %v5537
    %v5539 = vlaneseq
    %v5540 = vshrl.u32 %v5539, 7
    %v5541 = vsub.s32 1, %v5540
    %v5542 = vrot.slane %v5533, %v5541
    %v5609 = vunpack.c.l.b16 %v5469
    %v5610 = vunpack.c.h.b16 %v5469
    %v5611 = vunpack.c.l.b16 %v5470
    %v5612 = vunpack.c.h.b16 %v5470
    %v5613 = vunpack.c.l.b16 %v5471
    %v5614 = vunpack.c.h.b16 %v5471
    %v5615 = vunpack.c.l.b16 %v5472
    %v5616 = vunpack.c.h.b16 %v5472
    %v5617 = vunpack.c.l.b16 %v5473
    %v5618 = vunpack.c.h.b16 %v5473
    %v5619 = vunpack.c.l.b16 %v5474
    %v5620 = vunpack.c.h.b16 %v5474
    %v5621 = vunpack.c.l.b16 %v5475
    %v5622 = vunpack.c.h.b16 %v5475
    %v5623 = vunpack.c.l.b16 %v5476
    %v5624 = vunpack.c.h.b16 %v5476
    %v5625 = vunpack.c.l.b16 %v5477
    %v5626 = vunpack.c.h.b16 %v5477
    %v5627 = vunpack.c.l.b16 %v5478
    %v5628 = vunpack.c.h.b16 %v5478
    %v5629 = vunpack.c.l.b16 %v5479
    %v5630 = vunpack.c.h.b16 %v5479
    %v5631 = vunpack.c.l.b16 %v5480
    %v5632 = vunpack.c.h.b16 %v5480
    %v5633 = vunpack.c.l.b16 %v5481
    %v5634 = vunpack.c.h.b16 %v5481
    %v5635 = vunpack.c.l.b16 %v5482
    %v5636 = vunpack.c.h.b16 %v5482
    %v5637 = vunpack.c.l.b16 %v5483
    %v5638 = vunpack.c.h.b16 %v5483
    %v5639 = vunpack.c.l.b16 %v5484
    %v5640 = vunpack.c.h.b16 %v5484
    %v5641 = vunpack.c.l.b16 %v5485
    %v5642 = vunpack.c.h.b16 %v5485
    %v5643 = vunpack.c.l.b16 %v5486
    %v5644 = vunpack.c.h.b16 %v5486
    %v5645 = vunpack.c.l.b16 %v5487
    %v5646 = vunpack.c.h.b16 %v5487
    %v5647 = vunpack.c.l.b16 %v5488
    %v5648 = vunpack.c.h.b16 %v5488
    %v5649 = vunpack.c.l.b16 %v5489
    %v5650 = vunpack.c.h.b16 %v5489
    %v5651 = vunpack.c.l.b16 %v5490
    %v5652 = vunpack.c.h.b16 %v5490
    %v5653 = vunpack.c.l.b16 %v5491
    %v5654 = vunpack.c.h.b16 %v5491
    %v5655 = vunpack.c.l.b16 %v5492
    %v5656 = vunpack.c.h.b16 %v5492
    %v5657 = vunpack.c.l.b16 %v5493
    %v5658 = vunpack.c.h.b16 %v5493
    %v5659 = vunpack.c.l.b16 %v5494
    %v5660 = vunpack.c.h.b16 %v5494
    %v5661 = vunpack.c.l.b16 %v5495
    %v5662 = vunpack.c.h.b16 %v5495
    %v5663 = vunpack.c.l.b16 %v5496
    %v5664 = vunpack.c.h.b16 %v5496
    %v5665 = vunpack.c.l.b16 %v5497
    %v5666 = vunpack.c.h.b16 %v5497
    %v5667 = vunpack.c.l.b16 %v5498
    %v5668 = vunpack.c.h.b16 %v5498
    %v5669 = vunpack.c.l.b16 %v5499
    %v5670 = vunpack.c.h.b16 %v5499
    %v5671 = vunpack.c.l.b16 %v5500
    %v5672 = vunpack.c.h.b16 %v5500
    %v5673 = vunpack.c.l.b16 %v5501
    %v5674 = vunpack.c.h.b16 %v5501
    %v5675 = vunpack.c.l.b16 %v5502
    %v5676 = vunpack.c.h.b16 %v5502
    %v5677 = vunpack.c.l.b16 %v5503
    %v5678 = vunpack.c.h.b16 %v5503
    %v5679 = vunpack.c.l.b16 %v5504
    %v5680 = vunpack.c.h.b16 %v5504
    %v5681 = vunpack.c.l.b16 %v5505
    %v5682 = vunpack.c.h.b16 %v5505
    %v5683 = vunpack.c.l.b16 %v5506
    %v5684 = vunpack.c.h.b16 %v5506
    %v5685 = vunpack.c.l.b16 %v5507
    %v5686 = vunpack.c.h.b16 %v5507
    %v5687 = vunpack.c.l.b16 %v5508
    %v5688 = vunpack.c.h.b16 %v5508
    %v5689 = vunpack.c.l.b16 %v5509
    %v5690 = vunpack.c.h.b16 %v5509
    %v5691 = vunpack.c.l.b16 %v5510
    %v5692 = vunpack.c.h.b16 %v5510
    %v5693 = vunpack.c.l.b16 %v5511
    %v5694 = vunpack.c.h.b16 %v5511
    %v5695 = vunpack.c.l.b16 %v5512
    %v5696 = vunpack.c.h.b16 %v5512
    %v5697 = vunpack.c.l.b16 %v5513
    %v5698 = vunpack.c.h.b16 %v5513
    %v5699 = vunpack.c.l.b16 %v5514
    %v5700 = vunpack.c.h.b16 %v5514
    %v5701 = vunpack.c.l.b16 %v5515
    %v5702 = vunpack.c.h.b16 %v5515
    %v5703 = vunpack.c.l.b16 %v5516
    %v5704 = vunpack.c.h.b16 %v5516
    %v5705 = vunpack.c.l.b16 %v5517
    %v5706 = vunpack.c.h.b16 %v5517
    %v5707 = vunpack.c.l.b16 %v5518
    %v5708 = vunpack.c.h.b16 %v5518
    %v5709 = vunpack.c.l.b16 %v5519
    %v5710 = vunpack.c.h.b16 %v5519
    %v5711 = vunpack.c.l.b16 %v5520
    %v5712 = vunpack.c.h.b16 %v5520
    %v5713 = vunpack.c.l.b16 %v5521
    %v5714 = vunpack.c.h.b16 %v5521
    %v5715 = vunpack.c.l.b16 %v5522
    %v5716 = vunpack.c.h.b16 %v5522
    %v5717 = vunpack.c.l.b16 %v5523
    %v5718 = vunpack.c.h.b16 %v5523
    %v5719 = vunpack.c.l.b16 %v5524
    %v5720 = vunpack.c.h.b16 %v5524
    %v5721 = vunpack.c.l.b16 %v5525
    %v5722 = vunpack.c.h.b16 %v5525
    %v5723 = vunpack.c.l.b16 %v5526
    %v5724 = vunpack.c.h.b16 %v5526
    %v5725 = vunpack.c.l.b16 %v5527
    %v5726 = vunpack.c.h.b16 %v5527
    %v5727 = vunpack.c.l.b16 %v5528
    %v5728 = vunpack.c.h.b16 %v5528
    %v5729 = vunpack.c.l.b16 %v5529
    %v5730 = vunpack.c.h.b16 %v5529
    %v5731 = vunpack.c.l.b16 %v5530
    %v5732 = vunpack.c.h.b16 %v5530
    %v5733 = vunpack.c.l.b16 %v5531
    %v5734 = vunpack.c.h.b16 %v5531
    %v5735 = vunpack.c.l.b16 %v5532
    %v5736 = vunpack.c.h.b16 %v5532
    %v5737 = vpack.c.b16 %v5611, %v5609
    %v5738 = vpack.c.b16 %v5612, %v5610
    %v5739 = vpack.c.b16 %v5615, %v5613
    %v5740 = vpack.c.b16 %v5616, %v5614
    %v5741 = vpack.c.b16 %v5619, %v5617
    %v5742 = vpack.c.b16 %v5620, %v5618
    %v5743 = vpack.c.b16 %v5623, %v5621
    %v5744 = vpack.c.b16 %v5624, %v5622
    %v5745 = vpack.c.b16 %v5627, %v5625
    %v5746 = vpack.c.b16 %v5628, %v5626
    %v5747 = vpack.c.b16 %v5631, %v5629
    %v5748 = vpack.c.b16 %v5632, %v5630
    %v5749 = vpack.c.b16 %v5635, %v5633
    %v5750 = vpack.c.b16 %v5636, %v5634
    %v5751 = vpack.c.b16 %v5639, %v5637
    %v5752 = vpack.c.b16 %v5640, %v5638
    %v5753 = vpack.c.b16 %v5643, %v5641
    %v5754 = vpack.c.b16 %v5644, %v5642
    %v5755 = vpack.c.b16 %v5647, %v5645
    %v5756 = vpack.c.b16 %v5648, %v5646
    %v5757 = vpack.c.b16 %v5651, %v5649
    %v5758 = vpack.c.b16 %v5652, %v5650
    %v5759 = vpack.c.b16 %v5655, %v5653
    %v5760 = vpack.c.b16 %v5656, %v5654
    %v5761 = vpack.c.b16 %v5659, %v5657
    %v5762 = vpack.c.b16 %v5660, %v5658
    %v5763 = vpack.c.b16 %v5663, %v5661
    %v5764 = vpack.c.b16 %v5664, %v5662
    %v5765 = vpack.c.b16 %v5667, %v5665
    %v5766 = vpack.c.b16 %v5668, %v5666
    %v5767 = vpack.c.b16 %v5671, %v5669
    %v5768 = vpack.c.b16 %v5672, %v5670
    %v5769 = vpack.c.b16 %v5675, %v5673
    %v5770 = vpack.c.b16 %v5676, %v5674
    %v5771 = vpack.c.b16 %v5679, %v5677
    %v5772 = vpack.c.b16 %v5680, %v5678
    %v5773 = vpack.c.b16 %v5683, %v5681
    %v5774 = vpack.c.b16 %v5684, %v5682
    %v5775 = vpack.c.b16 %v5687, %v5685
    %v5776 = vpack.c.b16 %v5688, %v5686
    %v5777 = vpack.c.b16 %v5691, %v5689
    %v5778 = vpack.c.b16 %v5692, %v5690
    %v5779 = vpack.c.b16 %v5695, %v5693
    %v5780 = vpack.c.b16 %v5696, %v5694
    %v5781 = vpack.c.b16 %v5699, %v5697
    %v5782 = vpack.c.b16 %v5700, %v5698
    %v5783 = vpack.c.b16 %v5703, %v5701
    %v5784 = vpack.c.b16 %v5704, %v5702
    %v5785 = vpack.c.b16 %v5707, %v5705
    %v5786 = vpack.c.b16 %v5708, %v5706
    %v5787 = vpack.c.b16 %v5711, %v5709
    %v5788 = vpack.c.b16 %v5712, %v5710
    %v5789 = vpack.c.b16 %v5715, %v5713
    %v5790 = vpack.c.b16 %v5716, %v5714
    %v5791 = vpack.c.b16 %v5719, %v5717
    %v5792 = vpack.c.b16 %v5720, %v5718
    %v5793 = vpack.c.b16 %v5723, %v5721
    %v5794 = vpack.c.b16 %v5724, %v5722
    %v5795 = vpack.c.b16 %v5727, %v5725
    %v5796 = vpack.c.b16 %v5728, %v5726
    %v5797 = vpack.c.b16 %v5731, %v5729
    %v5798 = vpack.c.b16 %v5732, %v5730
    %v5799 = vpack.c.b16 %v5735, %v5733
    %v5800 = vpack.c.b16 %v5736, %v5734
    %5865 = vmatprep.subr.bf16.mxu0 %v5752
    %5866 = vmatpush1.bf16.msra.mxu0 %v5751
    %5867 = vmatprep.subr.bf16.mxu0 %v5750
    %5868 = vmatpush1.bf16.msra.mxu0 %v5749
    %5869 = vmatprep.subr.bf16.mxu0 %v5748
    %5870 = vmatpush1.bf16.msra.mxu0 %v5747
    %5871 = vmatprep.subr.bf16.mxu0 %v5746
    %5872 = vmatpush1.bf16.msra.mxu0 %v5745
    %5873 = vmatprep.subr.bf16.mxu0 %v5744
    %5874 = vmatpush1.bf16.msra.mxu0 %v5743
    %5875 = vmatprep.subr.bf16.mxu0 %v5742
    %5876 = vmatpush1.bf16.msra.mxu0 %v5741
    %5877 = vmatprep.subr.bf16.mxu0 %v5740
    %5878 = vmatpush1.bf16.msra.mxu0 %v5739
    %5879 = vmatprep.subr.bf16.mxu0 %v5738
    %5880 = vmatpush1.bf16.msra.mxu0 %v5737
    %5881 = vmatprep.subr.bf16.mxu0 %v5768
    %5882 = vmatpush2.bf16.msra.mxu0 %v5767
    %5883 = vmatprep.subr.bf16.mxu0 %v5766
    %5884 = vmatpush2.bf16.msra.mxu0 %v5765
    %5885 = vmatprep.subr.bf16.mxu0 %v5764
    %5886 = vmatpush2.bf16.msra.mxu0 %v5763
    %5887 = vmatprep.subr.bf16.mxu0 %v5762
    %5888 = vmatpush2.bf16.msra.mxu0 %v5761
    %5889 = vmatprep.subr.bf16.mxu0 %v5760
    %5890 = vmatpush2.bf16.msra.mxu0 %v5759
    %5891 = vmatprep.subr.bf16.mxu0 %v5758
    %5892 = vmatpush2.bf16.msra.mxu0 %v5757
    %5893 = vmatprep.subr.bf16.mxu0 %v5756
    %5894 = vmatpush2.bf16.msra.mxu0 %v5755
    %5895 = vmatprep.subr.bf16.mxu0 %v5754
    %5896 = vmatpush2.bf16.msra.mxu0 %v5753
    %5897 = vmatprep.mubr.bf16.mxu0 %v5466
    %5898 = vmatmul.mubr.bf16.gmra.mxu0 %v5465
    %v5899 = vpop.f32.mrf.mxu0
    %v5900 = vadd.f32 %v5538, %v5899
    %v5901 = vpop.f32.mrf.mxu0
    %v5902 = vadd.f32 %v5542, %v5901
    %v5903 = vpop.f32.mrf.mxu0
    %v5904 = vpop.f32.mrf.mxu0
    %5905 = vdwg.mxu0
    %5906 = vmatprep.subr.bf16.mxu0 %v5784
    %5907 = vmatpush1.bf16.msra.mxu0 %v5783
    %5908 = vmatprep.subr.bf16.mxu0 %v5782
    %5909 = vmatpush1.bf16.msra.mxu0 %v5781
    %5910 = vmatprep.subr.bf16.mxu0 %v5780
    %5911 = vmatpush1.bf16.msra.mxu0 %v5779
    %5912 = vmatprep.subr.bf16.mxu0 %v5778
    %5913 = vmatpush1.bf16.msra.mxu0 %v5777
    %5914 = vmatprep.subr.bf16.mxu0 %v5776
    %5915 = vmatpush1.bf16.msra.mxu0 %v5775
    %5916 = vmatprep.subr.bf16.mxu0 %v5774
    %5917 = vmatpush1.bf16.msra.mxu0 %v5773
    %5918 = vmatprep.subr.bf16.mxu0 %v5772
    %5919 = vmatpush1.bf16.msra.mxu0 %v5771
    %5920 = vmatprep.subr.bf16.mxu0 %v5770
    %5921 = vmatpush1.bf16.msra.mxu0 %v5769
    %5922 = vmatprep.subr.bf16.mxu0 %v5800
    %5923 = vmatpush2.bf16.msra.mxu0 %v5799
    %5924 = vmatprep.subr.bf16.mxu0 %v5798
    %5925 = vmatpush2.bf16.msra.mxu0 %v5797
    %5926 = vmatprep.subr.bf16.mxu0 %v5796
    %5927 = vmatpush2.bf16.msra.mxu0 %v5795
    %5928 = vmatprep.subr.bf16.mxu0 %v5794
    %5929 = vmatpush2.bf16.msra.mxu0 %v5793
    %5930 = vmatprep.subr.bf16.mxu0 %v5792
    %5931 = vmatpush2.bf16.msra.mxu0 %v5791
    %5932 = vmatprep.subr.bf16.mxu0 %v5790
    %5933 = vmatpush2.bf16.msra.mxu0 %v5789
    %5934 = vmatprep.subr.bf16.mxu0 %v5788
    %5935 = vmatpush2.bf16.msra.mxu0 %v5787
    %5936 = vmatprep.subr.bf16.mxu0 %v5786
    %5937 = vmatpush2.bf16.msra.mxu0 %v5785
    %5938 = vmatprep.mubr.bf16.mxu0 %v5468
    %5939 = vmatmul.mubr.bf16.gmra.mxu0 %v5467
    %v5940 = vpop.f32.mrf.mxu0
    %v5941 = vadd.f32 %v5900, %v5940
    %v5942 = vpop.f32.mrf.mxu0
    %v5943 = vadd.f32 %v5902, %v5942
    %v5944 = vpop.f32.mrf.mxu0
    %v5945 = vpop.f32.mrf.mxu0
    %5946 = vdwg.mxu0
    %v5947 = vmax.f32 %v5941, 0.0
    %v5948 = vmax.f32 %v5943, 0.0
    %v5949 = vpack.c.bf16 %v5947, %v5947
    %v5950 = vpack.c.bf16 %v5948, %v5948
    %v5951 = vld [vmem:[#allocation28] sm:$0xf]
    %v5952 = vld [vmem:[#allocation28 + $0x4] sm:$0xf]
    %v5953 = vld [vmem:[#allocation28 + $0x8] sm:$0xf]
    %v5954 = vld [vmem:[#allocation28 + $0xc] sm:$0xf]
    %v5955 = vld [vmem:[#allocation28 + $0x10] sm:$0xf]
    %v5956 = vld [vmem:[#allocation28 + $0x14] sm:$0xf]
    %v5957 = vld [vmem:[#allocation28 + $0x18] sm:$0xf]
    %v5958 = vld [vmem:[#allocation28 + $0x1c] sm:$0xf]
    %v5959 = vld [vmem:[#allocation28 + $0x20] sm:$0xf]
    %v5960 = vld [vmem:[#allocation28 + $0x24] sm:$0xf]
    %v5961 = vld [vmem:[#allocation28 + $0x28] sm:$0xf]
    %v5962 = vld [vmem:[#allocation28 + $0x2c] sm:$0xf]
    %v5963 = vld [vmem:[#allocation28 + $0x30] sm:$0xf]
    %v5964 = vld [vmem:[#allocation28 + $0x34] sm:$0xf]
    %v5965 = vld [vmem:[#allocation28 + $0x38] sm:$0xf]
    %v5966 = vld [vmem:[#allocation28 + $0x3c] sm:$0xf]
    %v5967 = vld [vmem:[#allocation28 + $0x40] sm:$0xf]
    %v5968 = vld [vmem:[#allocation28 + $0x44] sm:$0xf]
    %v5969 = vld [vmem:[#allocation28 + $0x48] sm:$0xf]
    %v5970 = vld [vmem:[#allocation28 + $0x4c] sm:$0xf]
    %v5971 = vld [vmem:[#allocation28 + $0x50] sm:$0xf]
    %v5972 = vld [vmem:[#allocation28 + $0x54] sm:$0xf]
    %v5973 = vld [vmem:[#allocation28 + $0x58] sm:$0xf]
    %v5974 = vld [vmem:[#allocation28 + $0x5c] sm:$0xf]
    %v5975 = vld [vmem:[#allocation28 + $0x60] sm:$0xf]
    %v5976 = vld [vmem:[#allocation28 + $0x64] sm:$0xf]
    %v5977 = vld [vmem:[#allocation28 + $0x68] sm:$0xf]
    %v5978 = vld [vmem:[#allocation28 + $0x6c] sm:$0xf]
    %v5979 = vld [vmem:[#allocation28 + $0x70] sm:$0xf]
    %v5980 = vld [vmem:[#allocation28 + $0x74] sm:$0xf]
    %v5981 = vld [vmem:[#allocation28 + $0x78] sm:$0xf]
    %v5982 = vld [vmem:[#allocation28 + $0x7c] sm:$0xf]
    %v5983 = vld [vmem:[%s26] sm:$0x1]
    %v5985 = vlaneseq
    %v5986 = vshrl.u32 %v5985, 7
    %v5987 = vsub.s32 0, %v5986
    %v5988 = vrot.slane %v5983, %v5987
    %v6022 = vunpack.c.l.b16 %v5951
    %v6023 = vunpack.c.l.b16 %v5952
    %v6024 = vunpack.c.l.b16 %v5953
    %v6025 = vunpack.c.l.b16 %v5954
    %v6026 = vunpack.c.l.b16 %v5955
    %v6027 = vunpack.c.l.b16 %v5956
    %v6028 = vunpack.c.l.b16 %v5957
    %v6029 = vunpack.c.l.b16 %v5958
    %v6030 = vunpack.c.l.b16 %v5959
    %v6031 = vunpack.c.l.b16 %v5960
    %v6032 = vunpack.c.l.b16 %v5961
    %v6033 = vunpack.c.l.b16 %v5962
    %v6034 = vunpack.c.l.b16 %v5963
    %v6035 = vunpack.c.l.b16 %v5964
    %v6036 = vunpack.c.l.b16 %v5965
    %v6037 = vunpack.c.l.b16 %v5966
    %v6038 = vunpack.c.l.b16 %v5967
    %v6039 = vunpack.c.l.b16 %v5968
    %v6040 = vunpack.c.l.b16 %v5969
    %v6041 = vunpack.c.l.b16 %v5970
    %v6042 = vunpack.c.l.b16 %v5971
    %v6043 = vunpack.c.l.b16 %v5972
    %v6044 = vunpack.c.l.b16 %v5973
    %v6045 = vunpack.c.l.b16 %v5974
    %v6046 = vunpack.c.l.b16 %v5975
    %v6047 = vunpack.c.l.b16 %v5976
    %v6048 = vunpack.c.l.b16 %v5977
    %v6049 = vunpack.c.l.b16 %v5978
    %v6050 = vunpack.c.l.b16 %v5979
    %v6051 = vunpack.c.l.b16 %v5980
    %v6052 = vunpack.c.l.b16 %v5981
    %v6053 = vunpack.c.l.b16 %v5982
    %v6054 = vpack.c.b16 %v6023, %v6022
    %v6055 = vpack.c.b16 %v6025, %v6024
    %v6056 = vpack.c.b16 %v6027, %v6026
    %v6057 = vpack.c.b16 %v6029, %v6028
    %v6058 = vpack.c.b16 %v6031, %v6030
    %v6059 = vpack.c.b16 %v6033, %v6032
    %v6060 = vpack.c.b16 %v6035, %v6034
    %v6061 = vpack.c.b16 %v6037, %v6036
    %v6062 = vpack.c.b16 %v6039, %v6038
    %v6063 = vpack.c.b16 %v6041, %v6040
    %v6064 = vpack.c.b16 %v6043, %v6042
    %v6065 = vpack.c.b16 %v6045, %v6044
    %v6066 = vpack.c.b16 %v6047, %v6046
    %v6067 = vpack.c.b16 %v6049, %v6048
    %v6068 = vpack.c.b16 %v6051, %v6050
    %v6069 = vpack.c.b16 %v6053, %v6052
    %6086 = vmatprep.subr.bf16.mxu0 0
    %6087 = vmatpush1.bf16.msra.mxu0 %v6061
    %6088 = vmatprep.subr.bf16.mxu0 0
    %6089 = vmatpush1.bf16.msra.mxu0 %v6060
    %6090 = vmatprep.subr.bf16.mxu0 0
    %6091 = vmatpush1.bf16.msra.mxu0 %v6059
    %6092 = vmatprep.subr.bf16.mxu0 0
    %6093 = vmatpush1.bf16.msra.mxu0 %v6058
    %6094 = vmatprep.subr.bf16.mxu0 0
    %6095 = vmatpush1.bf16.msra.mxu0 %v6057
    %6096 = vmatprep.subr.bf16.mxu0 0
    %6097 = vmatpush1.bf16.msra.mxu0 %v6056
    %6098 = vmatprep.subr.bf16.mxu0 0
    %6099 = vmatpush1.bf16.msra.mxu0 %v6055
    %6100 = vmatprep.subr.bf16.mxu0 0
    %6101 = vmatpush1.bf16.msra.mxu0 %v6054
    %6102 = vmatprep.subr.bf16.mxu0 0
    %6103 = vmatpush2.bf16.msra.mxu0 %v6069
    %6104 = vmatprep.subr.bf16.mxu0 0
    %6105 = vmatpush2.bf16.msra.mxu0 %v6068
    %6106 = vmatprep.subr.bf16.mxu0 0
    %6107 = vmatpush2.bf16.msra.mxu0 %v6067
    %6108 = vmatprep.subr.bf16.mxu0 0
    %6109 = vmatpush2.bf16.msra.mxu0 %v6066
    %6110 = vmatprep.subr.bf16.mxu0 0
    %6111 = vmatpush2.bf16.msra.mxu0 %v6065
    %6112 = vmatprep.subr.bf16.mxu0 0
    %6113 = vmatpush2.bf16.msra.mxu0 %v6064
    %6114 = vmatprep.subr.bf16.mxu0 0
    %6115 = vmatpush2.bf16.msra.mxu0 %v6063
    %6116 = vmatprep.subr.bf16.mxu0 0
    %6117 = vmatpush2.bf16.msra.mxu0 %v6062
    %6118 = vmatprep.mubr.bf16.mxu0 %v5950
    %6119 = vmatmul.mubr.bf16.gmra.mxu0 %v5949
    %v6120 = vpop.f32.mrf.mxu0
    %v6121 = vadd.f32 %v5988, %v6120
    %v6122 = vpop.f32.mrf.mxu0
    %v6123 = vpop.f32.mrf.mxu0
    %v6124 = vpop.f32.mrf.mxu0
    %6125 = vdwg.mxu0
    %v6126 = vsel %vm310, %v6121, -1e+30
    %6127 = vmax.xlane.f32.xlu0 %v6126
    %v6128 = vpop.xlane.xlu0 %6127
    %v6129 = vsub.f32 %v6126, %v6128
    %v6130 = vmul.f32 %v6129, 1.442695
    %v6131 = vpow.pop %v6130
    %v6132 = vsel %vm310, %v6131, 0.0
    %6133 = vadd.xlane.f32.xlu0 %v6132
    %v6134 = vpop.xlane.xlu0 %6133
    %v6135 = vrcp.pop %v6134
    %v6136 = vmul.f32 %v6132, %v6135
    %v6137 = vadd.f32 %v4194, %v6136
    %v6138 = vadd.f32 %v6137, %v2252
    %v6139 = vmul.f32 %v6138, %v6138
    %6140 = vadd.xlane.f32.xlu0 %v6139
    %v6141 = vpop.xlane.xlu0 %6140
    %v6142 = vmax.f32 %v6141, 1e-24
    %v6143 = vrsqrt.pop %v6142
    %v6144 = vmul.f32 %v6138, %v6143
    %v6145 = vsel %vm310, %v6144, -1e+30
    %6146 = vmax.xlane.f32.xlu0 %v6145
    %v6147 = vpop.xlane.xlu0 %6146
    %v6148 = vsub.f32 %v6145, %v6147
    %v6149 = vmul.f32 %v6148, 1.442695
    %v6150 = vpow.pop %v6149
    %v6151 = vsel %vm310, %v6150, 0.0
    %6152 = vadd.xlane.f32.xlu0 %v6151
    %v6153 = vpop.xlane.xlu0 %6152
    %v6154 = vrcp.pop %v6153
    %v6155 = vmul.f32 %v6151, %v6154
    %6156 = vst [vmem:[#allocation29] sm:$0xff] %v6155
    // Predicated region
    $region178: #{tpu_custom_call.1} parent=1 // pred_check
      _
    $region179: #{tpu_custom_call.1} parent=1 // pred_check_branch
      %6158 = sbr.rel (0) target = $region181
    $region180: #{tpu_custom_call.1} parent=1 // pred_region
      %s6160 = ssub.s32 128, 128
      %6161 = vsyncadd [#allocation4], %s6160
      %s6163 = sshll.u32 [#allocation29], 4
      %s6164 = int_to_ptr.vmem [resolvable:$true] %s6163
      %6166 = dma.vmem_to_hbm [thread:$0]  %s6164, 128, %s27, [#allocation4]
    $region181: #{tpu_custom_call.1} parent=1 // pred_fallthru
      _
    // Predicated region
    $region182: #{tpu_custom_call.1} parent=1 // pred_check
      _
    $region183: #{tpu_custom_call.1} parent=1 // pred_check_branch
      %6168 = sbr.rel (0) target = $region185
    $region184: #{tpu_custom_call.1} parent=1 // pred_region
      %6169 = dma.done [#allocation4], 128
    $region185: #{tpu_custom_call.1} parent=1 // pred_fallthru
      _
    %6170 = vsyncpa [#allocation3], 1
    %6171 = vsyncpa [#allocation6], 1
    %6172 = vsyncpa [#allocation9], 1
    %6173 = vsyncpa [#allocation12], 1
    %6174 = vsyncpa [#allocation15], 1
    %6175 = vsyncpa [#allocation18], 1
    %6176 = vsyncpa [#allocation21], 1
    %6177 = vsyncpa [#allocation24], 1
    %6178 = vsyncpa [#allocation27], 1
    %6179 = vsyncpa [#allocation4], 1

</llo_original>
